<compile_context>
chip_gen: v7x
topology: tpu7x:2x2x1
jax: 0.10.0
libtpu: 0.0.40
codegen_flags: <defaults>
</compile_context>

<pallas_src>
import functools

import jax
import jax.numpy as jnp
from jax.experimental import pallas as pl
from jax.experimental.pallas import tpu as pltpu


def _cdiv(a, b):
    return -(-a // b)


def _round_up(x, m):
    return _cdiv(x, m) * m


def decoder_kernel(z_ref, w1_ref, b1_ref, w2_ref, b2_ref, out_ref):
    # Per grid step:
    #   z_ref  : (TM, L)  f32   w1_ref: (L, Hp) f32   b1_ref: (1, Hp) f32
    #   w2_ref : (Hp, D)  bf16  b2_ref: (1, D)  f32   out_ref: (TM, D)
    z = z_ref[...].astype(jnp.float32)            # (TM, L)
    w1 = w1_ref[...]                              # (L, Hp)
    tm, lat = z.shape
    hp = w1.shape[1]

    # fc1 on the VPU: latent dim is tiny (8), so an unrolled broadcast-FMA
    # avoids an underfilled-K MXU pass and keeps fc1 fully in f32.
    h = jnp.zeros((tm, hp), jnp.float32)
    for l in range(lat):                          # static, fully unrolled
        h = h + z[:, l:l + 1] * w1[l:l + 1, :]
    h = jnp.tanh(h + b1_ref[...]).astype(jnp.bfloat16)   # EUP tanh, bf16 for MXU

    # fc2 on the MXU (bf16 operands, f32 accumulate) + bias in f32.
    logits = jnp.dot(h, w2_ref[...],
                     preferred_element_type=jnp.float32) + b2_ref[...]

    # sigmoid = 1 / (1 + exp(-x)); exp + approx reciprocal both live on the EUP.
    out_ref[...] = pl.reciprocal(1.0 + jnp.exp(-logits),
                                 approx=True).astype(out_ref.dtype)


def prepare_decoder_params(w1, b1, w2, b2, *, lane=128):
    """One-time (init-time) parameter prep: pad hidden dim to a lane multiple
    and pre-cast fc2 weights to bf16. Call once; pass results to decoder_forward.

    Padded hidden columns are harmless: b1 pad = 0 -> tanh(0) = 0, and the
    matching w2 rows are zero, so they contribute nothing to fc2.
    """
    L, H = w1.shape
    D = w2.shape[1]
    Hp = _round_up(H, lane)

    w1p = jnp.zeros((L, Hp), jnp.float32).at[:, :H].set(w1.astype(jnp.float32))
    b1p = jnp.zeros((1, Hp), jnp.float32).at[0, :H].set(b1.astype(jnp.float32))
    w2p = jnp.zeros((Hp, D), jnp.bfloat16).at[:H, :].set(w2.astype(jnp.bfloat16))
    b2p = b2.astype(jnp.float32).reshape(1, D)
    return w1p, b1p, w2p, b2p


@functools.partial(jax.jit, static_argnames=("tm",))
def decoder_forward(z, w1p, b1p, w2p, b2p, *, tm=512):
    """z: (B, L) any float dtype; params from prepare_decoder_params -> (B, D)."""
    B, L = z.shape
    Hp = w1p.shape[1]
    D = w2p.shape[1]

    # Pick the number of batch tiles first, then the tile size, so padding can
    # never approach a full wasted tile. With B=1024, tm=512 this gives two
    # independent 512-row tiles ("parallel" -> both TCs on v7x, only 2 cheap
    # sequential steps on single-TC v5e/v6e).
    n_tiles = max(1, _cdiv(B, tm))
    TM = _round_up(_cdiv(B, n_tiles), 8)
    Bp = TM * _cdiv(B, TM)

    # Only copy z if batch padding is actually required (not in the demo).
    zp = z if Bp == B else jnp.zeros((Bp, L), z.dtype).at[:B, :].set(z)

    out = pl.pallas_call(
        decoder_kernel,
        out_shape=jax.ShapeDtypeStruct((Bp, D), z.dtype),
        grid_spec=pltpu.PrefetchScalarGridSpec(
            num_scalar_prefetch=0,
            grid=(Bp // TM,),
            in_specs=[
                # Streamed batch tile (double-buffered by the BlockSpec pipeline).
                pl.BlockSpec((TM, L), lambda i: (i, 0)),
                # Tiny weights / biases: same block every step -> VMEM-resident.
                pl.BlockSpec((L, Hp), lambda i: (0, 0)),
                pl.BlockSpec((1, Hp), lambda i: (0, 0)),
                pl.BlockSpec((Hp, D), lambda i: (0, 0)),
                pl.BlockSpec((1, D), lambda i: (0, 0)),
            ],
            # Output width is the true data dim D (masked 64-lane store) so no
            # post-kernel un-padding slice / extra HBM pass is needed.
            out_specs=pl.BlockSpec((TM, D), lambda i: (i, 0)),
        ),
        compiler_params=pltpu.CompilerParams(
            dimension_semantics=("parallel",),
        ),
    )(zp, w1p, b1p, w2p, b2p)

    return out if Bp == B else out[:B]


def reference_forward(z, w1, b1, w2, b2):
    h = jnp.tanh(z @ w1 + b1)
    return jax.nn.sigmoid(h @ w2 + b2)


if __name__ == "__main__":
    # Module-consistent shapes: latent=8, hidden=32, data=64; batch big enough
    # to exercise two parallel batch tiles while staying tiny (<0.5 MB total).
    B, LATENT, HIDDEN, DATA = 1024, 8, 32, 64

    key = jax.random.PRNGKey(0)
    kz, kw1, kb1, kw2, kb2 = jax.random.split(key, 5)

    z = jax.random.normal(kz, (B, LATENT), dtype=jnp.float32)

    # Deterministic parameter init (uniform, akin to PyTorch Linear default scale).
    w1 = jax.random.uniform(kw1, (LATENT, HIDDEN), jnp.float32,
                            -1.0 / LATENT ** 0.5, 1.0 / LATENT ** 0.5)
    b1 = jax.random.uniform(kb1, (HIDDEN,), jnp.float32,
                            -1.0 / LATENT ** 0.5, 1.0 / LATENT ** 0.5)
    w2 = jax.random.uniform(kw2, (HIDDEN, DATA), jnp.float32,
                            -1.0 / HIDDEN ** 0.5, 1.0 / HIDDEN ** 0.5)
    b2 = jax.random.uniform(kb2, (DATA,), jnp.float32,
                            -1.0 / HIDDEN ** 0.5, 1.0 / HIDDEN ** 0.5)

    # Init-time parameter prep (hoisted out of the forward path).
    params = prepare_decoder_params(w1, b1, w2, b2)
    params = jax.block_until_ready(params)

    out = decoder_forward(z, *params)
    out = jax.block_until_ready(out)

    ref = reference_forward(z, w1, b1, w2, b2)
    assert out.shape == (B, DATA), out.shape
    # fc1/tanh are full f32; only fc2 uses bf16 MXU operands (h, w2) with f32
    # accumulation, so sigmoid-bounded outputs match the f32 reference closely.
    assert jnp.allclose(out, ref, atol=2e-2, rtol=0.0), "mismatch vs reference"

    print("KERNEL_OK")
</pallas_src>

<mosaic_0001>
module attributes {stable_mosaic.version = 11 : i64} {
  func.func @decoder_kernel(%arg0: i32, %arg1: memref<512x8xf32, #tpu.memory_space<vmem>>, %arg2: memref<8x128xf32, #tpu.memory_space<vmem>>, %arg3: memref<1x128xf32, #tpu.memory_space<vmem>>, %arg4: memref<128x64xbf16, #tpu.memory_space<vmem>>, %arg5: memref<1x64xf32, #tpu.memory_space<vmem>>, %arg6: memref<512x64xf32, #tpu.memory_space<vmem>>) attributes {dimension_semantics = [#tpu.dimension_semantics<parallel>], iteration_bounds = array<i64: 2>, scalar_prefetch = 0 : i64, scratch_operands = 0 : i64, tpu.core_type = #tpu.core_type<tc>, window_params = [{transform_indices = @transform_0, window_bounds = array<i64: 512, 8>}, {pipeline_mode = #tpu.pipeline_mode<synchronous>, transform_indices = @transform_1, window_bounds = array<i64: 8, 128>}, {pipeline_mode = #tpu.pipeline_mode<synchronous>, transform_indices = @transform_2, window_bounds = array<i64: 1, 128>}, {pipeline_mode = #tpu.pipeline_mode<synchronous>, transform_indices = @transform_3, window_bounds = array<i64: 128, 64>}, {pipeline_mode = #tpu.pipeline_mode<synchronous>, transform_indices = @transform_4, window_bounds = array<i64: 1, 64>}, {transform_indices = @transform_5, window_bounds = array<i64: 512, 64>}]} {
    %c0 = arith.constant 0 : index
    %c0_0 = arith.constant 0 : index
    %0 = vector.load %arg1[%c0, %c0_0] : memref<512x8xf32, #tpu.memory_space<vmem>>, vector<512x8xf32>
    %c0_1 = arith.constant 0 : index
    %c0_2 = arith.constant 0 : index
    %1 = vector.load %arg2[%c0_1, %c0_2] : memref<8x128xf32, #tpu.memory_space<vmem>>, vector<8x128xf32>
    %cst = arith.constant 0.000000e+00 : f32
    %2 = vector.broadcast %cst : f32 to vector<512x128xf32>
    %3 = vector.extract_strided_slice %0 {offsets = [0, 0], sizes = [512, 1], strides = [1, 1]} : vector<512x8xf32> to vector<512x1xf32>
    %4 = vector.extract_strided_slice %1 {offsets = [0, 0], sizes = [1, 128], strides = [1, 1]} : vector<8x128xf32> to vector<1x128xf32>
    %5 = vector.broadcast %3 : vector<512x1xf32> to vector<512x128xf32>
    %6 = vector.broadcast %4 : vector<1x128xf32> to vector<512x128xf32>
    %7 = arith.mulf %5, %6 : vector<512x128xf32>
    %8 = arith.addf %2, %7 : vector<512x128xf32>
    %9 = vector.extract_strided_slice %0 {offsets = [0, 1], sizes = [512, 1], strides = [1, 1]} : vector<512x8xf32> to vector<512x1xf32>
    %10 = vector.extract_strided_slice %1 {offsets = [1, 0], sizes = [1, 128], strides = [1, 1]} : vector<8x128xf32> to vector<1x128xf32>
    %11 = vector.broadcast %9 : vector<512x1xf32> to vector<512x128xf32>
    %12 = vector.broadcast %10 : vector<1x128xf32> to vector<512x128xf32>
    %13 = arith.mulf %11, %12 : vector<512x128xf32>
    %14 = arith.addf %8, %13 : vector<512x128xf32>
    %15 = vector.extract_strided_slice %0 {offsets = [0, 2], sizes = [512, 1], strides = [1, 1]} : vector<512x8xf32> to vector<512x1xf32>
    %16 = vector.extract_strided_slice %1 {offsets = [2, 0], sizes = [1, 128], strides = [1, 1]} : vector<8x128xf32> to vector<1x128xf32>
    %17 = vector.broadcast %15 : vector<512x1xf32> to vector<512x128xf32>
    %18 = vector.broadcast %16 : vector<1x128xf32> to vector<512x128xf32>
    %19 = arith.mulf %17, %18 : vector<512x128xf32>
    %20 = arith.addf %14, %19 : vector<512x128xf32>
    %21 = vector.extract_strided_slice %0 {offsets = [0, 3], sizes = [512, 1], strides = [1, 1]} : vector<512x8xf32> to vector<512x1xf32>
    %22 = vector.extract_strided_slice %1 {offsets = [3, 0], sizes = [1, 128], strides = [1, 1]} : vector<8x128xf32> to vector<1x128xf32>
    %23 = vector.broadcast %21 : vector<512x1xf32> to vector<512x128xf32>
    %24 = vector.broadcast %22 : vector<1x128xf32> to vector<512x128xf32>
    %25 = arith.mulf %23, %24 : vector<512x128xf32>
    %26 = arith.addf %20, %25 : vector<512x128xf32>
    %27 = vector.extract_strided_slice %0 {offsets = [0, 4], sizes = [512, 1], strides = [1, 1]} : vector<512x8xf32> to vector<512x1xf32>
    %28 = vector.extract_strided_slice %1 {offsets = [4, 0], sizes = [1, 128], strides = [1, 1]} : vector<8x128xf32> to vector<1x128xf32>
    %29 = vector.broadcast %27 : vector<512x1xf32> to vector<512x128xf32>
    %30 = vector.broadcast %28 : vector<1x128xf32> to vector<512x128xf32>
    %31 = arith.mulf %29, %30 : vector<512x128xf32>
    %32 = arith.addf %26, %31 : vector<512x128xf32>
    %33 = vector.extract_strided_slice %0 {offsets = [0, 5], sizes = [512, 1], strides = [1, 1]} : vector<512x8xf32> to vector<512x1xf32>
    %34 = vector.extract_strided_slice %1 {offsets = [5, 0], sizes = [1, 128], strides = [1, 1]} : vector<8x128xf32> to vector<1x128xf32>
    %35 = vector.broadcast %33 : vector<512x1xf32> to vector<512x128xf32>
    %36 = vector.broadcast %34 : vector<1x128xf32> to vector<512x128xf32>
    %37 = arith.mulf %35, %36 : vector<512x128xf32>
    %38 = arith.addf %32, %37 : vector<512x128xf32>
    %39 = vector.extract_strided_slice %0 {offsets = [0, 6], sizes = [512, 1], strides = [1, 1]} : vector<512x8xf32> to vector<512x1xf32>
    %40 = vector.extract_strided_slice %1 {offsets = [6, 0], sizes = [1, 128], strides = [1, 1]} : vector<8x128xf32> to vector<1x128xf32>
    %41 = vector.broadcast %39 : vector<512x1xf32> to vector<512x128xf32>
    %42 = vector.broadcast %40 : vector<1x128xf32> to vector<512x128xf32>
    %43 = arith.mulf %41, %42 : vector<512x128xf32>
    %44 = arith.addf %38, %43 : vector<512x128xf32>
    %45 = vector.extract_strided_slice %0 {offsets = [0, 7], sizes = [512, 1], strides = [1, 1]} : vector<512x8xf32> to vector<512x1xf32>
    %46 = vector.extract_strided_slice %1 {offsets = [7, 0], sizes = [1, 128], strides = [1, 1]} : vector<8x128xf32> to vector<1x128xf32>
    %47 = vector.broadcast %45 : vector<512x1xf32> to vector<512x128xf32>
    %48 = vector.broadcast %46 : vector<1x128xf32> to vector<512x128xf32>
    %49 = arith.mulf %47, %48 : vector<512x128xf32>
    %50 = arith.addf %44, %49 : vector<512x128xf32>
    %c0_3 = arith.constant 0 : index
    %c0_4 = arith.constant 0 : index
    %51 = vector.load %arg3[%c0_3, %c0_4] : memref<1x128xf32, #tpu.memory_space<vmem>>, vector<1x128xf32>
    %52 = vector.broadcast %51 : vector<1x128xf32> to vector<512x128xf32>
    %53 = arith.addf %50, %52 : vector<512x128xf32>
    %54 = math.tanh %53 : vector<512x128xf32>
    %55 = arith.truncf %54 : vector<512x128xf32> to vector<512x128xbf16>
    %c0_5 = arith.constant 0 : index
    %c0_6 = arith.constant 0 : index
    %56 = vector.load %arg4[%c0_5, %c0_6] : memref<128x64xbf16, #tpu.memory_space<vmem>>, vector<128x64xbf16>
    %cst_7 = arith.constant dense<0.000000e+00> : vector<512x64xf32>
    %57 = tpu.matmul %55, %56, %cst_7 {dimension_numbers = #tpu.dot_dimension_numbers<[1], [0], [0], [1], [0, 0, 1, 1], [], []>} : vector<512x128xbf16>, vector<128x64xbf16>, vector<512x64xf32> -> vector<512x64xf32>
    %c0_8 = arith.constant 0 : index
    %c0_9 = arith.constant 0 : index
    %58 = vector.load %arg5[%c0_8, %c0_9] : memref<1x64xf32, #tpu.memory_space<vmem>>, vector<1x64xf32>
    %59 = vector.broadcast %58 : vector<1x64xf32> to vector<512x64xf32>
    %60 = arith.addf %57, %59 : vector<512x64xf32>
    %cst_10 = arith.constant 0.000000e+00 : f32
    %61 = vector.broadcast %cst_10 : f32 to vector<512x64xf32>
    %62 = arith.subf %61, %60 : vector<512x64xf32>
    %63 = math.exp %62 : vector<512x64xf32>
    %cst_11 = arith.constant 1.000000e+00 : f32
    %64 = vector.broadcast %cst_11 : f32 to vector<512x64xf32>
    %65 = arith.addf %64, %63 : vector<512x64xf32>
    %66 = tpu.reciprocal %65 {approx = true} : vector<512x64xf32> -> vector<512x64xf32>
    %c0_12 = arith.constant 0 : index
    %c0_13 = arith.constant 0 : index
    %67 = vector.load %arg6[%c0_12, %c0_13] : memref<512x64xf32, #tpu.memory_space<vmem>>, vector<512x64xf32>
    tpu.vector_store %arg6[%c0_12, %c0_13], %66 {strides = array<i32>} : memref<512x64xf32, #tpu.memory_space<vmem>>, vector<512x64xf32>,
    return
  }
  func.func @transform_0(%arg0: i32) -> (i32, i32) {
    %c0_i32 = arith.constant 0 : i32
    %c0_i32_0 = arith.constant 0 : i32
    return %arg0, %c0_i32 : i32, i32
  }
  func.func @transform_1(%arg0: i32) -> (i32, i32) {
    %c0_i32 = arith.constant 0 : i32
    %c0_i32_0 = arith.constant 0 : i32
    %c0_i32_1 = arith.constant 0 : i32
    return %c0_i32, %c0_i32_0 : i32, i32
  }
  func.func @transform_2(%arg0: i32) -> (i32, i32) {
    %c0_i32 = arith.constant 0 : i32
    %c0_i32_0 = arith.constant 0 : i32
    %c0_i32_1 = arith.constant 0 : i32
    return %c0_i32, %c0_i32_0 : i32, i32
  }
  func.func @transform_3(%arg0: i32) -> (i32, i32) {
    %c0_i32 = arith.constant 0 : i32
    %c0_i32_0 = arith.constant 0 : i32
    %c0_i32_1 = arith.constant 0 : i32
    return %c0_i32, %c0_i32_0 : i32, i32
  }
  func.func @transform_4(%arg0: i32) -> (i32, i32) {
    %c0_i32 = arith.constant 0 : i32
    %c0_i32_0 = arith.constant 0 : i32
    %c0_i32_1 = arith.constant 0 : i32
    return %c0_i32, %c0_i32_0 : i32, i32
  }
  func.func @transform_5(%arg0: i32) -> (i32, i32) {
    %c0_i32 = arith.constant 0 : i32
    %c0_i32_0 = arith.constant 0 : i32
    return %arg0, %c0_i32 : i32, i32
  }
}

</mosaic_0001>

<llo_original>
// kernel: decoder_forward.1
$region0: #{decoder_forward.1}
  #allocation0 [shape = 'u32[]', space=smem, size = 0x4, offset = 0x4, fixed_abs, tag = 'smem constant byte address 0x4 - core index']
  #allocation1 [shape = 'u32[144,128]{1,0:T(1,128)}', space=vmem, size = 0x12000, scoped, tag = 'internal scratch']
  %s0 = inlined_call_operand.vmem [shape: f32[1024,8], index: 0, kind: input, shape index: {}]
  %s1 = inlined_call_operand.vmem [shape: f32[8,128], index: 1, kind: input, shape index: {}]
  %s2 = inlined_call_operand.vmem [shape: f32[1,128], index: 2, kind: input, shape index: {}]
  %s3 = inlined_call_operand.vmem [shape: bf16[128,64], index: 3, kind: input, shape index: {}]
  %s4 = inlined_call_operand.vmem [shape: f32[1,64], index: 4, kind: input, shape index: {}]
  %s5 = inlined_call_operand.vmem [shape: f32[1024,64], index: 5, kind: output, shape index: {}]
  %s6 = sld [smem:[#allocation0]]
  $region53: #{decoder_forward.1} parent=0
    _
  %s8 = ssub.s32 1, %s6
  %s9 = scalar_select 0, %s8, %s6
  loop: start=0, step=1, limit=4
  $region2: #{decoder_forward.1} parent=0 // loop_pre_header
    _
  $region3: #{decoder_forward.1} parent=0 // loop_header
    %s11 = sphi 0, %s15
    %p12 = scmp.ge.s32.totalorder %s11, 4
    %s21 = sphi 0, %s23
    %s24 = sphi 0, %s21
    %s25 = sphi 0, %s24
    %s41 = sphi 0, %s25
    %s45 = sphi 0, %s45
    %s47 = sphi 0, %s45
    %s48 = sphi 0, %s47
    %s62 = sphi 0, %s48
    %s66 = sphi 0, %s66
    %s68 = sphi 0, %s66
    %s69 = sphi 0, %s68
    %s83 = sphi 0, %s69
    %s87 = sphi 0, %s87
    %s89 = sphi 0, %s87
    %s90 = sphi 0, %s89
    %s104 = sphi 0, %s90
    %s108 = sphi 0, %s108
    %s110 = sphi 0, %s108
    %s111 = sphi 0, %s110
    %s125 = sphi 0, %s111
    %s131 = sphi 0, %s133
    %s134 = sphi 0, %s131
    %s135 = sphi 0, %s134
    %s151 = sphi 0, %s135
  $region4: #{decoder_forward.1} parent=0 // loop_header_branch
    %14 = sbr.rel (%p12) target = $region8
  $region5: #{decoder_forward.1} parent=0 // loop_body
    %s16 = ssub.s32 %s11, 1
    %s17 = ssub.s32 %s11, 2
    %s18 = sadd.s32 %s11, 1
    %s19 = ssub.s32 %s11, %s18
    %p20 = scmp.eq.s32.totalorder %s19, 0
    %s22 = sadd.s32 %s21, 1
    %s23 = scalar_select %p20, %s21, %s22
    %p26 = pneg %p20
    %p27 = scmp.eq.s32.totalorder %s11, 1
    %p28 = por %p26, %p27
    %p29 = scmp.ne.s32.totalorder %s21, %s24
    %p30 = scmp.eq.s32.totalorder %s11, 0
    %p31 = por %p29, %p30
    %p32 = scmp.ne.s32.totalorder %s21, %s24
    %p33 = scmp.eq.s32.totalorder %s16, 1
    %p34 = por %p32, %p33
    %p35 = scmp.ne.s32.totalorder %s24, %s25
    %p36 = scmp.eq.s32.totalorder %s16, 0
    %p37 = por %p35, %p36
    %p38 = scmp.ne.s32.totalorder %s24, %s25
    %p39 = scmp.eq.s32.totalorder %s17, 1
    %p40 = por %p38, %p39
    %p42 = scmp.ne.s32.totalorder %s25, %s41
    %p43 = scmp.eq.s32.totalorder %s17, 0
    %p44 = por %p42, %p43
    %s46 = sadd.s32 %s45, 1
    %p49 = scmp.eq.s32.totalorder %s11, 1
    %p50 = scmp.ne.s32.totalorder %s45, %s47
    %p51 = scmp.eq.s32.totalorder %s11, 0
    %p52 = por %p50, %p51
    %p53 = scmp.ne.s32.totalorder %s45, %s47
    %p54 = scmp.eq.s32.totalorder %s16, 1
    %p55 = por %p53, %p54
    %p56 = scmp.ne.s32.totalorder %s47, %s48
    %p57 = scmp.eq.s32.totalorder %s16, 0
    %p58 = por %p56, %p57
    %p59 = scmp.ne.s32.totalorder %s47, %s48
    %p60 = scmp.eq.s32.totalorder %s17, 1
    %p61 = por %p59, %p60
    %p63 = scmp.ne.s32.totalorder %s48, %s62
    %p64 = scmp.eq.s32.totalorder %s17, 0
    %p65 = por %p63, %p64
    %s67 = sadd.s32 %s66, 1
    %p70 = scmp.eq.s32.totalorder %s11, 1
    %p71 = scmp.ne.s32.totalorder %s66, %s68
    %p72 = scmp.eq.s32.totalorder %s11, 0
    %p73 = por %p71, %p72
    %p74 = scmp.ne.s32.totalorder %s66, %s68
    %p75 = scmp.eq.s32.totalorder %s16, 1
    %p76 = por %p74, %p75
    %p77 = scmp.ne.s32.totalorder %s68, %s69
    %p78 = scmp.eq.s32.totalorder %s16, 0
    %p79 = por %p77, %p78
    %p80 = scmp.ne.s32.totalorder %s68, %s69
    %p81 = scmp.eq.s32.totalorder %s17, 1
    %p82 = por %p80, %p81
    %p84 = scmp.ne.s32.totalorder %s69, %s83
    %p85 = scmp.eq.s32.totalorder %s17, 0
    %p86 = por %p84, %p85
    %s88 = sadd.s32 %s87, 1
    %p91 = scmp.eq.s32.totalorder %s11, 1
    %p92 = scmp.ne.s32.totalorder %s87, %s89
    %p93 = scmp.eq.s32.totalorder %s11, 0
    %p94 = por %p92, %p93
    %p95 = scmp.ne.s32.totalorder %s87, %s89
    %p96 = scmp.eq.s32.totalorder %s16, 1
    %p97 = por %p95, %p96
    %p98 = scmp.ne.s32.totalorder %s89, %s90
    %p99 = scmp.eq.s32.totalorder %s16, 0
    %p100 = por %p98, %p99
    %p101 = scmp.ne.s32.totalorder %s89, %s90
    %p102 = scmp.eq.s32.totalorder %s17, 1
    %p103 = por %p101, %p102
    %p105 = scmp.ne.s32.totalorder %s90, %s104
    %p106 = scmp.eq.s32.totalorder %s17, 0
    %p107 = por %p105, %p106
    %s109 = sadd.s32 %s108, 1
    %p112 = scmp.eq.s32.totalorder %s11, 1
    %p113 = scmp.ne.s32.totalorder %s108, %s110
    %p114 = scmp.eq.s32.totalorder %s11, 0
    %p115 = por %p113, %p114
    %p116 = scmp.ne.s32.totalorder %s108, %s110
    %p117 = scmp.eq.s32.totalorder %s16, 1
    %p118 = por %p116, %p117
    %p119 = scmp.ne.s32.totalorder %s110, %s111
    %p120 = scmp.eq.s32.totalorder %s16, 0
    %p121 = por %p119, %p120
    %p122 = scmp.ne.s32.totalorder %s110, %s111
    %p123 = scmp.eq.s32.totalorder %s17, 1
    %p124 = por %p122, %p123
    %p126 = scmp.ne.s32.totalorder %s111, %s125
    %p127 = scmp.eq.s32.totalorder %s17, 0
    %p128 = por %p126, %p127
    %s129 = ssub.s32 %s11, %s18
    %p130 = scmp.eq.s32.totalorder %s129, 0
    %s132 = sadd.s32 %s131, 1
    %s133 = scalar_select %p130, %s131, %s132
    %p136 = pneg %p130
    %p137 = scmp.eq.s32.totalorder %s11, 1
    %p138 = por %p136, %p137
    %p139 = scmp.ne.s32.totalorder %s131, %s134
    %p140 = scmp.eq.s32.totalorder %s11, 0
    %p141 = por %p139, %p140
    %p142 = scmp.ne.s32.totalorder %s131, %s134
    %p143 = scmp.eq.s32.totalorder %s16, 1
    %p144 = por %p142, %p143
    %p145 = scmp.ne.s32.totalorder %s134, %s135
    %p146 = scmp.eq.s32.totalorder %s16, 0
    %p147 = por %p145, %p146
    %p148 = scmp.ne.s32.totalorder %s134, %s135
    %p149 = scmp.eq.s32.totalorder %s17, 1
    %p150 = por %p148, %p149
    %p152 = scmp.ne.s32.totalorder %s135, %s151
    %p153 = scmp.eq.s32.totalorder %s17, 0
    %p154 = por %p152, %p153
    %p155 = scmp.le.s32.totalorder 1, %s11
    %p156 = scmp.lt.s32.totalorder %s11, 3
    %p157 = pnand %p155, %p156
    %p158 = pneg %p157
    // Predicated region
    $region9: #{decoder_forward.1} parent=5 // pred_check
      _
    $region10: #{decoder_forward.1} parent=5 // pred_check_branch
      %160 = sbr.rel (%p157) target = $region12
    $region11: #{decoder_forward.1} parent=5 // pred_region
      %s161 = ssub.s32 %s11, 1
      // Predicated region
      $region13: #{decoder_forward.1} parent=11 // pred_check
        %p162 = pneg %p58
      $region14: #{decoder_forward.1} parent=11 // pred_check_branch
        %164 = sbr.rel (%p162) target = $region16
      $region15: #{decoder_forward.1} parent=11 // pred_region
        _
      $region16: #{decoder_forward.1} parent=11 // pred_fallthru
        _
      // Predicated region
      $region17: #{decoder_forward.1} parent=11 // pred_check
        %p165 = pneg %p79
      $region18: #{decoder_forward.1} parent=11 // pred_check_branch
        %167 = sbr.rel (%p165) target = $region20
      $region19: #{decoder_forward.1} parent=11 // pred_region
        _
      $region20: #{decoder_forward.1} parent=11 // pred_fallthru
        _
      // Predicated region
      $region21: #{decoder_forward.1} parent=11 // pred_check
        %p168 = pneg %p100
      $region22: #{decoder_forward.1} parent=11 // pred_check_branch
        %170 = sbr.rel (%p168) target = $region24
      $region23: #{decoder_forward.1} parent=11 // pred_region
        _
      $region24: #{decoder_forward.1} parent=11 // pred_fallthru
        _
      // Predicated region
      $region25: #{decoder_forward.1} parent=11 // pred_check
        %p171 = pneg %p121
      $region26: #{decoder_forward.1} parent=11 // pred_check_branch
        %173 = sbr.rel (%p171) target = $region28
      $region27: #{decoder_forward.1} parent=11 // pred_region
        _
      $region28: #{decoder_forward.1} parent=11 // pred_fallthru
        _
    $region12: #{decoder_forward.1} parent=5 // pred_fallthru
      _
    %p174 = scmp.lt.s32.totalorder %s11, 2
    // Predicated region
    $region29: #{decoder_forward.1} parent=5 // pred_check
      %p175 = pneg %p174
    $region30: #{decoder_forward.1} parent=5 // pred_check_branch
      %177 = sbr.rel (%p175) target = $region32
    $region31: #{decoder_forward.1} parent=5 // pred_region
      // Predicated region
      $region33: #{decoder_forward.1} parent=31 // pred_check
        %p178 = pneg %p31
      $region34: #{decoder_forward.1} parent=31 // pred_check_branch
        %180 = sbr.rel (%p178) target = $region36
      $region35: #{decoder_forward.1} parent=31 // pred_region
        %s181 = smul.u32 64, %s11
        %p182 = scmp.lt.s32.totalorder %s181, 127
        %s183 = scalar_select %p182, %s181, 127
        %s184 = smul.addr %s183, 8
        %s185 = scalar_lea.vmem %s0, %s184
        %s186 = smul.u32 64, %s11
      $region36: #{decoder_forward.1} parent=31 // pred_fallthru
        _
    $region32: #{decoder_forward.1} parent=5 // pred_fallthru
      _
    %p187 = scmp.le.s32.totalorder 1, %s11
    %p188 = scmp.lt.s32.totalorder %s11, 3
    %p189 = pnand %p187, %p188
    %p190 = pneg %p189
    // Predicated region
    $region37: #{decoder_forward.1} parent=5 // pred_check
      _
    $region38: #{decoder_forward.1} parent=5 // pred_check_branch
      %192 = sbr.rel (%p189) target = $region40
    $region39: #{decoder_forward.1} parent=5 // pred_region
      %s193 = ssub.s32 %s11, 1
      %s194 = smul.u32 64, %s16
      %p195 = scmp.lt.s32.totalorder %s194, 127
      %s196 = scalar_select %p195, %s194, 127
      %s197 = smul.addr %s196, 8
      %s198 = scalar_lea.vmem %s0, %s197
      %p199 = pneg %p37
      %p200 = pneg %p34
      %p201 = pneg %p58
      %p202 = pneg %p55
      %p203 = pneg %p79
      %p204 = pneg %p76
      %p205 = pneg %p100
      %p206 = pneg %p97
      %p207 = pneg %p121
      %p208 = pneg %p118
      %p209 = pneg %p147
      %p210 = pneg %p144
      %s211 = smul.u32 64, %s16
      %p212 = scmp.lt.s32.totalorder %s211, 127
      %s213 = scalar_select %p212, %s211, 127
      %s214 = smul.addr %s213, 8
      %s215 = scalar_lea.vmem %s5, %s214
      %s216 = smul.u32 64, %s16
      %p217 = scmp.lt.s32.totalorder %s216, 127
      %s218 = scalar_select %p217, %s216, 127
      %s219 = smul.addr %s218, 8
      %s220 = scalar_lea.vmem %s0, %s219
      %s221 = smul.u32 64, %s16
      %s222 = smul.u32 64, %s16
      %p223 = scmp.lt.s32.totalorder %s222, 127
      %s224 = scalar_select %p223, %s222, 127
      %s225 = smul.addr %s224, 8
      %s226 = scalar_lea.vmem %s5, %s225
      %s227 = smul.u32 64, %s16
      %v229 = vld [vmem:[%s220] sm:$0xff]
      %v230 = vld [vmem:[%s220 + $0x8] sm:$0xff]
      %v231 = vld [vmem:[%s220 + $0x10] sm:$0xff]
      %v232 = vld [vmem:[%s220 + $0x18] sm:$0xff]
      %v233 = vld [vmem:[%s220 + $0x20] sm:$0xff]
      %v234 = vld [vmem:[%s220 + $0x28] sm:$0xff]
      %v235 = vld [vmem:[%s220 + $0x30] sm:$0xff]
      %v236 = vld [vmem:[%s220 + $0x38] sm:$0xff]
      %v237 = vld [vmem:[%s220 + $0x40] sm:$0xff]
      %v238 = vld [vmem:[%s220 + $0x48] sm:$0xff]
      %v239 = vld [vmem:[%s220 + $0x50] sm:$0xff]
      %v240 = vld [vmem:[%s220 + $0x58] sm:$0xff]
      %v241 = vld [vmem:[%s220 + $0x60] sm:$0xff]
      %v242 = vld [vmem:[%s220 + $0x68] sm:$0xff]
      %v243 = vld [vmem:[%s220 + $0x70] sm:$0xff]
      %v244 = vld [vmem:[%s220 + $0x78] sm:$0xff]
      %v245 = vld [vmem:[%s220 + $0x80] sm:$0xff]
      %v246 = vld [vmem:[%s220 + $0x88] sm:$0xff]
      %v247 = vld [vmem:[%s220 + $0x90] sm:$0xff]
      %v248 = vld [vmem:[%s220 + $0x98] sm:$0xff]
      %v249 = vld [vmem:[%s220 + $0xa0] sm:$0xff]
      %v250 = vld [vmem:[%s220 + $0xa8] sm:$0xff]
      %v251 = vld [vmem:[%s220 + $0xb0] sm:$0xff]
      %v252 = vld [vmem:[%s220 + $0xb8] sm:$0xff]
      %v253 = vld [vmem:[%s220 + $0xc0] sm:$0xff]
      %v254 = vld [vmem:[%s220 + $0xc8] sm:$0xff]
      %v255 = vld [vmem:[%s220 + $0xd0] sm:$0xff]
      %v256 = vld [vmem:[%s220 + $0xd8] sm:$0xff]
      %v257 = vld [vmem:[%s220 + $0xe0] sm:$0xff]
      %v258 = vld [vmem:[%s220 + $0xe8] sm:$0xff]
      %v259 = vld [vmem:[%s220 + $0xf0] sm:$0xff]
      %v260 = vld [vmem:[%s220 + $0xf8] sm:$0xff]
      %v261 = vld [vmem:[%s220 + $0x100] sm:$0xff]
      %v262 = vld [vmem:[%s220 + $0x108] sm:$0xff]
      %v263 = vld [vmem:[%s220 + $0x110] sm:$0xff]
      %v264 = vld [vmem:[%s220 + $0x118] sm:$0xff]
      %v265 = vld [vmem:[%s220 + $0x120] sm:$0xff]
      %v266 = vld [vmem:[%s220 + $0x128] sm:$0xff]
      %v267 = vld [vmem:[%s220 + $0x130] sm:$0xff]
      %v268 = vld [vmem:[%s220 + $0x138] sm:$0xff]
      %v269 = vld [vmem:[%s220 + $0x140] sm:$0xff]
      %v270 = vld [vmem:[%s220 + $0x148] sm:$0xff]
      %v271 = vld [vmem:[%s220 + $0x150] sm:$0xff]
      %v272 = vld [vmem:[%s220 + $0x158] sm:$0xff]
      %v273 = vld [vmem:[%s220 + $0x160] sm:$0xff]
      %v274 = vld [vmem:[%s220 + $0x168] sm:$0xff]
      %v275 = vld [vmem:[%s220 + $0x170] sm:$0xff]
      %v276 = vld [vmem:[%s220 + $0x178] sm:$0xff]
      %v277 = vld [vmem:[%s220 + $0x180] sm:$0xff]
      %v278 = vld [vmem:[%s220 + $0x188] sm:$0xff]
      %v279 = vld [vmem:[%s220 + $0x190] sm:$0xff]
      %v280 = vld [vmem:[%s220 + $0x198] sm:$0xff]
      %v281 = vld [vmem:[%s220 + $0x1a0] sm:$0xff]
      %v282 = vld [vmem:[%s220 + $0x1a8] sm:$0xff]
      %v283 = vld [vmem:[%s220 + $0x1b0] sm:$0xff]
      %v284 = vld [vmem:[%s220 + $0x1b8] sm:$0xff]
      %v285 = vld [vmem:[%s220 + $0x1c0] sm:$0xff]
      %v286 = vld [vmem:[%s220 + $0x1c8] sm:$0xff]
      %v287 = vld [vmem:[%s220 + $0x1d0] sm:$0xff]
      %v288 = vld [vmem:[%s220 + $0x1d8] sm:$0xff]
      %v289 = vld [vmem:[%s220 + $0x1e0] sm:$0xff]
      %v290 = vld [vmem:[%s220 + $0x1e8] sm:$0xff]
      %v291 = vld [vmem:[%s220 + $0x1f0] sm:$0xff]
      %v292 = vld [vmem:[%s220 + $0x1f8] sm:$0xff]
      %v293 = vld [vmem:[%s1] sm:$0xff]
      %295 = vset.pattern.permute.xlu0 0
      %296 = vperm.xlu0 %295, %v229
      %v297 = vpop.permute.xlu0 %296
      %300 = vset.pattern.permute.xlu0 0
      %301 = vperm.xlu0 %300, %v230
      %v302 = vpop.permute.xlu0 %301
      %305 = vset.pattern.permute.xlu0 0
      %306 = vperm.xlu0 %305, %v231
      %v307 = vpop.permute.xlu0 %306
      %310 = vset.pattern.permute.xlu0 0
      %311 = vperm.xlu0 %310, %v232
      %v312 = vpop.permute.xlu0 %311
      %315 = vset.pattern.permute.xlu0 0
      %316 = vperm.xlu0 %315, %v233
      %v317 = vpop.permute.xlu0 %316
      %320 = vset.pattern.permute.xlu0 0
      %321 = vperm.xlu0 %320, %v234
      %v322 = vpop.permute.xlu0 %321
      %325 = vset.pattern.permute.xlu0 0
      %326 = vperm.xlu0 %325, %v235
      %v327 = vpop.permute.xlu0 %326
      %330 = vset.pattern.permute.xlu0 0
      %331 = vperm.xlu0 %330, %v236
      %v332 = vpop.permute.xlu0 %331
      %335 = vset.pattern.permute.xlu0 0
      %336 = vperm.xlu0 %335, %v237
      %v337 = vpop.permute.xlu0 %336
      %340 = vset.pattern.permute.xlu0 0
      %341 = vperm.xlu0 %340, %v238
      %v342 = vpop.permute.xlu0 %341
      %345 = vset.pattern.permute.xlu0 0
      %346 = vperm.xlu0 %345, %v239
      %v347 = vpop.permute.xlu0 %346
      %350 = vset.pattern.permute.xlu0 0
      %351 = vperm.xlu0 %350, %v240
      %v352 = vpop.permute.xlu0 %351
      %355 = vset.pattern.permute.xlu0 0
      %356 = vperm.xlu0 %355, %v241
      %v357 = vpop.permute.xlu0 %356
      %360 = vset.pattern.permute.xlu0 0
      %361 = vperm.xlu0 %360, %v242
      %v362 = vpop.permute.xlu0 %361
      %365 = vset.pattern.permute.xlu0 0
      %366 = vperm.xlu0 %365, %v243
      %v367 = vpop.permute.xlu0 %366
      %370 = vset.pattern.permute.xlu0 0
      %371 = vperm.xlu0 %370, %v244
      %v372 = vpop.permute.xlu0 %371
      %375 = vset.pattern.permute.xlu0 0
      %376 = vperm.xlu0 %375, %v245
      %v377 = vpop.permute.xlu0 %376
      %380 = vset.pattern.permute.xlu0 0
      %381 = vperm.xlu0 %380, %v246
      %v382 = vpop.permute.xlu0 %381
      %385 = vset.pattern.permute.xlu0 0
      %386 = vperm.xlu0 %385, %v247
      %v387 = vpop.permute.xlu0 %386
      %390 = vset.pattern.permute.xlu0 0
      %391 = vperm.xlu0 %390, %v248
      %v392 = vpop.permute.xlu0 %391
      %395 = vset.pattern.permute.xlu0 0
      %396 = vperm.xlu0 %395, %v249
      %v397 = vpop.permute.xlu0 %396
      %400 = vset.pattern.permute.xlu0 0
      %401 = vperm.xlu0 %400, %v250
      %v402 = vpop.permute.xlu0 %401
      %405 = vset.pattern.permute.xlu0 0
      %406 = vperm.xlu0 %405, %v251
      %v407 = vpop.permute.xlu0 %406
      %410 = vset.pattern.permute.xlu0 0
      %411 = vperm.xlu0 %410, %v252
      %v412 = vpop.permute.xlu0 %411
      %415 = vset.pattern.permute.xlu0 0
      %416 = vperm.xlu0 %415, %v253
      %v417 = vpop.permute.xlu0 %416
      %420 = vset.pattern.permute.xlu0 0
      %421 = vperm.xlu0 %420, %v254
      %v422 = vpop.permute.xlu0 %421
      %425 = vset.pattern.permute.xlu0 0
      %426 = vperm.xlu0 %425, %v255
      %v427 = vpop.permute.xlu0 %426
      %430 = vset.pattern.permute.xlu0 0
      %431 = vperm.xlu0 %430, %v256
      %v432 = vpop.permute.xlu0 %431
      %435 = vset.pattern.permute.xlu0 0
      %436 = vperm.xlu0 %435, %v257
      %v437 = vpop.permute.xlu0 %436
      %440 = vset.pattern.permute.xlu0 0
      %441 = vperm.xlu0 %440, %v258
      %v442 = vpop.permute.xlu0 %441
      %445 = vset.pattern.permute.xlu0 0
      %446 = vperm.xlu0 %445, %v259
      %v447 = vpop.permute.xlu0 %446
      %450 = vset.pattern.permute.xlu0 0
      %451 = vperm.xlu0 %450, %v260
      %v452 = vpop.permute.xlu0 %451
      %455 = vset.pattern.permute.xlu0 0
      %456 = vperm.xlu0 %455, %v261
      %v457 = vpop.permute.xlu0 %456
      %460 = vset.pattern.permute.xlu0 0
      %461 = vperm.xlu0 %460, %v262
      %v462 = vpop.permute.xlu0 %461
      %465 = vset.pattern.permute.xlu0 0
      %466 = vperm.xlu0 %465, %v263
      %v467 = vpop.permute.xlu0 %466
      %470 = vset.pattern.permute.xlu0 0
      %471 = vperm.xlu0 %470, %v264
      %v472 = vpop.permute.xlu0 %471
      %475 = vset.pattern.permute.xlu0 0
      %476 = vperm.xlu0 %475, %v265
      %v477 = vpop.permute.xlu0 %476
      %480 = vset.pattern.permute.xlu0 0
      %481 = vperm.xlu0 %480, %v266
      %v482 = vpop.permute.xlu0 %481
      %485 = vset.pattern.permute.xlu0 0
      %486 = vperm.xlu0 %485, %v267
      %v487 = vpop.permute.xlu0 %486
      %490 = vset.pattern.permute.xlu0 0
      %491 = vperm.xlu0 %490, %v268
      %v492 = vpop.permute.xlu0 %491
      %495 = vset.pattern.permute.xlu0 0
      %496 = vperm.xlu0 %495, %v269
      %v497 = vpop.permute.xlu0 %496
      %500 = vset.pattern.permute.xlu0 0
      %501 = vperm.xlu0 %500, %v270
      %v502 = vpop.permute.xlu0 %501
      %505 = vset.pattern.permute.xlu0 0
      %506 = vperm.xlu0 %505, %v271
      %v507 = vpop.permute.xlu0 %506
      %510 = vset.pattern.permute.xlu0 0
      %511 = vperm.xlu0 %510, %v272
      %v512 = vpop.permute.xlu0 %511
      %515 = vset.pattern.permute.xlu0 0
      %516 = vperm.xlu0 %515, %v273
      %v517 = vpop.permute.xlu0 %516
      %520 = vset.pattern.permute.xlu0 0
      %521 = vperm.xlu0 %520, %v274
      %v522 = vpop.permute.xlu0 %521
      %525 = vset.pattern.permute.xlu0 0
      %526 = vperm.xlu0 %525, %v275
      %v527 = vpop.permute.xlu0 %526
      %530 = vset.pattern.permute.xlu0 0
      %531 = vperm.xlu0 %530, %v276
      %v532 = vpop.permute.xlu0 %531
      %535 = vset.pattern.permute.xlu0 0
      %536 = vperm.xlu0 %535, %v277
      %v537 = vpop.permute.xlu0 %536
      %540 = vset.pattern.permute.xlu0 0
      %541 = vperm.xlu0 %540, %v278
      %v542 = vpop.permute.xlu0 %541
      %545 = vset.pattern.permute.xlu0 0
      %546 = vperm.xlu0 %545, %v279
      %v547 = vpop.permute.xlu0 %546
      %550 = vset.pattern.permute.xlu0 0
      %551 = vperm.xlu0 %550, %v280
      %v552 = vpop.permute.xlu0 %551
      %555 = vset.pattern.permute.xlu0 0
      %556 = vperm.xlu0 %555, %v281
      %v557 = vpop.permute.xlu0 %556
      %560 = vset.pattern.permute.xlu0 0
      %561 = vperm.xlu0 %560, %v282
      %v562 = vpop.permute.xlu0 %561
      %565 = vset.pattern.permute.xlu0 0
      %566 = vperm.xlu0 %565, %v283
      %v567 = vpop.permute.xlu0 %566
      %570 = vset.pattern.permute.xlu0 0
      %571 = vperm.xlu0 %570, %v284
      %v572 = vpop.permute.xlu0 %571
      %575 = vset.pattern.permute.xlu0 0
      %576 = vperm.xlu0 %575, %v285
      %v577 = vpop.permute.xlu0 %576
      %580 = vset.pattern.permute.xlu0 0
      %581 = vperm.xlu0 %580, %v286
      %v582 = vpop.permute.xlu0 %581
      %585 = vset.pattern.permute.xlu0 0
      %586 = vperm.xlu0 %585, %v287
      %v587 = vpop.permute.xlu0 %586
      %590 = vset.pattern.permute.xlu0 0
      %591 = vperm.xlu0 %590, %v288
      %v592 = vpop.permute.xlu0 %591
      %595 = vset.pattern.permute.xlu0 0
      %596 = vperm.xlu0 %595, %v289
      %v597 = vpop.permute.xlu0 %596
      %600 = vset.pattern.permute.xlu0 0
      %601 = vperm.xlu0 %600, %v290
      %v602 = vpop.permute.xlu0 %601
      %605 = vset.pattern.permute.xlu0 0
      %606 = vperm.xlu0 %605, %v291
      %v607 = vpop.permute.xlu0 %606
      %610 = vset.pattern.permute.xlu0 0
      %611 = vperm.xlu0 %610, %v292
      %v612 = vpop.permute.xlu0 %611
      %v614 = vlaneseq
      %v615 = vshrl.u32 %v614, 7
      %v616 = vsub.s32 0, %v615
      %v617 = vrot.slane %v293, %v616
      %v618 = vmul.f32 %v297, %v617
      %v619 = vmul.f32 %v302, %v617
      %v620 = vmul.f32 %v307, %v617
      %v621 = vmul.f32 %v312, %v617
      %v622 = vmul.f32 %v317, %v617
      %v623 = vmul.f32 %v322, %v617
      %v624 = vmul.f32 %v327, %v617
      %v625 = vmul.f32 %v332, %v617
      %v626 = vmul.f32 %v337, %v617
      %v627 = vmul.f32 %v342, %v617
      %v628 = vmul.f32 %v347, %v617
      %v629 = vmul.f32 %v352, %v617
      %v630 = vmul.f32 %v357, %v617
      %v631 = vmul.f32 %v362, %v617
      %v632 = vmul.f32 %v367, %v617
      %v633 = vmul.f32 %v372, %v617
      %v634 = vmul.f32 %v377, %v617
      %v635 = vmul.f32 %v382, %v617
      %v636 = vmul.f32 %v387, %v617
      %v637 = vmul.f32 %v392, %v617
      %v638 = vmul.f32 %v397, %v617
      %v639 = vmul.f32 %v402, %v617
      %v640 = vmul.f32 %v407, %v617
      %v641 = vmul.f32 %v412, %v617
      %v642 = vmul.f32 %v417, %v617
      %v643 = vmul.f32 %v422, %v617
      %v644 = vmul.f32 %v427, %v617
      %v645 = vmul.f32 %v432, %v617
      %v646 = vmul.f32 %v437, %v617
      %v647 = vmul.f32 %v442, %v617
      %v648 = vmul.f32 %v447, %v617
      %v649 = vmul.f32 %v452, %v617
      %v650 = vmul.f32 %v457, %v617
      %v651 = vmul.f32 %v462, %v617
      %v652 = vmul.f32 %v467, %v617
      %v653 = vmul.f32 %v472, %v617
      %v654 = vmul.f32 %v477, %v617
      %v655 = vmul.f32 %v482, %v617
      %v656 = vmul.f32 %v487, %v617
      %v657 = vmul.f32 %v492, %v617
      %v658 = vmul.f32 %v497, %v617
      %v659 = vmul.f32 %v502, %v617
      %v660 = vmul.f32 %v507, %v617
      %v661 = vmul.f32 %v512, %v617
      %v662 = vmul.f32 %v517, %v617
      %v663 = vmul.f32 %v522, %v617
      %v664 = vmul.f32 %v527, %v617
      %v665 = vmul.f32 %v532, %v617
      %v666 = vmul.f32 %v537, %v617
      %v667 = vmul.f32 %v542, %v617
      %v668 = vmul.f32 %v547, %v617
      %v669 = vmul.f32 %v552, %v617
      %v670 = vmul.f32 %v557, %v617
      %v671 = vmul.f32 %v562, %v617
      %v672 = vmul.f32 %v567, %v617
      %v673 = vmul.f32 %v572, %v617
      %v674 = vmul.f32 %v577, %v617
      %v675 = vmul.f32 %v582, %v617
      %v676 = vmul.f32 %v587, %v617
      %v677 = vmul.f32 %v592, %v617
      %v678 = vmul.f32 %v597, %v617
      %v679 = vmul.f32 %v602, %v617
      %v680 = vmul.f32 %v607, %v617
      %v681 = vmul.f32 %v612, %v617
      %v682 = vadd.f32 %v618, 0.0
      %v683 = vadd.f32 %v619, 0.0
      %v684 = vadd.f32 %v620, 0.0
      %v685 = vadd.f32 %v621, 0.0
      %v686 = vadd.f32 %v622, 0.0
      %v687 = vadd.f32 %v623, 0.0
      %v688 = vadd.f32 %v624, 0.0
      %v689 = vadd.f32 %v625, 0.0
      %v690 = vadd.f32 %v626, 0.0
      %v691 = vadd.f32 %v627, 0.0
      %v692 = vadd.f32 %v628, 0.0
      %v693 = vadd.f32 %v629, 0.0
      %v694 = vadd.f32 %v630, 0.0
      %v695 = vadd.f32 %v631, 0.0
      %v696 = vadd.f32 %v632, 0.0
      %v697 = vadd.f32 %v633, 0.0
      %v698 = vadd.f32 %v634, 0.0
      %v699 = vadd.f32 %v635, 0.0
      %v700 = vadd.f32 %v636, 0.0
      %v701 = vadd.f32 %v637, 0.0
      %v702 = vadd.f32 %v638, 0.0
      %v703 = vadd.f32 %v639, 0.0
      %v704 = vadd.f32 %v640, 0.0
      %v705 = vadd.f32 %v641, 0.0
      %v706 = vadd.f32 %v642, 0.0
      %v707 = vadd.f32 %v643, 0.0
      %v708 = vadd.f32 %v644, 0.0
      %v709 = vadd.f32 %v645, 0.0
      %v710 = vadd.f32 %v646, 0.0
      %v711 = vadd.f32 %v647, 0.0
      %v712 = vadd.f32 %v648, 0.0
      %v713 = vadd.f32 %v649, 0.0
      %v714 = vadd.f32 %v650, 0.0
      %v715 = vadd.f32 %v651, 0.0
      %v716 = vadd.f32 %v652, 0.0
      %v717 = vadd.f32 %v653, 0.0
      %v718 = vadd.f32 %v654, 0.0
      %v719 = vadd.f32 %v655, 0.0
      %v720 = vadd.f32 %v656, 0.0
      %v721 = vadd.f32 %v657, 0.0
      %v722 = vadd.f32 %v658, 0.0
      %v723 = vadd.f32 %v659, 0.0
      %v724 = vadd.f32 %v660, 0.0
      %v725 = vadd.f32 %v661, 0.0
      %v726 = vadd.f32 %v662, 0.0
      %v727 = vadd.f32 %v663, 0.0
      %v728 = vadd.f32 %v664, 0.0
      %v729 = vadd.f32 %v665, 0.0
      %v730 = vadd.f32 %v666, 0.0
      %v731 = vadd.f32 %v667, 0.0
      %v732 = vadd.f32 %v668, 0.0
      %v733 = vadd.f32 %v669, 0.0
      %v734 = vadd.f32 %v670, 0.0
      %v735 = vadd.f32 %v671, 0.0
      %v736 = vadd.f32 %v672, 0.0
      %v737 = vadd.f32 %v673, 0.0
      %v738 = vadd.f32 %v674, 0.0
      %v739 = vadd.f32 %v675, 0.0
      %v740 = vadd.f32 %v676, 0.0
      %v741 = vadd.f32 %v677, 0.0
      %v742 = vadd.f32 %v678, 0.0
      %v743 = vadd.f32 %v679, 0.0
      %v744 = vadd.f32 %v680, 0.0
      %v745 = vadd.f32 %v681, 0.0
      %746 = vset.pattern.permute.xlu0 1
      %747 = vperm.xlu0 %746, %v229
      %v748 = vpop.permute.xlu0 %747
      %750 = vset.pattern.permute.xlu0 1
      %751 = vperm.xlu0 %750, %v230
      %v752 = vpop.permute.xlu0 %751
      %754 = vset.pattern.permute.xlu0 1
      %755 = vperm.xlu0 %754, %v231
      %v756 = vpop.permute.xlu0 %755
      %758 = vset.pattern.permute.xlu0 1
      %759 = vperm.xlu0 %758, %v232
      %v760 = vpop.permute.xlu0 %759
      %762 = vset.pattern.permute.xlu0 1
      %763 = vperm.xlu0 %762, %v233
      %v764 = vpop.permute.xlu0 %763
      %766 = vset.pattern.permute.xlu0 1
      %767 = vperm.xlu0 %766, %v234
      %v768 = vpop.permute.xlu0 %767
      %770 = vset.pattern.permute.xlu0 1
      %771 = vperm.xlu0 %770, %v235
      %v772 = vpop.permute.xlu0 %771
      %774 = vset.pattern.permute.xlu0 1
      %775 = vperm.xlu0 %774, %v236
      %v776 = vpop.permute.xlu0 %775
      %778 = vset.pattern.permute.xlu0 1
      %779 = vperm.xlu0 %778, %v237
      %v780 = vpop.permute.xlu0 %779
      %782 = vset.pattern.permute.xlu0 1
      %783 = vperm.xlu0 %782, %v238
      %v784 = vpop.permute.xlu0 %783
      %786 = vset.pattern.permute.xlu0 1
      %787 = vperm.xlu0 %786, %v239
      %v788 = vpop.permute.xlu0 %787
      %790 = vset.pattern.permute.xlu0 1
      %791 = vperm.xlu0 %790, %v240
      %v792 = vpop.permute.xlu0 %791
      %794 = vset.pattern.permute.xlu0 1
      %795 = vperm.xlu0 %794, %v241
      %v796 = vpop.permute.xlu0 %795
      %798 = vset.pattern.permute.xlu0 1
      %799 = vperm.xlu0 %798, %v242
      %v800 = vpop.permute.xlu0 %799
      %802 = vset.pattern.permute.xlu0 1
      %803 = vperm.xlu0 %802, %v243
      %v804 = vpop.permute.xlu0 %803
      %806 = vset.pattern.permute.xlu0 1
      %807 = vperm.xlu0 %806, %v244
      %v808 = vpop.permute.xlu0 %807
      %810 = vset.pattern.permute.xlu0 1
      %811 = vperm.xlu0 %810, %v245
      %v812 = vpop.permute.xlu0 %811
      %814 = vset.pattern.permute.xlu0 1
      %815 = vperm.xlu0 %814, %v246
      %v816 = vpop.permute.xlu0 %815
      %818 = vset.pattern.permute.xlu0 1
      %819 = vperm.xlu0 %818, %v247
      %v820 = vpop.permute.xlu0 %819
      %822 = vset.pattern.permute.xlu0 1
      %823 = vperm.xlu0 %822, %v248
      %v824 = vpop.permute.xlu0 %823
      %826 = vset.pattern.permute.xlu0 1
      %827 = vperm.xlu0 %826, %v249
      %v828 = vpop.permute.xlu0 %827
      %830 = vset.pattern.permute.xlu0 1
      %831 = vperm.xlu0 %830, %v250
      %v832 = vpop.permute.xlu0 %831
      %834 = vset.pattern.permute.xlu0 1
      %835 = vperm.xlu0 %834, %v251
      %v836 = vpop.permute.xlu0 %835
      %838 = vset.pattern.permute.xlu0 1
      %839 = vperm.xlu0 %838, %v252
      %v840 = vpop.permute.xlu0 %839
      %842 = vset.pattern.permute.xlu0 1
      %843 = vperm.xlu0 %842, %v253
      %v844 = vpop.permute.xlu0 %843
      %846 = vset.pattern.permute.xlu0 1
      %847 = vperm.xlu0 %846, %v254
      %v848 = vpop.permute.xlu0 %847
      %850 = vset.pattern.permute.xlu0 1
      %851 = vperm.xlu0 %850, %v255
      %v852 = vpop.permute.xlu0 %851
      %854 = vset.pattern.permute.xlu0 1
      %855 = vperm.xlu0 %854, %v256
      %v856 = vpop.permute.xlu0 %855
      %858 = vset.pattern.permute.xlu0 1
      %859 = vperm.xlu0 %858, %v257
      %v860 = vpop.permute.xlu0 %859
      %862 = vset.pattern.permute.xlu0 1
      %863 = vperm.xlu0 %862, %v258
      %v864 = vpop.permute.xlu0 %863
      %866 = vset.pattern.permute.xlu0 1
      %867 = vperm.xlu0 %866, %v259
      %v868 = vpop.permute.xlu0 %867
      %870 = vset.pattern.permute.xlu0 1
      %871 = vperm.xlu0 %870, %v260
      %v872 = vpop.permute.xlu0 %871
      %874 = vset.pattern.permute.xlu0 1
      %875 = vperm.xlu0 %874, %v261
      %v876 = vpop.permute.xlu0 %875
      %878 = vset.pattern.permute.xlu0 1
      %879 = vperm.xlu0 %878, %v262
      %v880 = vpop.permute.xlu0 %879
      %882 = vset.pattern.permute.xlu0 1
      %883 = vperm.xlu0 %882, %v263
      %v884 = vpop.permute.xlu0 %883
      %886 = vset.pattern.permute.xlu0 1
      %887 = vperm.xlu0 %886, %v264
      %v888 = vpop.permute.xlu0 %887
      %890 = vset.pattern.permute.xlu0 1
      %891 = vperm.xlu0 %890, %v265
      %v892 = vpop.permute.xlu0 %891
      %894 = vset.pattern.permute.xlu0 1
      %895 = vperm.xlu0 %894, %v266
      %v896 = vpop.permute.xlu0 %895
      %898 = vset.pattern.permute.xlu0 1
      %899 = vperm.xlu0 %898, %v267
      %v900 = vpop.permute.xlu0 %899
      %902 = vset.pattern.permute.xlu0 1
      %903 = vperm.xlu0 %902, %v268
      %v904 = vpop.permute.xlu0 %903
      %906 = vset.pattern.permute.xlu0 1
      %907 = vperm.xlu0 %906, %v269
      %v908 = vpop.permute.xlu0 %907
      %910 = vset.pattern.permute.xlu0 1
      %911 = vperm.xlu0 %910, %v270
      %v912 = vpop.permute.xlu0 %911
      %914 = vset.pattern.permute.xlu0 1
      %915 = vperm.xlu0 %914, %v271
      %v916 = vpop.permute.xlu0 %915
      %918 = vset.pattern.permute.xlu0 1
      %919 = vperm.xlu0 %918, %v272
      %v920 = vpop.permute.xlu0 %919
      %922 = vset.pattern.permute.xlu0 1
      %923 = vperm.xlu0 %922, %v273
      %v924 = vpop.permute.xlu0 %923
      %926 = vset.pattern.permute.xlu0 1
      %927 = vperm.xlu0 %926, %v274
      %v928 = vpop.permute.xlu0 %927
      %930 = vset.pattern.permute.xlu0 1
      %931 = vperm.xlu0 %930, %v275
      %v932 = vpop.permute.xlu0 %931
      %934 = vset.pattern.permute.xlu0 1
      %935 = vperm.xlu0 %934, %v276
      %v936 = vpop.permute.xlu0 %935
      %938 = vset.pattern.permute.xlu0 1
      %939 = vperm.xlu0 %938, %v277
      %v940 = vpop.permute.xlu0 %939
      %942 = vset.pattern.permute.xlu0 1
      %943 = vperm.xlu0 %942, %v278
      %v944 = vpop.permute.xlu0 %943
      %946 = vset.pattern.permute.xlu0 1
      %947 = vperm.xlu0 %946, %v279
      %v948 = vpop.permute.xlu0 %947
      %950 = vset.pattern.permute.xlu0 1
      %951 = vperm.xlu0 %950, %v280
      %v952 = vpop.permute.xlu0 %951
      %954 = vset.pattern.permute.xlu0 1
      %955 = vperm.xlu0 %954, %v281
      %v956 = vpop.permute.xlu0 %955
      %958 = vset.pattern.permute.xlu0 1
      %959 = vperm.xlu0 %958, %v282
      %v960 = vpop.permute.xlu0 %959
      %962 = vset.pattern.permute.xlu0 1
      %963 = vperm.xlu0 %962, %v283
      %v964 = vpop.permute.xlu0 %963
      %966 = vset.pattern.permute.xlu0 1
      %967 = vperm.xlu0 %966, %v284
      %v968 = vpop.permute.xlu0 %967
      %970 = vset.pattern.permute.xlu0 1
      %971 = vperm.xlu0 %970, %v285
      %v972 = vpop.permute.xlu0 %971
      %974 = vset.pattern.permute.xlu0 1
      %975 = vperm.xlu0 %974, %v286
      %v976 = vpop.permute.xlu0 %975
      %978 = vset.pattern.permute.xlu0 1
      %979 = vperm.xlu0 %978, %v287
      %v980 = vpop.permute.xlu0 %979
      %982 = vset.pattern.permute.xlu0 1
      %983 = vperm.xlu0 %982, %v288
      %v984 = vpop.permute.xlu0 %983
      %986 = vset.pattern.permute.xlu0 1
      %987 = vperm.xlu0 %986, %v289
      %v988 = vpop.permute.xlu0 %987
      %990 = vset.pattern.permute.xlu0 1
      %991 = vperm.xlu0 %990, %v290
      %v992 = vpop.permute.xlu0 %991
      %994 = vset.pattern.permute.xlu0 1
      %995 = vperm.xlu0 %994, %v291
      %v996 = vpop.permute.xlu0 %995
      %998 = vset.pattern.permute.xlu0 1
      %999 = vperm.xlu0 %998, %v292
      %v1000 = vpop.permute.xlu0 %999
      %v1002 = vlaneseq
      %v1003 = vshrl.u32 %v1002, 7
      %v1004 = vsub.s32 1, %v1003
      %v1005 = vrot.slane %v293, %v1004
      %v1006 = vmul.f32 %v748, %v1005
      %v1007 = vmul.f32 %v752, %v1005
      %v1008 = vmul.f32 %v756, %v1005
      %v1009 = vmul.f32 %v760, %v1005
      %v1010 = vmul.f32 %v764, %v1005
      %v1011 = vmul.f32 %v768, %v1005
      %v1012 = vmul.f32 %v772, %v1005
      %v1013 = vmul.f32 %v776, %v1005
      %v1014 = vmul.f32 %v780, %v1005
      %v1015 = vmul.f32 %v784, %v1005
      %v1016 = vmul.f32 %v788, %v1005
      %v1017 = vmul.f32 %v792, %v1005
      %v1018 = vmul.f32 %v796, %v1005
      %v1019 = vmul.f32 %v800, %v1005
      %v1020 = vmul.f32 %v804, %v1005
      %v1021 = vmul.f32 %v808, %v1005
      %v1022 = vmul.f32 %v812, %v1005
      %v1023 = vmul.f32 %v816, %v1005
      %v1024 = vmul.f32 %v820, %v1005
      %v1025 = vmul.f32 %v824, %v1005
      %v1026 = vmul.f32 %v828, %v1005
      %v1027 = vmul.f32 %v832, %v1005
      %v1028 = vmul.f32 %v836, %v1005
      %v1029 = vmul.f32 %v840, %v1005
      %v1030 = vmul.f32 %v844, %v1005
      %v1031 = vmul.f32 %v848, %v1005
      %v1032 = vmul.f32 %v852, %v1005
      %v1033 = vmul.f32 %v856, %v1005
      %v1034 = vmul.f32 %v860, %v1005
      %v1035 = vmul.f32 %v864, %v1005
      %v1036 = vmul.f32 %v868, %v1005
      %v1037 = vmul.f32 %v872, %v1005
      %v1038 = vmul.f32 %v876, %v1005
      %v1039 = vmul.f32 %v880, %v1005
      %v1040 = vmul.f32 %v884, %v1005
      %v1041 = vmul.f32 %v888, %v1005
      %v1042 = vmul.f32 %v892, %v1005
      %v1043 = vmul.f32 %v896, %v1005
      %v1044 = vmul.f32 %v900, %v1005
      %v1045 = vmul.f32 %v904, %v1005
      %v1046 = vmul.f32 %v908, %v1005
      %v1047 = vmul.f32 %v912, %v1005
      %v1048 = vmul.f32 %v916, %v1005
      %v1049 = vmul.f32 %v920, %v1005
      %v1050 = vmul.f32 %v924, %v1005
      %v1051 = vmul.f32 %v928, %v1005
      %v1052 = vmul.f32 %v932, %v1005
      %v1053 = vmul.f32 %v936, %v1005
      %v1054 = vmul.f32 %v940, %v1005
      %v1055 = vmul.f32 %v944, %v1005
      %v1056 = vmul.f32 %v948, %v1005
      %v1057 = vmul.f32 %v952, %v1005
      %v1058 = vmul.f32 %v956, %v1005
      %v1059 = vmul.f32 %v960, %v1005
      %v1060 = vmul.f32 %v964, %v1005
      %v1061 = vmul.f32 %v968, %v1005
      %v1062 = vmul.f32 %v972, %v1005
      %v1063 = vmul.f32 %v976, %v1005
      %v1064 = vmul.f32 %v980, %v1005
      %v1065 = vmul.f32 %v984, %v1005
      %v1066 = vmul.f32 %v988, %v1005
      %v1067 = vmul.f32 %v992, %v1005
      %v1068 = vmul.f32 %v996, %v1005
      %v1069 = vmul.f32 %v1000, %v1005
      %v1070 = vadd.f32 %v682, %v1006
      %v1071 = vadd.f32 %v683, %v1007
      %v1072 = vadd.f32 %v684, %v1008
      %v1073 = vadd.f32 %v685, %v1009
      %v1074 = vadd.f32 %v686, %v1010
      %v1075 = vadd.f32 %v687, %v1011
      %v1076 = vadd.f32 %v688, %v1012
      %v1077 = vadd.f32 %v689, %v1013
      %v1078 = vadd.f32 %v690, %v1014
      %v1079 = vadd.f32 %v691, %v1015
      %v1080 = vadd.f32 %v692, %v1016
      %v1081 = vadd.f32 %v693, %v1017
      %v1082 = vadd.f32 %v694, %v1018
      %v1083 = vadd.f32 %v695, %v1019
      %v1084 = vadd.f32 %v696, %v1020
      %v1085 = vadd.f32 %v697, %v1021
      %v1086 = vadd.f32 %v698, %v1022
      %v1087 = vadd.f32 %v699, %v1023
      %v1088 = vadd.f32 %v700, %v1024
      %v1089 = vadd.f32 %v701, %v1025
      %v1090 = vadd.f32 %v702, %v1026
      %v1091 = vadd.f32 %v703, %v1027
      %v1092 = vadd.f32 %v704, %v1028
      %v1093 = vadd.f32 %v705, %v1029
      %v1094 = vadd.f32 %v706, %v1030
      %v1095 = vadd.f32 %v707, %v1031
      %v1096 = vadd.f32 %v708, %v1032
      %v1097 = vadd.f32 %v709, %v1033
      %v1098 = vadd.f32 %v710, %v1034
      %v1099 = vadd.f32 %v711, %v1035
      %v1100 = vadd.f32 %v712, %v1036
      %v1101 = vadd.f32 %v713, %v1037
      %v1102 = vadd.f32 %v714, %v1038
      %v1103 = vadd.f32 %v715, %v1039
      %v1104 = vadd.f32 %v716, %v1040
      %v1105 = vadd.f32 %v717, %v1041
      %v1106 = vadd.f32 %v718, %v1042
      %v1107 = vadd.f32 %v719, %v1043
      %v1108 = vadd.f32 %v720, %v1044
      %v1109 = vadd.f32 %v721, %v1045
      %v1110 = vadd.f32 %v722, %v1046
      %v1111 = vadd.f32 %v723, %v1047
      %v1112 = vadd.f32 %v724, %v1048
      %v1113 = vadd.f32 %v725, %v1049
      %v1114 = vadd.f32 %v726, %v1050
      %v1115 = vadd.f32 %v727, %v1051
      %v1116 = vadd.f32 %v728, %v1052
      %v1117 = vadd.f32 %v729, %v1053
      %v1118 = vadd.f32 %v730, %v1054
      %v1119 = vadd.f32 %v731, %v1055
      %v1120 = vadd.f32 %v732, %v1056
      %v1121 = vadd.f32 %v733, %v1057
      %v1122 = vadd.f32 %v734, %v1058
      %v1123 = vadd.f32 %v735, %v1059
      %v1124 = vadd.f32 %v736, %v1060
      %v1125 = vadd.f32 %v737, %v1061
      %v1126 = vadd.f32 %v738, %v1062
      %v1127 = vadd.f32 %v739, %v1063
      %v1128 = vadd.f32 %v740, %v1064
      %v1129 = vadd.f32 %v741, %v1065
      %v1130 = vadd.f32 %v742, %v1066
      %v1131 = vadd.f32 %v743, %v1067
      %v1132 = vadd.f32 %v744, %v1068
      %v1133 = vadd.f32 %v745, %v1069
      %1134 = vset.pattern.permute.xlu0 2
      %1135 = vperm.xlu0 %1134, %v229
      %v1136 = vpop.permute.xlu0 %1135
      %1138 = vset.pattern.permute.xlu0 2
      %1139 = vperm.xlu0 %1138, %v230
      %v1140 = vpop.permute.xlu0 %1139
      %1142 = vset.pattern.permute.xlu0 2
      %1143 = vperm.xlu0 %1142, %v231
      %v1144 = vpop.permute.xlu0 %1143
      %1146 = vset.pattern.permute.xlu0 2
      %1147 = vperm.xlu0 %1146, %v232
      %v1148 = vpop.permute.xlu0 %1147
      %1150 = vset.pattern.permute.xlu0 2
      %1151 = vperm.xlu0 %1150, %v233
      %v1152 = vpop.permute.xlu0 %1151
      %1154 = vset.pattern.permute.xlu0 2
      %1155 = vperm.xlu0 %1154, %v234
      %v1156 = vpop.permute.xlu0 %1155
      %1158 = vset.pattern.permute.xlu0 2
      %1159 = vperm.xlu0 %1158, %v235
      %v1160 = vpop.permute.xlu0 %1159
      %1162 = vset.pattern.permute.xlu0 2
      %1163 = vperm.xlu0 %1162, %v236
      %v1164 = vpop.permute.xlu0 %1163
      %1166 = vset.pattern.permute.xlu0 2
      %1167 = vperm.xlu0 %1166, %v237
      %v1168 = vpop.permute.xlu0 %1167
      %1170 = vset.pattern.permute.xlu0 2
      %1171 = vperm.xlu0 %1170, %v238
      %v1172 = vpop.permute.xlu0 %1171
      %1174 = vset.pattern.permute.xlu0 2
      %1175 = vperm.xlu0 %1174, %v239
      %v1176 = vpop.permute.xlu0 %1175
      %1178 = vset.pattern.permute.xlu0 2
      %1179 = vperm.xlu0 %1178, %v240
      %v1180 = vpop.permute.xlu0 %1179
      %1182 = vset.pattern.permute.xlu0 2
      %1183 = vperm.xlu0 %1182, %v241
      %v1184 = vpop.permute.xlu0 %1183
      %1186 = vset.pattern.permute.xlu0 2
      %1187 = vperm.xlu0 %1186, %v242
      %v1188 = vpop.permute.xlu0 %1187
      %1190 = vset.pattern.permute.xlu0 2
      %1191 = vperm.xlu0 %1190, %v243
      %v1192 = vpop.permute.xlu0 %1191
      %1194 = vset.pattern.permute.xlu0 2
      %1195 = vperm.xlu0 %1194, %v244
      %v1196 = vpop.permute.xlu0 %1195
      %1198 = vset.pattern.permute.xlu0 2
      %1199 = vperm.xlu0 %1198, %v245
      %v1200 = vpop.permute.xlu0 %1199
      %1202 = vset.pattern.permute.xlu0 2
      %1203 = vperm.xlu0 %1202, %v246
      %v1204 = vpop.permute.xlu0 %1203
      %1206 = vset.pattern.permute.xlu0 2
      %1207 = vperm.xlu0 %1206, %v247
      %v1208 = vpop.permute.xlu0 %1207
      %1210 = vset.pattern.permute.xlu0 2
      %1211 = vperm.xlu0 %1210, %v248
      %v1212 = vpop.permute.xlu0 %1211
      %1214 = vset.pattern.permute.xlu0 2
      %1215 = vperm.xlu0 %1214, %v249
      %v1216 = vpop.permute.xlu0 %1215
      %1218 = vset.pattern.permute.xlu0 2
      %1219 = vperm.xlu0 %1218, %v250
      %v1220 = vpop.permute.xlu0 %1219
      %1222 = vset.pattern.permute.xlu0 2
      %1223 = vperm.xlu0 %1222, %v251
      %v1224 = vpop.permute.xlu0 %1223
      %1226 = vset.pattern.permute.xlu0 2
      %1227 = vperm.xlu0 %1226, %v252
      %v1228 = vpop.permute.xlu0 %1227
      %1230 = vset.pattern.permute.xlu0 2
      %1231 = vperm.xlu0 %1230, %v253
      %v1232 = vpop.permute.xlu0 %1231
      %1234 = vset.pattern.permute.xlu0 2
      %1235 = vperm.xlu0 %1234, %v254
      %v1236 = vpop.permute.xlu0 %1235
      %1238 = vset.pattern.permute.xlu0 2
      %1239 = vperm.xlu0 %1238, %v255
      %v1240 = vpop.permute.xlu0 %1239
      %1242 = vset.pattern.permute.xlu0 2
      %1243 = vperm.xlu0 %1242, %v256
      %v1244 = vpop.permute.xlu0 %1243
      %1246 = vset.pattern.permute.xlu0 2
      %1247 = vperm.xlu0 %1246, %v257
      %v1248 = vpop.permute.xlu0 %1247
      %1250 = vset.pattern.permute.xlu0 2
      %1251 = vperm.xlu0 %1250, %v258
      %v1252 = vpop.permute.xlu0 %1251
      %1254 = vset.pattern.permute.xlu0 2
      %1255 = vperm.xlu0 %1254, %v259
      %v1256 = vpop.permute.xlu0 %1255
      %1258 = vset.pattern.permute.xlu0 2
      %1259 = vperm.xlu0 %1258, %v260
      %v1260 = vpop.permute.xlu0 %1259
      %1262 = vset.pattern.permute.xlu0 2
      %1263 = vperm.xlu0 %1262, %v261
      %v1264 = vpop.permute.xlu0 %1263
      %1266 = vset.pattern.permute.xlu0 2
      %1267 = vperm.xlu0 %1266, %v262
      %v1268 = vpop.permute.xlu0 %1267
      %1270 = vset.pattern.permute.xlu0 2
      %1271 = vperm.xlu0 %1270, %v263
      %v1272 = vpop.permute.xlu0 %1271
      %1274 = vset.pattern.permute.xlu0 2
      %1275 = vperm.xlu0 %1274, %v264
      %v1276 = vpop.permute.xlu0 %1275
      %1278 = vset.pattern.permute.xlu0 2
      %1279 = vperm.xlu0 %1278, %v265
      %v1280 = vpop.permute.xlu0 %1279
      %1282 = vset.pattern.permute.xlu0 2
      %1283 = vperm.xlu0 %1282, %v266
      %v1284 = vpop.permute.xlu0 %1283
      %1286 = vset.pattern.permute.xlu0 2
      %1287 = vperm.xlu0 %1286, %v267
      %v1288 = vpop.permute.xlu0 %1287
      %1290 = vset.pattern.permute.xlu0 2
      %1291 = vperm.xlu0 %1290, %v268
      %v1292 = vpop.permute.xlu0 %1291
      %1294 = vset.pattern.permute.xlu0 2
      %1295 = vperm.xlu0 %1294, %v269
      %v1296 = vpop.permute.xlu0 %1295
      %1298 = vset.pattern.permute.xlu0 2
      %1299 = vperm.xlu0 %1298, %v270
      %v1300 = vpop.permute.xlu0 %1299
      %1302 = vset.pattern.permute.xlu0 2
      %1303 = vperm.xlu0 %1302, %v271
      %v1304 = vpop.permute.xlu0 %1303
      %1306 = vset.pattern.permute.xlu0 2
      %1307 = vperm.xlu0 %1306, %v272
      %v1308 = vpop.permute.xlu0 %1307
      %1310 = vset.pattern.permute.xlu0 2
      %1311 = vperm.xlu0 %1310, %v273
      %v1312 = vpop.permute.xlu0 %1311
      %1314 = vset.pattern.permute.xlu0 2
      %1315 = vperm.xlu0 %1314, %v274
      %v1316 = vpop.permute.xlu0 %1315
      %1318 = vset.pattern.permute.xlu0 2
      %1319 = vperm.xlu0 %1318, %v275
      %v1320 = vpop.permute.xlu0 %1319
      %1322 = vset.pattern.permute.xlu0 2
      %1323 = vperm.xlu0 %1322, %v276
      %v1324 = vpop.permute.xlu0 %1323
      %1326 = vset.pattern.permute.xlu0 2
      %1327 = vperm.xlu0 %1326, %v277
      %v1328 = vpop.permute.xlu0 %1327
      %1330 = vset.pattern.permute.xlu0 2
      %1331 = vperm.xlu0 %1330, %v278
      %v1332 = vpop.permute.xlu0 %1331
      %1334 = vset.pattern.permute.xlu0 2
      %1335 = vperm.xlu0 %1334, %v279
      %v1336 = vpop.permute.xlu0 %1335
      %1338 = vset.pattern.permute.xlu0 2
      %1339 = vperm.xlu0 %1338, %v280
      %v1340 = vpop.permute.xlu0 %1339
      %1342 = vset.pattern.permute.xlu0 2
      %1343 = vperm.xlu0 %1342, %v281
      %v1344 = vpop.permute.xlu0 %1343
      %1346 = vset.pattern.permute.xlu0 2
      %1347 = vperm.xlu0 %1346, %v282
      %v1348 = vpop.permute.xlu0 %1347
      %1350 = vset.pattern.permute.xlu0 2
      %1351 = vperm.xlu0 %1350, %v283
      %v1352 = vpop.permute.xlu0 %1351
      %1354 = vset.pattern.permute.xlu0 2
      %1355 = vperm.xlu0 %1354, %v284
      %v1356 = vpop.permute.xlu0 %1355
      %1358 = vset.pattern.permute.xlu0 2
      %1359 = vperm.xlu0 %1358, %v285
      %v1360 = vpop.permute.xlu0 %1359
      %1362 = vset.pattern.permute.xlu0 2
      %1363 = vperm.xlu0 %1362, %v286
      %v1364 = vpop.permute.xlu0 %1363
      %1366 = vset.pattern.permute.xlu0 2
      %1367 = vperm.xlu0 %1366, %v287
      %v1368 = vpop.permute.xlu0 %1367
      %1370 = vset.pattern.permute.xlu0 2
      %1371 = vperm.xlu0 %1370, %v288
      %v1372 = vpop.permute.xlu0 %1371
      %1374 = vset.pattern.permute.xlu0 2
      %1375 = vperm.xlu0 %1374, %v289
      %v1376 = vpop.permute.xlu0 %1375
      %1378 = vset.pattern.permute.xlu0 2
      %1379 = vperm.xlu0 %1378, %v290
      %v1380 = vpop.permute.xlu0 %1379
      %1382 = vset.pattern.permute.xlu0 2
      %1383 = vperm.xlu0 %1382, %v291
      %v1384 = vpop.permute.xlu0 %1383
      %1386 = vset.pattern.permute.xlu0 2
      %1387 = vperm.xlu0 %1386, %v292
      %v1388 = vpop.permute.xlu0 %1387
      %v1390 = vlaneseq
      %v1391 = vshrl.u32 %v1390, 7
      %v1392 = vsub.s32 2, %v1391
      %v1393 = vrot.slane %v293, %v1392
      %v1394 = vmul.f32 %v1136, %v1393
      %v1395 = vmul.f32 %v1140, %v1393
      %v1396 = vmul.f32 %v1144, %v1393
      %v1397 = vmul.f32 %v1148, %v1393
      %v1398 = vmul.f32 %v1152, %v1393
      %v1399 = vmul.f32 %v1156, %v1393
      %v1400 = vmul.f32 %v1160, %v1393
      %v1401 = vmul.f32 %v1164, %v1393
      %v1402 = vmul.f32 %v1168, %v1393
      %v1403 = vmul.f32 %v1172, %v1393
      %v1404 = vmul.f32 %v1176, %v1393
      %v1405 = vmul.f32 %v1180, %v1393
      %v1406 = vmul.f32 %v1184, %v1393
      %v1407 = vmul.f32 %v1188, %v1393
      %v1408 = vmul.f32 %v1192, %v1393
      %v1409 = vmul.f32 %v1196, %v1393
      %v1410 = vmul.f32 %v1200, %v1393
      %v1411 = vmul.f32 %v1204, %v1393
      %v1412 = vmul.f32 %v1208, %v1393
      %v1413 = vmul.f32 %v1212, %v1393
      %v1414 = vmul.f32 %v1216, %v1393
      %v1415 = vmul.f32 %v1220, %v1393
      %v1416 = vmul.f32 %v1224, %v1393
      %v1417 = vmul.f32 %v1228, %v1393
      %v1418 = vmul.f32 %v1232, %v1393
      %v1419 = vmul.f32 %v1236, %v1393
      %v1420 = vmul.f32 %v1240, %v1393
      %v1421 = vmul.f32 %v1244, %v1393
      %v1422 = vmul.f32 %v1248, %v1393
      %v1423 = vmul.f32 %v1252, %v1393
      %v1424 = vmul.f32 %v1256, %v1393
      %v1425 = vmul.f32 %v1260, %v1393
      %v1426 = vmul.f32 %v1264, %v1393
      %v1427 = vmul.f32 %v1268, %v1393
      %v1428 = vmul.f32 %v1272, %v1393
      %v1429 = vmul.f32 %v1276, %v1393
      %v1430 = vmul.f32 %v1280, %v1393
      %v1431 = vmul.f32 %v1284, %v1393
      %v1432 = vmul.f32 %v1288, %v1393
      %v1433 = vmul.f32 %v1292, %v1393
      %v1434 = vmul.f32 %v1296, %v1393
      %v1435 = vmul.f32 %v1300, %v1393
      %v1436 = vmul.f32 %v1304, %v1393
      %v1437 = vmul.f32 %v1308, %v1393
      %v1438 = vmul.f32 %v1312, %v1393
      %v1439 = vmul.f32 %v1316, %v1393
      %v1440 = vmul.f32 %v1320, %v1393
      %v1441 = vmul.f32 %v1324, %v1393
      %v1442 = vmul.f32 %v1328, %v1393
      %v1443 = vmul.f32 %v1332, %v1393
      %v1444 = vmul.f32 %v1336, %v1393
      %v1445 = vmul.f32 %v1340, %v1393
      %v1446 = vmul.f32 %v1344, %v1393
      %v1447 = vmul.f32 %v1348, %v1393
      %v1448 = vmul.f32 %v1352, %v1393
      %v1449 = vmul.f32 %v1356, %v1393
      %v1450 = vmul.f32 %v1360, %v1393
      %v1451 = vmul.f32 %v1364, %v1393
      %v1452 = vmul.f32 %v1368, %v1393
      %v1453 = vmul.f32 %v1372, %v1393
      %v1454 = vmul.f32 %v1376, %v1393
      %v1455 = vmul.f32 %v1380, %v1393
      %v1456 = vmul.f32 %v1384, %v1393
      %v1457 = vmul.f32 %v1388, %v1393
      %v1458 = vadd.f32 %v1070, %v1394
      %v1459 = vadd.f32 %v1071, %v1395
      %v1460 = vadd.f32 %v1072, %v1396
      %v1461 = vadd.f32 %v1073, %v1397
      %v1462 = vadd.f32 %v1074, %v1398
      %v1463 = vadd.f32 %v1075, %v1399
      %v1464 = vadd.f32 %v1076, %v1400
      %v1465 = vadd.f32 %v1077, %v1401
      %v1466 = vadd.f32 %v1078, %v1402
      %v1467 = vadd.f32 %v1079, %v1403
      %v1468 = vadd.f32 %v1080, %v1404
      %v1469 = vadd.f32 %v1081, %v1405
      %v1470 = vadd.f32 %v1082, %v1406
      %v1471 = vadd.f32 %v1083, %v1407
      %v1472 = vadd.f32 %v1084, %v1408
      %v1473 = vadd.f32 %v1085, %v1409
      %v1474 = vadd.f32 %v1086, %v1410
      %v1475 = vadd.f32 %v1087, %v1411
      %v1476 = vadd.f32 %v1088, %v1412
      %v1477 = vadd.f32 %v1089, %v1413
      %v1478 = vadd.f32 %v1090, %v1414
      %v1479 = vadd.f32 %v1091, %v1415
      %v1480 = vadd.f32 %v1092, %v1416
      %v1481 = vadd.f32 %v1093, %v1417
      %v1482 = vadd.f32 %v1094, %v1418
      %v1483 = vadd.f32 %v1095, %v1419
      %v1484 = vadd.f32 %v1096, %v1420
      %v1485 = vadd.f32 %v1097, %v1421
      %v1486 = vadd.f32 %v1098, %v1422
      %v1487 = vadd.f32 %v1099, %v1423
      %v1488 = vadd.f32 %v1100, %v1424
      %v1489 = vadd.f32 %v1101, %v1425
      %v1490 = vadd.f32 %v1102, %v1426
      %v1491 = vadd.f32 %v1103, %v1427
      %v1492 = vadd.f32 %v1104, %v1428
      %v1493 = vadd.f32 %v1105, %v1429
      %v1494 = vadd.f32 %v1106, %v1430
      %v1495 = vadd.f32 %v1107, %v1431
      %v1496 = vadd.f32 %v1108, %v1432
      %v1497 = vadd.f32 %v1109, %v1433
      %v1498 = vadd.f32 %v1110, %v1434
      %v1499 = vadd.f32 %v1111, %v1435
      %v1500 = vadd.f32 %v1112, %v1436
      %v1501 = vadd.f32 %v1113, %v1437
      %v1502 = vadd.f32 %v1114, %v1438
      %v1503 = vadd.f32 %v1115, %v1439
      %v1504 = vadd.f32 %v1116, %v1440
      %v1505 = vadd.f32 %v1117, %v1441
      %v1506 = vadd.f32 %v1118, %v1442
      %v1507 = vadd.f32 %v1119, %v1443
      %v1508 = vadd.f32 %v1120, %v1444
      %v1509 = vadd.f32 %v1121, %v1445
      %v1510 = vadd.f32 %v1122, %v1446
      %v1511 = vadd.f32 %v1123, %v1447
      %v1512 = vadd.f32 %v1124, %v1448
      %v1513 = vadd.f32 %v1125, %v1449
      %v1514 = vadd.f32 %v1126, %v1450
      %v1515 = vadd.f32 %v1127, %v1451
      %v1516 = vadd.f32 %v1128, %v1452
      %v1517 = vadd.f32 %v1129, %v1453
      %v1518 = vadd.f32 %v1130, %v1454
      %v1519 = vadd.f32 %v1131, %v1455
      %v1520 = vadd.f32 %v1132, %v1456
      %v1521 = vadd.f32 %v1133, %v1457
      %1522 = vset.pattern.permute.xlu0 3
      %1523 = vperm.xlu0 %1522, %v229
      %v1524 = vpop.permute.xlu0 %1523
      %1526 = vset.pattern.permute.xlu0 3
      %1527 = vperm.xlu0 %1526, %v230
      %v1528 = vpop.permute.xlu0 %1527
      %1530 = vset.pattern.permute.xlu0 3
      %1531 = vperm.xlu0 %1530, %v231
      %v1532 = vpop.permute.xlu0 %1531
      %1534 = vset.pattern.permute.xlu0 3
      %1535 = vperm.xlu0 %1534, %v232
      %v1536 = vpop.permute.xlu0 %1535
      %1538 = vset.pattern.permute.xlu0 3
      %1539 = vperm.xlu0 %1538, %v233
      %v1540 = vpop.permute.xlu0 %1539
      %1542 = vset.pattern.permute.xlu0 3
      %1543 = vperm.xlu0 %1542, %v234
      %v1544 = vpop.permute.xlu0 %1543
      %1546 = vset.pattern.permute.xlu0 3
      %1547 = vperm.xlu0 %1546, %v235
      %v1548 = vpop.permute.xlu0 %1547
      %1550 = vset.pattern.permute.xlu0 3
      %1551 = vperm.xlu0 %1550, %v236
      %v1552 = vpop.permute.xlu0 %1551
      %1554 = vset.pattern.permute.xlu0 3
      %1555 = vperm.xlu0 %1554, %v237
      %v1556 = vpop.permute.xlu0 %1555
      %1558 = vset.pattern.permute.xlu0 3
      %1559 = vperm.xlu0 %1558, %v238
      %v1560 = vpop.permute.xlu0 %1559
      %1562 = vset.pattern.permute.xlu0 3
      %1563 = vperm.xlu0 %1562, %v239
      %v1564 = vpop.permute.xlu0 %1563
      %1566 = vset.pattern.permute.xlu0 3
      %1567 = vperm.xlu0 %1566, %v240
      %v1568 = vpop.permute.xlu0 %1567
      %1570 = vset.pattern.permute.xlu0 3
      %1571 = vperm.xlu0 %1570, %v241
      %v1572 = vpop.permute.xlu0 %1571
      %1574 = vset.pattern.permute.xlu0 3
      %1575 = vperm.xlu0 %1574, %v242
      %v1576 = vpop.permute.xlu0 %1575
      %1578 = vset.pattern.permute.xlu0 3
      %1579 = vperm.xlu0 %1578, %v243
      %v1580 = vpop.permute.xlu0 %1579
      %1582 = vset.pattern.permute.xlu0 3
      %1583 = vperm.xlu0 %1582, %v244
      %v1584 = vpop.permute.xlu0 %1583
      %1586 = vset.pattern.permute.xlu0 3
      %1587 = vperm.xlu0 %1586, %v245
      %v1588 = vpop.permute.xlu0 %1587
      %1590 = vset.pattern.permute.xlu0 3
      %1591 = vperm.xlu0 %1590, %v246
      %v1592 = vpop.permute.xlu0 %1591
      %1594 = vset.pattern.permute.xlu0 3
      %1595 = vperm.xlu0 %1594, %v247
      %v1596 = vpop.permute.xlu0 %1595
      %1598 = vset.pattern.permute.xlu0 3
      %1599 = vperm.xlu0 %1598, %v248
      %v1600 = vpop.permute.xlu0 %1599
      %1602 = vset.pattern.permute.xlu0 3
      %1603 = vperm.xlu0 %1602, %v249
      %v1604 = vpop.permute.xlu0 %1603
      %1606 = vset.pattern.permute.xlu0 3
      %1607 = vperm.xlu0 %1606, %v250
      %v1608 = vpop.permute.xlu0 %1607
      %1610 = vset.pattern.permute.xlu0 3
      %1611 = vperm.xlu0 %1610, %v251
      %v1612 = vpop.permute.xlu0 %1611
      %1614 = vset.pattern.permute.xlu0 3
      %1615 = vperm.xlu0 %1614, %v252
      %v1616 = vpop.permute.xlu0 %1615
      %1618 = vset.pattern.permute.xlu0 3
      %1619 = vperm.xlu0 %1618, %v253
      %v1620 = vpop.permute.xlu0 %1619
      %1622 = vset.pattern.permute.xlu0 3
      %1623 = vperm.xlu0 %1622, %v254
      %v1624 = vpop.permute.xlu0 %1623
      %1626 = vset.pattern.permute.xlu0 3
      %1627 = vperm.xlu0 %1626, %v255
      %v1628 = vpop.permute.xlu0 %1627
      %1630 = vset.pattern.permute.xlu0 3
      %1631 = vperm.xlu0 %1630, %v256
      %v1632 = vpop.permute.xlu0 %1631
      %1634 = vset.pattern.permute.xlu0 3
      %1635 = vperm.xlu0 %1634, %v257
      %v1636 = vpop.permute.xlu0 %1635
      %1638 = vset.pattern.permute.xlu0 3
      %1639 = vperm.xlu0 %1638, %v258
      %v1640 = vpop.permute.xlu0 %1639
      %1642 = vset.pattern.permute.xlu0 3
      %1643 = vperm.xlu0 %1642, %v259
      %v1644 = vpop.permute.xlu0 %1643
      %1646 = vset.pattern.permute.xlu0 3
      %1647 = vperm.xlu0 %1646, %v260
      %v1648 = vpop.permute.xlu0 %1647
      %1650 = vset.pattern.permute.xlu0 3
      %1651 = vperm.xlu0 %1650, %v261
      %v1652 = vpop.permute.xlu0 %1651
      %1654 = vset.pattern.permute.xlu0 3
      %1655 = vperm.xlu0 %1654, %v262
      %v1656 = vpop.permute.xlu0 %1655
      %1658 = vset.pattern.permute.xlu0 3
      %1659 = vperm.xlu0 %1658, %v263
      %v1660 = vpop.permute.xlu0 %1659
      %1662 = vset.pattern.permute.xlu0 3
      %1663 = vperm.xlu0 %1662, %v264
      %v1664 = vpop.permute.xlu0 %1663
      %1666 = vset.pattern.permute.xlu0 3
      %1667 = vperm.xlu0 %1666, %v265
      %v1668 = vpop.permute.xlu0 %1667
      %1670 = vset.pattern.permute.xlu0 3
      %1671 = vperm.xlu0 %1670, %v266
      %v1672 = vpop.permute.xlu0 %1671
      %1674 = vset.pattern.permute.xlu0 3
      %1675 = vperm.xlu0 %1674, %v267
      %v1676 = vpop.permute.xlu0 %1675
      %1678 = vset.pattern.permute.xlu0 3
      %1679 = vperm.xlu0 %1678, %v268
      %v1680 = vpop.permute.xlu0 %1679
      %1682 = vset.pattern.permute.xlu0 3
      %1683 = vperm.xlu0 %1682, %v269
      %v1684 = vpop.permute.xlu0 %1683
      %1686 = vset.pattern.permute.xlu0 3
      %1687 = vperm.xlu0 %1686, %v270
      %v1688 = vpop.permute.xlu0 %1687
      %1690 = vset.pattern.permute.xlu0 3
      %1691 = vperm.xlu0 %1690, %v271
      %v1692 = vpop.permute.xlu0 %1691
      %1694 = vset.pattern.permute.xlu0 3
      %1695 = vperm.xlu0 %1694, %v272
      %v1696 = vpop.permute.xlu0 %1695
      %1698 = vset.pattern.permute.xlu0 3
      %1699 = vperm.xlu0 %1698, %v273
      %v1700 = vpop.permute.xlu0 %1699
      %1702 = vset.pattern.permute.xlu0 3
      %1703 = vperm.xlu0 %1702, %v274
      %v1704 = vpop.permute.xlu0 %1703
      %1706 = vset.pattern.permute.xlu0 3
      %1707 = vperm.xlu0 %1706, %v275
      %v1708 = vpop.permute.xlu0 %1707
      %1710 = vset.pattern.permute.xlu0 3
      %1711 = vperm.xlu0 %1710, %v276
      %v1712 = vpop.permute.xlu0 %1711
      %1714 = vset.pattern.permute.xlu0 3
      %1715 = vperm.xlu0 %1714, %v277
      %v1716 = vpop.permute.xlu0 %1715
      %1718 = vset.pattern.permute.xlu0 3
      %1719 = vperm.xlu0 %1718, %v278
      %v1720 = vpop.permute.xlu0 %1719
      %1722 = vset.pattern.permute.xlu0 3
      %1723 = vperm.xlu0 %1722, %v279
      %v1724 = vpop.permute.xlu0 %1723
      %1726 = vset.pattern.permute.xlu0 3
      %1727 = vperm.xlu0 %1726, %v280
      %v1728 = vpop.permute.xlu0 %1727
      %1730 = vset.pattern.permute.xlu0 3
      %1731 = vperm.xlu0 %1730, %v281
      %v1732 = vpop.permute.xlu0 %1731
      %1734 = vset.pattern.permute.xlu0 3
      %1735 = vperm.xlu0 %1734, %v282
      %v1736 = vpop.permute.xlu0 %1735
      %1738 = vset.pattern.permute.xlu0 3
      %1739 = vperm.xlu0 %1738, %v283
      %v1740 = vpop.permute.xlu0 %1739
      %1742 = vset.pattern.permute.xlu0 3
      %1743 = vperm.xlu0 %1742, %v284
      %v1744 = vpop.permute.xlu0 %1743
      %1746 = vset.pattern.permute.xlu0 3
      %1747 = vperm.xlu0 %1746, %v285
      %v1748 = vpop.permute.xlu0 %1747
      %1750 = vset.pattern.permute.xlu0 3
      %1751 = vperm.xlu0 %1750, %v286
      %v1752 = vpop.permute.xlu0 %1751
      %1754 = vset.pattern.permute.xlu0 3
      %1755 = vperm.xlu0 %1754, %v287
      %v1756 = vpop.permute.xlu0 %1755
      %1758 = vset.pattern.permute.xlu0 3
      %1759 = vperm.xlu0 %1758, %v288
      %v1760 = vpop.permute.xlu0 %1759
      %1762 = vset.pattern.permute.xlu0 3
      %1763 = vperm.xlu0 %1762, %v289
      %v1764 = vpop.permute.xlu0 %1763
      %1766 = vset.pattern.permute.xlu0 3
      %1767 = vperm.xlu0 %1766, %v290
      %v1768 = vpop.permute.xlu0 %1767
      %1770 = vset.pattern.permute.xlu0 3
      %1771 = vperm.xlu0 %1770, %v291
      %v1772 = vpop.permute.xlu0 %1771
      %1774 = vset.pattern.permute.xlu0 3
      %1775 = vperm.xlu0 %1774, %v292
      %v1776 = vpop.permute.xlu0 %1775
      %v1778 = vlaneseq
      %v1779 = vshrl.u32 %v1778, 7
      %v1780 = vsub.s32 3, %v1779
      %v1781 = vrot.slane %v293, %v1780
      %v1782 = vmul.f32 %v1524, %v1781
      %v1783 = vmul.f32 %v1528, %v1781
      %v1784 = vmul.f32 %v1532, %v1781
      %v1785 = vmul.f32 %v1536, %v1781
      %v1786 = vmul.f32 %v1540, %v1781
      %v1787 = vmul.f32 %v1544, %v1781
      %v1788 = vmul.f32 %v1548, %v1781
      %v1789 = vmul.f32 %v1552, %v1781
      %v1790 = vmul.f32 %v1556, %v1781
      %v1791 = vmul.f32 %v1560, %v1781
      %v1792 = vmul.f32 %v1564, %v1781
      %v1793 = vmul.f32 %v1568, %v1781
      %v1794 = vmul.f32 %v1572, %v1781
      %v1795 = vmul.f32 %v1576, %v1781
      %v1796 = vmul.f32 %v1580, %v1781
      %v1797 = vmul.f32 %v1584, %v1781
      %v1798 = vmul.f32 %v1588, %v1781
      %v1799 = vmul.f32 %v1592, %v1781
      %v1800 = vmul.f32 %v1596, %v1781
      %v1801 = vmul.f32 %v1600, %v1781
      %v1802 = vmul.f32 %v1604, %v1781
      %v1803 = vmul.f32 %v1608, %v1781
      %v1804 = vmul.f32 %v1612, %v1781
      %v1805 = vmul.f32 %v1616, %v1781
      %v1806 = vmul.f32 %v1620, %v1781
      %v1807 = vmul.f32 %v1624, %v1781
      %v1808 = vmul.f32 %v1628, %v1781
      %v1809 = vmul.f32 %v1632, %v1781
      %v1810 = vmul.f32 %v1636, %v1781
      %v1811 = vmul.f32 %v1640, %v1781
      %v1812 = vmul.f32 %v1644, %v1781
      %v1813 = vmul.f32 %v1648, %v1781
      %v1814 = vmul.f32 %v1652, %v1781
      %v1815 = vmul.f32 %v1656, %v1781
      %v1816 = vmul.f32 %v1660, %v1781
      %v1817 = vmul.f32 %v1664, %v1781
      %v1818 = vmul.f32 %v1668, %v1781
      %v1819 = vmul.f32 %v1672, %v1781
      %v1820 = vmul.f32 %v1676, %v1781
      %v1821 = vmul.f32 %v1680, %v1781
      %v1822 = vmul.f32 %v1684, %v1781
      %v1823 = vmul.f32 %v1688, %v1781
      %v1824 = vmul.f32 %v1692, %v1781
      %v1825 = vmul.f32 %v1696, %v1781
      %v1826 = vmul.f32 %v1700, %v1781
      %v1827 = vmul.f32 %v1704, %v1781
      %v1828 = vmul.f32 %v1708, %v1781
      %v1829 = vmul.f32 %v1712, %v1781
      %v1830 = vmul.f32 %v1716, %v1781
      %v1831 = vmul.f32 %v1720, %v1781
      %v1832 = vmul.f32 %v1724, %v1781
      %v1833 = vmul.f32 %v1728, %v1781
      %v1834 = vmul.f32 %v1732, %v1781
      %v1835 = vmul.f32 %v1736, %v1781
      %v1836 = vmul.f32 %v1740, %v1781
      %v1837 = vmul.f32 %v1744, %v1781
      %v1838 = vmul.f32 %v1748, %v1781
      %v1839 = vmul.f32 %v1752, %v1781
      %v1840 = vmul.f32 %v1756, %v1781
      %v1841 = vmul.f32 %v1760, %v1781
      %v1842 = vmul.f32 %v1764, %v1781
      %v1843 = vmul.f32 %v1768, %v1781
      %v1844 = vmul.f32 %v1772, %v1781
      %v1845 = vmul.f32 %v1776, %v1781
      %v1846 = vadd.f32 %v1458, %v1782
      %v1847 = vadd.f32 %v1459, %v1783
      %v1848 = vadd.f32 %v1460, %v1784
      %v1849 = vadd.f32 %v1461, %v1785
      %v1850 = vadd.f32 %v1462, %v1786
      %v1851 = vadd.f32 %v1463, %v1787
      %v1852 = vadd.f32 %v1464, %v1788
      %v1853 = vadd.f32 %v1465, %v1789
      %v1854 = vadd.f32 %v1466, %v1790
      %v1855 = vadd.f32 %v1467, %v1791
      %v1856 = vadd.f32 %v1468, %v1792
      %v1857 = vadd.f32 %v1469, %v1793
      %v1858 = vadd.f32 %v1470, %v1794
      %v1859 = vadd.f32 %v1471, %v1795
      %v1860 = vadd.f32 %v1472, %v1796
      %v1861 = vadd.f32 %v1473, %v1797
      %v1862 = vadd.f32 %v1474, %v1798
      %v1863 = vadd.f32 %v1475, %v1799
      %v1864 = vadd.f32 %v1476, %v1800
      %v1865 = vadd.f32 %v1477, %v1801
      %v1866 = vadd.f32 %v1478, %v1802
      %v1867 = vadd.f32 %v1479, %v1803
      %v1868 = vadd.f32 %v1480, %v1804
      %v1869 = vadd.f32 %v1481, %v1805
      %v1870 = vadd.f32 %v1482, %v1806
      %v1871 = vadd.f32 %v1483, %v1807
      %v1872 = vadd.f32 %v1484, %v1808
      %v1873 = vadd.f32 %v1485, %v1809
      %v1874 = vadd.f32 %v1486, %v1810
      %v1875 = vadd.f32 %v1487, %v1811
      %v1876 = vadd.f32 %v1488, %v1812
      %v1877 = vadd.f32 %v1489, %v1813
      %v1878 = vadd.f32 %v1490, %v1814
      %v1879 = vadd.f32 %v1491, %v1815
      %v1880 = vadd.f32 %v1492, %v1816
      %v1881 = vadd.f32 %v1493, %v1817
      %v1882 = vadd.f32 %v1494, %v1818
      %v1883 = vadd.f32 %v1495, %v1819
      %v1884 = vadd.f32 %v1496, %v1820
      %v1885 = vadd.f32 %v1497, %v1821
      %v1886 = vadd.f32 %v1498, %v1822
      %v1887 = vadd.f32 %v1499, %v1823
      %v1888 = vadd.f32 %v1500, %v1824
      %v1889 = vadd.f32 %v1501, %v1825
      %v1890 = vadd.f32 %v1502, %v1826
      %v1891 = vadd.f32 %v1503, %v1827
      %v1892 = vadd.f32 %v1504, %v1828
      %v1893 = vadd.f32 %v1505, %v1829
      %v1894 = vadd.f32 %v1506, %v1830
      %v1895 = vadd.f32 %v1507, %v1831
      %v1896 = vadd.f32 %v1508, %v1832
      %v1897 = vadd.f32 %v1509, %v1833
      %v1898 = vadd.f32 %v1510, %v1834
      %v1899 = vadd.f32 %v1511, %v1835
      %v1900 = vadd.f32 %v1512, %v1836
      %v1901 = vadd.f32 %v1513, %v1837
      %v1902 = vadd.f32 %v1514, %v1838
      %v1903 = vadd.f32 %v1515, %v1839
      %v1904 = vadd.f32 %v1516, %v1840
      %v1905 = vadd.f32 %v1517, %v1841
      %v1906 = vadd.f32 %v1518, %v1842
      %v1907 = vadd.f32 %v1519, %v1843
      %v1908 = vadd.f32 %v1520, %v1844
      %v1909 = vadd.f32 %v1521, %v1845
      %1910 = vset.pattern.permute.xlu0 4
      %1911 = vperm.xlu0 %1910, %v229
      %v1912 = vpop.permute.xlu0 %1911
      %1914 = vset.pattern.permute.xlu0 4
      %1915 = vperm.xlu0 %1914, %v230
      %v1916 = vpop.permute.xlu0 %1915
      %1918 = vset.pattern.permute.xlu0 4
      %1919 = vperm.xlu0 %1918, %v231
      %v1920 = vpop.permute.xlu0 %1919
      %1922 = vset.pattern.permute.xlu0 4
      %1923 = vperm.xlu0 %1922, %v232
      %v1924 = vpop.permute.xlu0 %1923
      %1926 = vset.pattern.permute.xlu0 4
      %1927 = vperm.xlu0 %1926, %v233
      %v1928 = vpop.permute.xlu0 %1927
      %1930 = vset.pattern.permute.xlu0 4
      %1931 = vperm.xlu0 %1930, %v234
      %v1932 = vpop.permute.xlu0 %1931
      %1934 = vset.pattern.permute.xlu0 4
      %1935 = vperm.xlu0 %1934, %v235
      %v1936 = vpop.permute.xlu0 %1935
      %1938 = vset.pattern.permute.xlu0 4
      %1939 = vperm.xlu0 %1938, %v236
      %v1940 = vpop.permute.xlu0 %1939
      %1942 = vset.pattern.permute.xlu0 4
      %1943 = vperm.xlu0 %1942, %v237
      %v1944 = vpop.permute.xlu0 %1943
      %1946 = vset.pattern.permute.xlu0 4
      %1947 = vperm.xlu0 %1946, %v238
      %v1948 = vpop.permute.xlu0 %1947
      %1950 = vset.pattern.permute.xlu0 4
      %1951 = vperm.xlu0 %1950, %v239
      %v1952 = vpop.permute.xlu0 %1951
      %1954 = vset.pattern.permute.xlu0 4
      %1955 = vperm.xlu0 %1954, %v240
      %v1956 = vpop.permute.xlu0 %1955
      %1958 = vset.pattern.permute.xlu0 4
      %1959 = vperm.xlu0 %1958, %v241
      %v1960 = vpop.permute.xlu0 %1959
      %1962 = vset.pattern.permute.xlu0 4
      %1963 = vperm.xlu0 %1962, %v242
      %v1964 = vpop.permute.xlu0 %1963
      %1966 = vset.pattern.permute.xlu0 4
      %1967 = vperm.xlu0 %1966, %v243
      %v1968 = vpop.permute.xlu0 %1967
      %1970 = vset.pattern.permute.xlu0 4
      %1971 = vperm.xlu0 %1970, %v244
      %v1972 = vpop.permute.xlu0 %1971
      %1974 = vset.pattern.permute.xlu0 4
      %1975 = vperm.xlu0 %1974, %v245
      %v1976 = vpop.permute.xlu0 %1975
      %1978 = vset.pattern.permute.xlu0 4
      %1979 = vperm.xlu0 %1978, %v246
      %v1980 = vpop.permute.xlu0 %1979
      %1982 = vset.pattern.permute.xlu0 4
      %1983 = vperm.xlu0 %1982, %v247
      %v1984 = vpop.permute.xlu0 %1983
      %1986 = vset.pattern.permute.xlu0 4
      %1987 = vperm.xlu0 %1986, %v248
      %v1988 = vpop.permute.xlu0 %1987
      %1990 = vset.pattern.permute.xlu0 4
      %1991 = vperm.xlu0 %1990, %v249
      %v1992 = vpop.permute.xlu0 %1991
      %1994 = vset.pattern.permute.xlu0 4
      %1995 = vperm.xlu0 %1994, %v250
      %v1996 = vpop.permute.xlu0 %1995
      %1998 = vset.pattern.permute.xlu0 4
      %1999 = vperm.xlu0 %1998, %v251
      %v2000 = vpop.permute.xlu0 %1999
      %2002 = vset.pattern.permute.xlu0 4
      %2003 = vperm.xlu0 %2002, %v252
      %v2004 = vpop.permute.xlu0 %2003
      %2006 = vset.pattern.permute.xlu0 4
      %2007 = vperm.xlu0 %2006, %v253
      %v2008 = vpop.permute.xlu0 %2007
      %2010 = vset.pattern.permute.xlu0 4
      %2011 = vperm.xlu0 %2010, %v254
      %v2012 = vpop.permute.xlu0 %2011
      %2014 = vset.pattern.permute.xlu0 4
      %2015 = vperm.xlu0 %2014, %v255
      %v2016 = vpop.permute.xlu0 %2015
      %2018 = vset.pattern.permute.xlu0 4
      %2019 = vperm.xlu0 %2018, %v256
      %v2020 = vpop.permute.xlu0 %2019
      %2022 = vset.pattern.permute.xlu0 4
      %2023 = vperm.xlu0 %2022, %v257
      %v2024 = vpop.permute.xlu0 %2023
      %2026 = vset.pattern.permute.xlu0 4
      %2027 = vperm.xlu0 %2026, %v258
      %v2028 = vpop.permute.xlu0 %2027
      %2030 = vset.pattern.permute.xlu0 4
      %2031 = vperm.xlu0 %2030, %v259
      %v2032 = vpop.permute.xlu0 %2031
      %2034 = vset.pattern.permute.xlu0 4
      %2035 = vperm.xlu0 %2034, %v260
      %v2036 = vpop.permute.xlu0 %2035
      %2038 = vset.pattern.permute.xlu0 4
      %2039 = vperm.xlu0 %2038, %v261
      %v2040 = vpop.permute.xlu0 %2039
      %2042 = vset.pattern.permute.xlu0 4
      %2043 = vperm.xlu0 %2042, %v262
      %v2044 = vpop.permute.xlu0 %2043
      %2046 = vset.pattern.permute.xlu0 4
      %2047 = vperm.xlu0 %2046, %v263
      %v2048 = vpop.permute.xlu0 %2047
      %2050 = vset.pattern.permute.xlu0 4
      %2051 = vperm.xlu0 %2050, %v264
      %v2052 = vpop.permute.xlu0 %2051
      %2054 = vset.pattern.permute.xlu0 4
      %2055 = vperm.xlu0 %2054, %v265
      %v2056 = vpop.permute.xlu0 %2055
      %2058 = vset.pattern.permute.xlu0 4
      %2059 = vperm.xlu0 %2058, %v266
      %v2060 = vpop.permute.xlu0 %2059
      %2062 = vset.pattern.permute.xlu0 4
      %2063 = vperm.xlu0 %2062, %v267
      %v2064 = vpop.permute.xlu0 %2063
      %2066 = vset.pattern.permute.xlu0 4
      %2067 = vperm.xlu0 %2066, %v268
      %v2068 = vpop.permute.xlu0 %2067
      %2070 = vset.pattern.permute.xlu0 4
      %2071 = vperm.xlu0 %2070, %v269
      %v2072 = vpop.permute.xlu0 %2071
      %2074 = vset.pattern.permute.xlu0 4
      %2075 = vperm.xlu0 %2074, %v270
      %v2076 = vpop.permute.xlu0 %2075
      %2078 = vset.pattern.permute.xlu0 4
      %2079 = vperm.xlu0 %2078, %v271
      %v2080 = vpop.permute.xlu0 %2079
      %2082 = vset.pattern.permute.xlu0 4
      %2083 = vperm.xlu0 %2082, %v272
      %v2084 = vpop.permute.xlu0 %2083
      %2086 = vset.pattern.permute.xlu0 4
      %2087 = vperm.xlu0 %2086, %v273
      %v2088 = vpop.permute.xlu0 %2087
      %2090 = vset.pattern.permute.xlu0 4
      %2091 = vperm.xlu0 %2090, %v274
      %v2092 = vpop.permute.xlu0 %2091
      %2094 = vset.pattern.permute.xlu0 4
      %2095 = vperm.xlu0 %2094, %v275
      %v2096 = vpop.permute.xlu0 %2095
      %2098 = vset.pattern.permute.xlu0 4
      %2099 = vperm.xlu0 %2098, %v276
      %v2100 = vpop.permute.xlu0 %2099
      %2102 = vset.pattern.permute.xlu0 4
      %2103 = vperm.xlu0 %2102, %v277
      %v2104 = vpop.permute.xlu0 %2103
      %2106 = vset.pattern.permute.xlu0 4
      %2107 = vperm.xlu0 %2106, %v278
      %v2108 = vpop.permute.xlu0 %2107
      %2110 = vset.pattern.permute.xlu0 4
      %2111 = vperm.xlu0 %2110, %v279
      %v2112 = vpop.permute.xlu0 %2111
      %2114 = vset.pattern.permute.xlu0 4
      %2115 = vperm.xlu0 %2114, %v280
      %v2116 = vpop.permute.xlu0 %2115
      %2118 = vset.pattern.permute.xlu0 4
      %2119 = vperm.xlu0 %2118, %v281
      %v2120 = vpop.permute.xlu0 %2119
      %2122 = vset.pattern.permute.xlu0 4
      %2123 = vperm.xlu0 %2122, %v282
      %v2124 = vpop.permute.xlu0 %2123
      %2126 = vset.pattern.permute.xlu0 4
      %2127 = vperm.xlu0 %2126, %v283
      %v2128 = vpop.permute.xlu0 %2127
      %2130 = vset.pattern.permute.xlu0 4
      %2131 = vperm.xlu0 %2130, %v284
      %v2132 = vpop.permute.xlu0 %2131
      %2134 = vset.pattern.permute.xlu0 4
      %2135 = vperm.xlu0 %2134, %v285
      %v2136 = vpop.permute.xlu0 %2135
      %2138 = vset.pattern.permute.xlu0 4
      %2139 = vperm.xlu0 %2138, %v286
      %v2140 = vpop.permute.xlu0 %2139
      %2142 = vset.pattern.permute.xlu0 4
      %2143 = vperm.xlu0 %2142, %v287
      %v2144 = vpop.permute.xlu0 %2143
      %2146 = vset.pattern.permute.xlu0 4
      %2147 = vperm.xlu0 %2146, %v288
      %v2148 = vpop.permute.xlu0 %2147
      %2150 = vset.pattern.permute.xlu0 4
      %2151 = vperm.xlu0 %2150, %v289
      %v2152 = vpop.permute.xlu0 %2151
      %2154 = vset.pattern.permute.xlu0 4
      %2155 = vperm.xlu0 %2154, %v290
      %v2156 = vpop.permute.xlu0 %2155
      %2158 = vset.pattern.permute.xlu0 4
      %2159 = vperm.xlu0 %2158, %v291
      %v2160 = vpop.permute.xlu0 %2159
      %2162 = vset.pattern.permute.xlu0 4
      %2163 = vperm.xlu0 %2162, %v292
      %v2164 = vpop.permute.xlu0 %2163
      %v2166 = vlaneseq
      %v2167 = vshrl.u32 %v2166, 7
      %v2168 = vsub.s32 4, %v2167
      %v2169 = vrot.slane %v293, %v2168
      %v2170 = vmul.f32 %v1912, %v2169
      %v2171 = vmul.f32 %v1916, %v2169
      %v2172 = vmul.f32 %v1920, %v2169
      %v2173 = vmul.f32 %v1924, %v2169
      %v2174 = vmul.f32 %v1928, %v2169
      %v2175 = vmul.f32 %v1932, %v2169
      %v2176 = vmul.f32 %v1936, %v2169
      %v2177 = vmul.f32 %v1940, %v2169
      %v2178 = vmul.f32 %v1944, %v2169
      %v2179 = vmul.f32 %v1948, %v2169
      %v2180 = vmul.f32 %v1952, %v2169
      %v2181 = vmul.f32 %v1956, %v2169
      %v2182 = vmul.f32 %v1960, %v2169
      %v2183 = vmul.f32 %v1964, %v2169
      %v2184 = vmul.f32 %v1968, %v2169
      %v2185 = vmul.f32 %v1972, %v2169
      %v2186 = vmul.f32 %v1976, %v2169
      %v2187 = vmul.f32 %v1980, %v2169
      %v2188 = vmul.f32 %v1984, %v2169
      %v2189 = vmul.f32 %v1988, %v2169
      %v2190 = vmul.f32 %v1992, %v2169
      %v2191 = vmul.f32 %v1996, %v2169
      %v2192 = vmul.f32 %v2000, %v2169
      %v2193 = vmul.f32 %v2004, %v2169
      %v2194 = vmul.f32 %v2008, %v2169
      %v2195 = vmul.f32 %v2012, %v2169
      %v2196 = vmul.f32 %v2016, %v2169
      %v2197 = vmul.f32 %v2020, %v2169
      %v2198 = vmul.f32 %v2024, %v2169
      %v2199 = vmul.f32 %v2028, %v2169
      %v2200 = vmul.f32 %v2032, %v2169
      %v2201 = vmul.f32 %v2036, %v2169
      %v2202 = vmul.f32 %v2040, %v2169
      %v2203 = vmul.f32 %v2044, %v2169
      %v2204 = vmul.f32 %v2048, %v2169
      %v2205 = vmul.f32 %v2052, %v2169
      %v2206 = vmul.f32 %v2056, %v2169
      %v2207 = vmul.f32 %v2060, %v2169
      %v2208 = vmul.f32 %v2064, %v2169
      %v2209 = vmul.f32 %v2068, %v2169
      %v2210 = vmul.f32 %v2072, %v2169
      %v2211 = vmul.f32 %v2076, %v2169
      %v2212 = vmul.f32 %v2080, %v2169
      %v2213 = vmul.f32 %v2084, %v2169
      %v2214 = vmul.f32 %v2088, %v2169
      %v2215 = vmul.f32 %v2092, %v2169
      %v2216 = vmul.f32 %v2096, %v2169
      %v2217 = vmul.f32 %v2100, %v2169
      %v2218 = vmul.f32 %v2104, %v2169
      %v2219 = vmul.f32 %v2108, %v2169
      %v2220 = vmul.f32 %v2112, %v2169
      %v2221 = vmul.f32 %v2116, %v2169
      %v2222 = vmul.f32 %v2120, %v2169
      %v2223 = vmul.f32 %v2124, %v2169
      %v2224 = vmul.f32 %v2128, %v2169
      %v2225 = vmul.f32 %v2132, %v2169
      %v2226 = vmul.f32 %v2136, %v2169
      %v2227 = vmul.f32 %v2140, %v2169
      %v2228 = vmul.f32 %v2144, %v2169
      %v2229 = vmul.f32 %v2148, %v2169
      %v2230 = vmul.f32 %v2152, %v2169
      %v2231 = vmul.f32 %v2156, %v2169
      %v2232 = vmul.f32 %v2160, %v2169
      %v2233 = vmul.f32 %v2164, %v2169
      %v2234 = vadd.f32 %v1846, %v2170
      %v2235 = vadd.f32 %v1847, %v2171
      %v2236 = vadd.f32 %v1848, %v2172
      %v2237 = vadd.f32 %v1849, %v2173
      %v2238 = vadd.f32 %v1850, %v2174
      %v2239 = vadd.f32 %v1851, %v2175
      %v2240 = vadd.f32 %v1852, %v2176
      %v2241 = vadd.f32 %v1853, %v2177
      %v2242 = vadd.f32 %v1854, %v2178
      %v2243 = vadd.f32 %v1855, %v2179
      %v2244 = vadd.f32 %v1856, %v2180
      %v2245 = vadd.f32 %v1857, %v2181
      %v2246 = vadd.f32 %v1858, %v2182
      %v2247 = vadd.f32 %v1859, %v2183
      %v2248 = vadd.f32 %v1860, %v2184
      %v2249 = vadd.f32 %v1861, %v2185
      %v2250 = vadd.f32 %v1862, %v2186
      %v2251 = vadd.f32 %v1863, %v2187
      %v2252 = vadd.f32 %v1864, %v2188
      %v2253 = vadd.f32 %v1865, %v2189
      %v2254 = vadd.f32 %v1866, %v2190
      %v2255 = vadd.f32 %v1867, %v2191
      %v2256 = vadd.f32 %v1868, %v2192
      %v2257 = vadd.f32 %v1869, %v2193
      %v2258 = vadd.f32 %v1870, %v2194
      %v2259 = vadd.f32 %v1871, %v2195
      %v2260 = vadd.f32 %v1872, %v2196
      %v2261 = vadd.f32 %v1873, %v2197
      %v2262 = vadd.f32 %v1874, %v2198
      %v2263 = vadd.f32 %v1875, %v2199
      %v2264 = vadd.f32 %v1876, %v2200
      %v2265 = vadd.f32 %v1877, %v2201
      %v2266 = vadd.f32 %v1878, %v2202
      %v2267 = vadd.f32 %v1879, %v2203
      %v2268 = vadd.f32 %v1880, %v2204
      %v2269 = vadd.f32 %v1881, %v2205
      %v2270 = vadd.f32 %v1882, %v2206
      %v2271 = vadd.f32 %v1883, %v2207
      %v2272 = vadd.f32 %v1884, %v2208
      %v2273 = vadd.f32 %v1885, %v2209
      %v2274 = vadd.f32 %v1886, %v2210
      %v2275 = vadd.f32 %v1887, %v2211
      %v2276 = vadd.f32 %v1888, %v2212
      %v2277 = vadd.f32 %v1889, %v2213
      %v2278 = vadd.f32 %v1890, %v2214
      %v2279 = vadd.f32 %v1891, %v2215
      %v2280 = vadd.f32 %v1892, %v2216
      %v2281 = vadd.f32 %v1893, %v2217
      %v2282 = vadd.f32 %v1894, %v2218
      %v2283 = vadd.f32 %v1895, %v2219
      %v2284 = vadd.f32 %v1896, %v2220
      %v2285 = vadd.f32 %v1897, %v2221
      %v2286 = vadd.f32 %v1898, %v2222
      %v2287 = vadd.f32 %v1899, %v2223
      %v2288 = vadd.f32 %v1900, %v2224
      %v2289 = vadd.f32 %v1901, %v2225
      %v2290 = vadd.f32 %v1902, %v2226
      %v2291 = vadd.f32 %v1903, %v2227
      %v2292 = vadd.f32 %v1904, %v2228
      %v2293 = vadd.f32 %v1905, %v2229
      %v2294 = vadd.f32 %v1906, %v2230
      %v2295 = vadd.f32 %v1907, %v2231
      %v2296 = vadd.f32 %v1908, %v2232
      %v2297 = vadd.f32 %v1909, %v2233
      %2298 = vset.pattern.permute.xlu0 5
      %2299 = vperm.xlu0 %2298, %v229
      %v2300 = vpop.permute.xlu0 %2299
      %2302 = vset.pattern.permute.xlu0 5
      %2303 = vperm.xlu0 %2302, %v230
      %v2304 = vpop.permute.xlu0 %2303
      %2306 = vset.pattern.permute.xlu0 5
      %2307 = vperm.xlu0 %2306, %v231
      %v2308 = vpop.permute.xlu0 %2307
      %2310 = vset.pattern.permute.xlu0 5
      %2311 = vperm.xlu0 %2310, %v232
      %v2312 = vpop.permute.xlu0 %2311
      %2314 = vset.pattern.permute.xlu0 5
      %2315 = vperm.xlu0 %2314, %v233
      %v2316 = vpop.permute.xlu0 %2315
      %2318 = vset.pattern.permute.xlu0 5
      %2319 = vperm.xlu0 %2318, %v234
      %v2320 = vpop.permute.xlu0 %2319
      %2322 = vset.pattern.permute.xlu0 5
      %2323 = vperm.xlu0 %2322, %v235
      %v2324 = vpop.permute.xlu0 %2323
      %2326 = vset.pattern.permute.xlu0 5
      %2327 = vperm.xlu0 %2326, %v236
      %v2328 = vpop.permute.xlu0 %2327
      %2330 = vset.pattern.permute.xlu0 5
      %2331 = vperm.xlu0 %2330, %v237
      %v2332 = vpop.permute.xlu0 %2331
      %2334 = vset.pattern.permute.xlu0 5
      %2335 = vperm.xlu0 %2334, %v238
      %v2336 = vpop.permute.xlu0 %2335
      %2338 = vset.pattern.permute.xlu0 5
      %2339 = vperm.xlu0 %2338, %v239
      %v2340 = vpop.permute.xlu0 %2339
      %2342 = vset.pattern.permute.xlu0 5
      %2343 = vperm.xlu0 %2342, %v240
      %v2344 = vpop.permute.xlu0 %2343
      %2346 = vset.pattern.permute.xlu0 5
      %2347 = vperm.xlu0 %2346, %v241
      %v2348 = vpop.permute.xlu0 %2347
      %2350 = vset.pattern.permute.xlu0 5
      %2351 = vperm.xlu0 %2350, %v242
      %v2352 = vpop.permute.xlu0 %2351
      %2354 = vset.pattern.permute.xlu0 5
      %2355 = vperm.xlu0 %2354, %v243
      %v2356 = vpop.permute.xlu0 %2355
      %2358 = vset.pattern.permute.xlu0 5
      %2359 = vperm.xlu0 %2358, %v244
      %v2360 = vpop.permute.xlu0 %2359
      %2362 = vset.pattern.permute.xlu0 5
      %2363 = vperm.xlu0 %2362, %v245
      %v2364 = vpop.permute.xlu0 %2363
      %2366 = vset.pattern.permute.xlu0 5
      %2367 = vperm.xlu0 %2366, %v246
      %v2368 = vpop.permute.xlu0 %2367
      %2370 = vset.pattern.permute.xlu0 5
      %2371 = vperm.xlu0 %2370, %v247
      %v2372 = vpop.permute.xlu0 %2371
      %2374 = vset.pattern.permute.xlu0 5
      %2375 = vperm.xlu0 %2374, %v248
      %v2376 = vpop.permute.xlu0 %2375
      %2378 = vset.pattern.permute.xlu0 5
      %2379 = vperm.xlu0 %2378, %v249
      %v2380 = vpop.permute.xlu0 %2379
      %2382 = vset.pattern.permute.xlu0 5
      %2383 = vperm.xlu0 %2382, %v250
      %v2384 = vpop.permute.xlu0 %2383
      %2386 = vset.pattern.permute.xlu0 5
      %2387 = vperm.xlu0 %2386, %v251
      %v2388 = vpop.permute.xlu0 %2387
      %2390 = vset.pattern.permute.xlu0 5
      %2391 = vperm.xlu0 %2390, %v252
      %v2392 = vpop.permute.xlu0 %2391
      %2394 = vset.pattern.permute.xlu0 5
      %2395 = vperm.xlu0 %2394, %v253
      %v2396 = vpop.permute.xlu0 %2395
      %2398 = vset.pattern.permute.xlu0 5
      %2399 = vperm.xlu0 %2398, %v254
      %v2400 = vpop.permute.xlu0 %2399
      %2402 = vset.pattern.permute.xlu0 5
      %2403 = vperm.xlu0 %2402, %v255
      %v2404 = vpop.permute.xlu0 %2403
      %2406 = vset.pattern.permute.xlu0 5
      %2407 = vperm.xlu0 %2406, %v256
      %v2408 = vpop.permute.xlu0 %2407
      %2410 = vset.pattern.permute.xlu0 5
      %2411 = vperm.xlu0 %2410, %v257
      %v2412 = vpop.permute.xlu0 %2411
      %2414 = vset.pattern.permute.xlu0 5
      %2415 = vperm.xlu0 %2414, %v258
      %v2416 = vpop.permute.xlu0 %2415
      %2418 = vset.pattern.permute.xlu0 5
      %2419 = vperm.xlu0 %2418, %v259
      %v2420 = vpop.permute.xlu0 %2419
      %2422 = vset.pattern.permute.xlu0 5
      %2423 = vperm.xlu0 %2422, %v260
      %v2424 = vpop.permute.xlu0 %2423
      %2426 = vset.pattern.permute.xlu0 5
      %2427 = vperm.xlu0 %2426, %v261
      %v2428 = vpop.permute.xlu0 %2427
      %2430 = vset.pattern.permute.xlu0 5
      %2431 = vperm.xlu0 %2430, %v262
      %v2432 = vpop.permute.xlu0 %2431
      %2434 = vset.pattern.permute.xlu0 5
      %2435 = vperm.xlu0 %2434, %v263
      %v2436 = vpop.permute.xlu0 %2435
      %2438 = vset.pattern.permute.xlu0 5
      %2439 = vperm.xlu0 %2438, %v264
      %v2440 = vpop.permute.xlu0 %2439
      %2442 = vset.pattern.permute.xlu0 5
      %2443 = vperm.xlu0 %2442, %v265
      %v2444 = vpop.permute.xlu0 %2443
      %2446 = vset.pattern.permute.xlu0 5
      %2447 = vperm.xlu0 %2446, %v266
      %v2448 = vpop.permute.xlu0 %2447
      %2450 = vset.pattern.permute.xlu0 5
      %2451 = vperm.xlu0 %2450, %v267
      %v2452 = vpop.permute.xlu0 %2451
      %2454 = vset.pattern.permute.xlu0 5
      %2455 = vperm.xlu0 %2454, %v268
      %v2456 = vpop.permute.xlu0 %2455
      %2458 = vset.pattern.permute.xlu0 5
      %2459 = vperm.xlu0 %2458, %v269
      %v2460 = vpop.permute.xlu0 %2459
      %2462 = vset.pattern.permute.xlu0 5
      %2463 = vperm.xlu0 %2462, %v270
      %v2464 = vpop.permute.xlu0 %2463
      %2466 = vset.pattern.permute.xlu0 5
      %2467 = vperm.xlu0 %2466, %v271
      %v2468 = vpop.permute.xlu0 %2467
      %2470 = vset.pattern.permute.xlu0 5
      %2471 = vperm.xlu0 %2470, %v272
      %v2472 = vpop.permute.xlu0 %2471
      %2474 = vset.pattern.permute.xlu0 5
      %2475 = vperm.xlu0 %2474, %v273
      %v2476 = vpop.permute.xlu0 %2475
      %2478 = vset.pattern.permute.xlu0 5
      %2479 = vperm.xlu0 %2478, %v274
      %v2480 = vpop.permute.xlu0 %2479
      %2482 = vset.pattern.permute.xlu0 5
      %2483 = vperm.xlu0 %2482, %v275
      %v2484 = vpop.permute.xlu0 %2483
      %2486 = vset.pattern.permute.xlu0 5
      %2487 = vperm.xlu0 %2486, %v276
      %v2488 = vpop.permute.xlu0 %2487
      %2490 = vset.pattern.permute.xlu0 5
      %2491 = vperm.xlu0 %2490, %v277
      %v2492 = vpop.permute.xlu0 %2491
      %2494 = vset.pattern.permute.xlu0 5
      %2495 = vperm.xlu0 %2494, %v278
      %v2496 = vpop.permute.xlu0 %2495
      %2498 = vset.pattern.permute.xlu0 5
      %2499 = vperm.xlu0 %2498, %v279
      %v2500 = vpop.permute.xlu0 %2499
      %2502 = vset.pattern.permute.xlu0 5
      %2503 = vperm.xlu0 %2502, %v280
      %v2504 = vpop.permute.xlu0 %2503
      %2506 = vset.pattern.permute.xlu0 5
      %2507 = vperm.xlu0 %2506, %v281
      %v2508 = vpop.permute.xlu0 %2507
      %2510 = vset.pattern.permute.xlu0 5
      %2511 = vperm.xlu0 %2510, %v282
      %v2512 = vpop.permute.xlu0 %2511
      %2514 = vset.pattern.permute.xlu0 5
      %2515 = vperm.xlu0 %2514, %v283
      %v2516 = vpop.permute.xlu0 %2515
      %2518 = vset.pattern.permute.xlu0 5
      %2519 = vperm.xlu0 %2518, %v284
      %v2520 = vpop.permute.xlu0 %2519
      %2522 = vset.pattern.permute.xlu0 5
      %2523 = vperm.xlu0 %2522, %v285
      %v2524 = vpop.permute.xlu0 %2523
      %2526 = vset.pattern.permute.xlu0 5
      %2527 = vperm.xlu0 %2526, %v286
      %v2528 = vpop.permute.xlu0 %2527
      %2530 = vset.pattern.permute.xlu0 5
      %2531 = vperm.xlu0 %2530, %v287
      %v2532 = vpop.permute.xlu0 %2531
      %2534 = vset.pattern.permute.xlu0 5
      %2535 = vperm.xlu0 %2534, %v288
      %v2536 = vpop.permute.xlu0 %2535
      %2538 = vset.pattern.permute.xlu0 5
      %2539 = vperm.xlu0 %2538, %v289
      %v2540 = vpop.permute.xlu0 %2539
      %2542 = vset.pattern.permute.xlu0 5
      %2543 = vperm.xlu0 %2542, %v290
      %v2544 = vpop.permute.xlu0 %2543
      %2546 = vset.pattern.permute.xlu0 5
      %2547 = vperm.xlu0 %2546, %v291
      %v2548 = vpop.permute.xlu0 %2547
      %2550 = vset.pattern.permute.xlu0 5
      %2551 = vperm.xlu0 %2550, %v292
      %v2552 = vpop.permute.xlu0 %2551
      %v2554 = vlaneseq
      %v2555 = vshrl.u32 %v2554, 7
      %v2556 = vsub.s32 5, %v2555
      %v2557 = vrot.slane %v293, %v2556
      %v2558 = vmul.f32 %v2300, %v2557
      %v2559 = vmul.f32 %v2304, %v2557
      %v2560 = vmul.f32 %v2308, %v2557
      %v2561 = vmul.f32 %v2312, %v2557
      %v2562 = vmul.f32 %v2316, %v2557
      %v2563 = vmul.f32 %v2320, %v2557
      %v2564 = vmul.f32 %v2324, %v2557
      %v2565 = vmul.f32 %v2328, %v2557
      %v2566 = vmul.f32 %v2332, %v2557
      %v2567 = vmul.f32 %v2336, %v2557
      %v2568 = vmul.f32 %v2340, %v2557
      %v2569 = vmul.f32 %v2344, %v2557
      %v2570 = vmul.f32 %v2348, %v2557
      %v2571 = vmul.f32 %v2352, %v2557
      %v2572 = vmul.f32 %v2356, %v2557
      %v2573 = vmul.f32 %v2360, %v2557
      %v2574 = vmul.f32 %v2364, %v2557
      %v2575 = vmul.f32 %v2368, %v2557
      %v2576 = vmul.f32 %v2372, %v2557
      %v2577 = vmul.f32 %v2376, %v2557
      %v2578 = vmul.f32 %v2380, %v2557
      %v2579 = vmul.f32 %v2384, %v2557
      %v2580 = vmul.f32 %v2388, %v2557
      %v2581 = vmul.f32 %v2392, %v2557
      %v2582 = vmul.f32 %v2396, %v2557
      %v2583 = vmul.f32 %v2400, %v2557
      %v2584 = vmul.f32 %v2404, %v2557
      %v2585 = vmul.f32 %v2408, %v2557
      %v2586 = vmul.f32 %v2412, %v2557
      %v2587 = vmul.f32 %v2416, %v2557
      %v2588 = vmul.f32 %v2420, %v2557
      %v2589 = vmul.f32 %v2424, %v2557
      %v2590 = vmul.f32 %v2428, %v2557
      %v2591 = vmul.f32 %v2432, %v2557
      %v2592 = vmul.f32 %v2436, %v2557
      %v2593 = vmul.f32 %v2440, %v2557
      %v2594 = vmul.f32 %v2444, %v2557
      %v2595 = vmul.f32 %v2448, %v2557
      %v2596 = vmul.f32 %v2452, %v2557
      %v2597 = vmul.f32 %v2456, %v2557
      %v2598 = vmul.f32 %v2460, %v2557
      %v2599 = vmul.f32 %v2464, %v2557
      %v2600 = vmul.f32 %v2468, %v2557
      %v2601 = vmul.f32 %v2472, %v2557
      %v2602 = vmul.f32 %v2476, %v2557
      %v2603 = vmul.f32 %v2480, %v2557
      %v2604 = vmul.f32 %v2484, %v2557
      %v2605 = vmul.f32 %v2488, %v2557
      %v2606 = vmul.f32 %v2492, %v2557
      %v2607 = vmul.f32 %v2496, %v2557
      %v2608 = vmul.f32 %v2500, %v2557
      %v2609 = vmul.f32 %v2504, %v2557
      %v2610 = vmul.f32 %v2508, %v2557
      %v2611 = vmul.f32 %v2512, %v2557
      %v2612 = vmul.f32 %v2516, %v2557
      %v2613 = vmul.f32 %v2520, %v2557
      %v2614 = vmul.f32 %v2524, %v2557
      %v2615 = vmul.f32 %v2528, %v2557
      %v2616 = vmul.f32 %v2532, %v2557
      %v2617 = vmul.f32 %v2536, %v2557
      %v2618 = vmul.f32 %v2540, %v2557
      %v2619 = vmul.f32 %v2544, %v2557
      %v2620 = vmul.f32 %v2548, %v2557
      %v2621 = vmul.f32 %v2552, %v2557
      %v2622 = vadd.f32 %v2234, %v2558
      %v2623 = vadd.f32 %v2235, %v2559
      %v2624 = vadd.f32 %v2236, %v2560
      %v2625 = vadd.f32 %v2237, %v2561
      %v2626 = vadd.f32 %v2238, %v2562
      %v2627 = vadd.f32 %v2239, %v2563
      %v2628 = vadd.f32 %v2240, %v2564
      %v2629 = vadd.f32 %v2241, %v2565
      %v2630 = vadd.f32 %v2242, %v2566
      %v2631 = vadd.f32 %v2243, %v2567
      %v2632 = vadd.f32 %v2244, %v2568
      %v2633 = vadd.f32 %v2245, %v2569
      %v2634 = vadd.f32 %v2246, %v2570
      %v2635 = vadd.f32 %v2247, %v2571
      %v2636 = vadd.f32 %v2248, %v2572
      %v2637 = vadd.f32 %v2249, %v2573
      %v2638 = vadd.f32 %v2250, %v2574
      %v2639 = vadd.f32 %v2251, %v2575
      %v2640 = vadd.f32 %v2252, %v2576
      %v2641 = vadd.f32 %v2253, %v2577
      %v2642 = vadd.f32 %v2254, %v2578
      %v2643 = vadd.f32 %v2255, %v2579
      %v2644 = vadd.f32 %v2256, %v2580
      %v2645 = vadd.f32 %v2257, %v2581
      %v2646 = vadd.f32 %v2258, %v2582
      %v2647 = vadd.f32 %v2259, %v2583
      %v2648 = vadd.f32 %v2260, %v2584
      %v2649 = vadd.f32 %v2261, %v2585
      %v2650 = vadd.f32 %v2262, %v2586
      %v2651 = vadd.f32 %v2263, %v2587
      %v2652 = vadd.f32 %v2264, %v2588
      %v2653 = vadd.f32 %v2265, %v2589
      %v2654 = vadd.f32 %v2266, %v2590
      %v2655 = vadd.f32 %v2267, %v2591
      %v2656 = vadd.f32 %v2268, %v2592
      %v2657 = vadd.f32 %v2269, %v2593
      %v2658 = vadd.f32 %v2270, %v2594
      %v2659 = vadd.f32 %v2271, %v2595
      %v2660 = vadd.f32 %v2272, %v2596
      %v2661 = vadd.f32 %v2273, %v2597
      %v2662 = vadd.f32 %v2274, %v2598
      %v2663 = vadd.f32 %v2275, %v2599
      %v2664 = vadd.f32 %v2276, %v2600
      %v2665 = vadd.f32 %v2277, %v2601
      %v2666 = vadd.f32 %v2278, %v2602
      %v2667 = vadd.f32 %v2279, %v2603
      %v2668 = vadd.f32 %v2280, %v2604
      %v2669 = vadd.f32 %v2281, %v2605
      %v2670 = vadd.f32 %v2282, %v2606
      %v2671 = vadd.f32 %v2283, %v2607
      %v2672 = vadd.f32 %v2284, %v2608
      %v2673 = vadd.f32 %v2285, %v2609
      %v2674 = vadd.f32 %v2286, %v2610
      %v2675 = vadd.f32 %v2287, %v2611
      %v2676 = vadd.f32 %v2288, %v2612
      %v2677 = vadd.f32 %v2289, %v2613
      %v2678 = vadd.f32 %v2290, %v2614
      %v2679 = vadd.f32 %v2291, %v2615
      %v2680 = vadd.f32 %v2292, %v2616
      %v2681 = vadd.f32 %v2293, %v2617
      %v2682 = vadd.f32 %v2294, %v2618
      %v2683 = vadd.f32 %v2295, %v2619
      %v2684 = vadd.f32 %v2296, %v2620
      %v2685 = vadd.f32 %v2297, %v2621
      %2686 = vset.pattern.permute.xlu0 6
      %2687 = vperm.xlu0 %2686, %v229
      %v2688 = vpop.permute.xlu0 %2687
      %2690 = vset.pattern.permute.xlu0 6
      %2691 = vperm.xlu0 %2690, %v230
      %v2692 = vpop.permute.xlu0 %2691
      %2694 = vset.pattern.permute.xlu0 6
      %2695 = vperm.xlu0 %2694, %v231
      %v2696 = vpop.permute.xlu0 %2695
      %2698 = vset.pattern.permute.xlu0 6
      %2699 = vperm.xlu0 %2698, %v232
      %v2700 = vpop.permute.xlu0 %2699
      %2702 = vset.pattern.permute.xlu0 6
      %2703 = vperm.xlu0 %2702, %v233
      %v2704 = vpop.permute.xlu0 %2703
      %2706 = vset.pattern.permute.xlu0 6
      %2707 = vperm.xlu0 %2706, %v234
      %v2708 = vpop.permute.xlu0 %2707
      %2710 = vset.pattern.permute.xlu0 6
      %2711 = vperm.xlu0 %2710, %v235
      %v2712 = vpop.permute.xlu0 %2711
      %2714 = vset.pattern.permute.xlu0 6
      %2715 = vperm.xlu0 %2714, %v236
      %v2716 = vpop.permute.xlu0 %2715
      %2718 = vset.pattern.permute.xlu0 6
      %2719 = vperm.xlu0 %2718, %v237
      %v2720 = vpop.permute.xlu0 %2719
      %2722 = vset.pattern.permute.xlu0 6
      %2723 = vperm.xlu0 %2722, %v238
      %v2724 = vpop.permute.xlu0 %2723
      %2726 = vset.pattern.permute.xlu0 6
      %2727 = vperm.xlu0 %2726, %v239
      %v2728 = vpop.permute.xlu0 %2727
      %2730 = vset.pattern.permute.xlu0 6
      %2731 = vperm.xlu0 %2730, %v240
      %v2732 = vpop.permute.xlu0 %2731
      %2734 = vset.pattern.permute.xlu0 6
      %2735 = vperm.xlu0 %2734, %v241
      %v2736 = vpop.permute.xlu0 %2735
      %2738 = vset.pattern.permute.xlu0 6
      %2739 = vperm.xlu0 %2738, %v242
      %v2740 = vpop.permute.xlu0 %2739
      %2742 = vset.pattern.permute.xlu0 6
      %2743 = vperm.xlu0 %2742, %v243
      %v2744 = vpop.permute.xlu0 %2743
      %2746 = vset.pattern.permute.xlu0 6
      %2747 = vperm.xlu0 %2746, %v244
      %v2748 = vpop.permute.xlu0 %2747
      %2750 = vset.pattern.permute.xlu0 6
      %2751 = vperm.xlu0 %2750, %v245
      %v2752 = vpop.permute.xlu0 %2751
      %2754 = vset.pattern.permute.xlu0 6
      %2755 = vperm.xlu0 %2754, %v246
      %v2756 = vpop.permute.xlu0 %2755
      %2758 = vset.pattern.permute.xlu0 6
      %2759 = vperm.xlu0 %2758, %v247
      %v2760 = vpop.permute.xlu0 %2759
      %2762 = vset.pattern.permute.xlu0 6
      %2763 = vperm.xlu0 %2762, %v248
      %v2764 = vpop.permute.xlu0 %2763
      %2766 = vset.pattern.permute.xlu0 6
      %2767 = vperm.xlu0 %2766, %v249
      %v2768 = vpop.permute.xlu0 %2767
      %2770 = vset.pattern.permute.xlu0 6
      %2771 = vperm.xlu0 %2770, %v250
      %v2772 = vpop.permute.xlu0 %2771
      %2774 = vset.pattern.permute.xlu0 6
      %2775 = vperm.xlu0 %2774, %v251
      %v2776 = vpop.permute.xlu0 %2775
      %2778 = vset.pattern.permute.xlu0 6
      %2779 = vperm.xlu0 %2778, %v252
      %v2780 = vpop.permute.xlu0 %2779
      %2782 = vset.pattern.permute.xlu0 6
      %2783 = vperm.xlu0 %2782, %v253
      %v2784 = vpop.permute.xlu0 %2783
      %2786 = vset.pattern.permute.xlu0 6
      %2787 = vperm.xlu0 %2786, %v254
      %v2788 = vpop.permute.xlu0 %2787
      %2790 = vset.pattern.permute.xlu0 6
      %2791 = vperm.xlu0 %2790, %v255
      %v2792 = vpop.permute.xlu0 %2791
      %2794 = vset.pattern.permute.xlu0 6
      %2795 = vperm.xlu0 %2794, %v256
      %v2796 = vpop.permute.xlu0 %2795
      %2798 = vset.pattern.permute.xlu0 6
      %2799 = vperm.xlu0 %2798, %v257
      %v2800 = vpop.permute.xlu0 %2799
      %2802 = vset.pattern.permute.xlu0 6
      %2803 = vperm.xlu0 %2802, %v258
      %v2804 = vpop.permute.xlu0 %2803
      %2806 = vset.pattern.permute.xlu0 6
      %2807 = vperm.xlu0 %2806, %v259
      %v2808 = vpop.permute.xlu0 %2807
      %2810 = vset.pattern.permute.xlu0 6
      %2811 = vperm.xlu0 %2810, %v260
      %v2812 = vpop.permute.xlu0 %2811
      %2814 = vset.pattern.permute.xlu0 6
      %2815 = vperm.xlu0 %2814, %v261
      %v2816 = vpop.permute.xlu0 %2815
      %2818 = vset.pattern.permute.xlu0 6
      %2819 = vperm.xlu0 %2818, %v262
      %v2820 = vpop.permute.xlu0 %2819
      %2822 = vset.pattern.permute.xlu0 6
      %2823 = vperm.xlu0 %2822, %v263
      %v2824 = vpop.permute.xlu0 %2823
      %2826 = vset.pattern.permute.xlu0 6
      %2827 = vperm.xlu0 %2826, %v264
      %v2828 = vpop.permute.xlu0 %2827
      %2830 = vset.pattern.permute.xlu0 6
      %2831 = vperm.xlu0 %2830, %v265
      %v2832 = vpop.permute.xlu0 %2831
      %2834 = vset.pattern.permute.xlu0 6
      %2835 = vperm.xlu0 %2834, %v266
      %v2836 = vpop.permute.xlu0 %2835
      %2838 = vset.pattern.permute.xlu0 6
      %2839 = vperm.xlu0 %2838, %v267
      %v2840 = vpop.permute.xlu0 %2839
      %2842 = vset.pattern.permute.xlu0 6
      %2843 = vperm.xlu0 %2842, %v268
      %v2844 = vpop.permute.xlu0 %2843
      %2846 = vset.pattern.permute.xlu0 6
      %2847 = vperm.xlu0 %2846, %v269
      %v2848 = vpop.permute.xlu0 %2847
      %2850 = vset.pattern.permute.xlu0 6
      %2851 = vperm.xlu0 %2850, %v270
      %v2852 = vpop.permute.xlu0 %2851
      %2854 = vset.pattern.permute.xlu0 6
      %2855 = vperm.xlu0 %2854, %v271
      %v2856 = vpop.permute.xlu0 %2855
      %2858 = vset.pattern.permute.xlu0 6
      %2859 = vperm.xlu0 %2858, %v272
      %v2860 = vpop.permute.xlu0 %2859
      %2862 = vset.pattern.permute.xlu0 6
      %2863 = vperm.xlu0 %2862, %v273
      %v2864 = vpop.permute.xlu0 %2863
      %2866 = vset.pattern.permute.xlu0 6
      %2867 = vperm.xlu0 %2866, %v274
      %v2868 = vpop.permute.xlu0 %2867
      %2870 = vset.pattern.permute.xlu0 6
      %2871 = vperm.xlu0 %2870, %v275
      %v2872 = vpop.permute.xlu0 %2871
      %2874 = vset.pattern.permute.xlu0 6
      %2875 = vperm.xlu0 %2874, %v276
      %v2876 = vpop.permute.xlu0 %2875
      %2878 = vset.pattern.permute.xlu0 6
      %2879 = vperm.xlu0 %2878, %v277
      %v2880 = vpop.permute.xlu0 %2879
      %2882 = vset.pattern.permute.xlu0 6
      %2883 = vperm.xlu0 %2882, %v278
      %v2884 = vpop.permute.xlu0 %2883
      %2886 = vset.pattern.permute.xlu0 6
      %2887 = vperm.xlu0 %2886, %v279
      %v2888 = vpop.permute.xlu0 %2887
      %2890 = vset.pattern.permute.xlu0 6
      %2891 = vperm.xlu0 %2890, %v280
      %v2892 = vpop.permute.xlu0 %2891
      %2894 = vset.pattern.permute.xlu0 6
      %2895 = vperm.xlu0 %2894, %v281
      %v2896 = vpop.permute.xlu0 %2895
      %2898 = vset.pattern.permute.xlu0 6
      %2899 = vperm.xlu0 %2898, %v282
      %v2900 = vpop.permute.xlu0 %2899
      %2902 = vset.pattern.permute.xlu0 6
      %2903 = vperm.xlu0 %2902, %v283
      %v2904 = vpop.permute.xlu0 %2903
      %2906 = vset.pattern.permute.xlu0 6
      %2907 = vperm.xlu0 %2906, %v284
      %v2908 = vpop.permute.xlu0 %2907
      %2910 = vset.pattern.permute.xlu0 6
      %2911 = vperm.xlu0 %2910, %v285
      %v2912 = vpop.permute.xlu0 %2911
      %2914 = vset.pattern.permute.xlu0 6
      %2915 = vperm.xlu0 %2914, %v286
      %v2916 = vpop.permute.xlu0 %2915
      %2918 = vset.pattern.permute.xlu0 6
      %2919 = vperm.xlu0 %2918, %v287
      %v2920 = vpop.permute.xlu0 %2919
      %2922 = vset.pattern.permute.xlu0 6
      %2923 = vperm.xlu0 %2922, %v288
      %v2924 = vpop.permute.xlu0 %2923
      %2926 = vset.pattern.permute.xlu0 6
      %2927 = vperm.xlu0 %2926, %v289
      %v2928 = vpop.permute.xlu0 %2927
      %2930 = vset.pattern.permute.xlu0 6
      %2931 = vperm.xlu0 %2930, %v290
      %v2932 = vpop.permute.xlu0 %2931
      %2934 = vset.pattern.permute.xlu0 6
      %2935 = vperm.xlu0 %2934, %v291
      %v2936 = vpop.permute.xlu0 %2935
      %2938 = vset.pattern.permute.xlu0 6
      %2939 = vperm.xlu0 %2938, %v292
      %v2940 = vpop.permute.xlu0 %2939
      %v2942 = vlaneseq
      %v2943 = vshrl.u32 %v2942, 7
      %v2944 = vsub.s32 6, %v2943
      %v2945 = vrot.slane %v293, %v2944
      %v2946 = vmul.f32 %v2688, %v2945
      %v2947 = vmul.f32 %v2692, %v2945
      %v2948 = vmul.f32 %v2696, %v2945
      %v2949 = vmul.f32 %v2700, %v2945
      %v2950 = vmul.f32 %v2704, %v2945
      %v2951 = vmul.f32 %v2708, %v2945
      %v2952 = vmul.f32 %v2712, %v2945
      %v2953 = vmul.f32 %v2716, %v2945
      %v2954 = vmul.f32 %v2720, %v2945
      %v2955 = vmul.f32 %v2724, %v2945
      %v2956 = vmul.f32 %v2728, %v2945
      %v2957 = vmul.f32 %v2732, %v2945
      %v2958 = vmul.f32 %v2736, %v2945
      %v2959 = vmul.f32 %v2740, %v2945
      %v2960 = vmul.f32 %v2744, %v2945
      %v2961 = vmul.f32 %v2748, %v2945
      %v2962 = vmul.f32 %v2752, %v2945
      %v2963 = vmul.f32 %v2756, %v2945
      %v2964 = vmul.f32 %v2760, %v2945
      %v2965 = vmul.f32 %v2764, %v2945
      %v2966 = vmul.f32 %v2768, %v2945
      %v2967 = vmul.f32 %v2772, %v2945
      %v2968 = vmul.f32 %v2776, %v2945
      %v2969 = vmul.f32 %v2780, %v2945
      %v2970 = vmul.f32 %v2784, %v2945
      %v2971 = vmul.f32 %v2788, %v2945
      %v2972 = vmul.f32 %v2792, %v2945
      %v2973 = vmul.f32 %v2796, %v2945
      %v2974 = vmul.f32 %v2800, %v2945
      %v2975 = vmul.f32 %v2804, %v2945
      %v2976 = vmul.f32 %v2808, %v2945
      %v2977 = vmul.f32 %v2812, %v2945
      %v2978 = vmul.f32 %v2816, %v2945
      %v2979 = vmul.f32 %v2820, %v2945
      %v2980 = vmul.f32 %v2824, %v2945
      %v2981 = vmul.f32 %v2828, %v2945
      %v2982 = vmul.f32 %v2832, %v2945
      %v2983 = vmul.f32 %v2836, %v2945
      %v2984 = vmul.f32 %v2840, %v2945
      %v2985 = vmul.f32 %v2844, %v2945
      %v2986 = vmul.f32 %v2848, %v2945
      %v2987 = vmul.f32 %v2852, %v2945
      %v2988 = vmul.f32 %v2856, %v2945
      %v2989 = vmul.f32 %v2860, %v2945
      %v2990 = vmul.f32 %v2864, %v2945
      %v2991 = vmul.f32 %v2868, %v2945
      %v2992 = vmul.f32 %v2872, %v2945
      %v2993 = vmul.f32 %v2876, %v2945
      %v2994 = vmul.f32 %v2880, %v2945
      %v2995 = vmul.f32 %v2884, %v2945
      %v2996 = vmul.f32 %v2888, %v2945
      %v2997 = vmul.f32 %v2892, %v2945
      %v2998 = vmul.f32 %v2896, %v2945
      %v2999 = vmul.f32 %v2900, %v2945
      %v3000 = vmul.f32 %v2904, %v2945
      %v3001 = vmul.f32 %v2908, %v2945
      %v3002 = vmul.f32 %v2912, %v2945
      %v3003 = vmul.f32 %v2916, %v2945
      %v3004 = vmul.f32 %v2920, %v2945
      %v3005 = vmul.f32 %v2924, %v2945
      %v3006 = vmul.f32 %v2928, %v2945
      %v3007 = vmul.f32 %v2932, %v2945
      %v3008 = vmul.f32 %v2936, %v2945
      %v3009 = vmul.f32 %v2940, %v2945
      %v3010 = vadd.f32 %v2622, %v2946
      %v3011 = vadd.f32 %v2623, %v2947
      %v3012 = vadd.f32 %v2624, %v2948
      %v3013 = vadd.f32 %v2625, %v2949
      %v3014 = vadd.f32 %v2626, %v2950
      %v3015 = vadd.f32 %v2627, %v2951
      %v3016 = vadd.f32 %v2628, %v2952
      %v3017 = vadd.f32 %v2629, %v2953
      %v3018 = vadd.f32 %v2630, %v2954
      %v3019 = vadd.f32 %v2631, %v2955
      %v3020 = vadd.f32 %v2632, %v2956
      %v3021 = vadd.f32 %v2633, %v2957
      %v3022 = vadd.f32 %v2634, %v2958
      %v3023 = vadd.f32 %v2635, %v2959
      %v3024 = vadd.f32 %v2636, %v2960
      %v3025 = vadd.f32 %v2637, %v2961
      %v3026 = vadd.f32 %v2638, %v2962
      %v3027 = vadd.f32 %v2639, %v2963
      %v3028 = vadd.f32 %v2640, %v2964
      %v3029 = vadd.f32 %v2641, %v2965
      %v3030 = vadd.f32 %v2642, %v2966
      %v3031 = vadd.f32 %v2643, %v2967
      %v3032 = vadd.f32 %v2644, %v2968
      %v3033 = vadd.f32 %v2645, %v2969
      %v3034 = vadd.f32 %v2646, %v2970
      %v3035 = vadd.f32 %v2647, %v2971
      %v3036 = vadd.f32 %v2648, %v2972
      %v3037 = vadd.f32 %v2649, %v2973
      %v3038 = vadd.f32 %v2650, %v2974
      %v3039 = vadd.f32 %v2651, %v2975
      %v3040 = vadd.f32 %v2652, %v2976
      %v3041 = vadd.f32 %v2653, %v2977
      %v3042 = vadd.f32 %v2654, %v2978
      %v3043 = vadd.f32 %v2655, %v2979
      %v3044 = vadd.f32 %v2656, %v2980
      %v3045 = vadd.f32 %v2657, %v2981
      %v3046 = vadd.f32 %v2658, %v2982
      %v3047 = vadd.f32 %v2659, %v2983
      %v3048 = vadd.f32 %v2660, %v2984
      %v3049 = vadd.f32 %v2661, %v2985
      %v3050 = vadd.f32 %v2662, %v2986
      %v3051 = vadd.f32 %v2663, %v2987
      %v3052 = vadd.f32 %v2664, %v2988
      %v3053 = vadd.f32 %v2665, %v2989
      %v3054 = vadd.f32 %v2666, %v2990
      %v3055 = vadd.f32 %v2667, %v2991
      %v3056 = vadd.f32 %v2668, %v2992
      %v3057 = vadd.f32 %v2669, %v2993
      %v3058 = vadd.f32 %v2670, %v2994
      %v3059 = vadd.f32 %v2671, %v2995
      %v3060 = vadd.f32 %v2672, %v2996
      %v3061 = vadd.f32 %v2673, %v2997
      %v3062 = vadd.f32 %v2674, %v2998
      %v3063 = vadd.f32 %v2675, %v2999
      %v3064 = vadd.f32 %v2676, %v3000
      %v3065 = vadd.f32 %v2677, %v3001
      %v3066 = vadd.f32 %v2678, %v3002
      %v3067 = vadd.f32 %v2679, %v3003
      %v3068 = vadd.f32 %v2680, %v3004
      %v3069 = vadd.f32 %v2681, %v3005
      %v3070 = vadd.f32 %v2682, %v3006
      %v3071 = vadd.f32 %v2683, %v3007
      %v3072 = vadd.f32 %v2684, %v3008
      %v3073 = vadd.f32 %v2685, %v3009
      %3074 = vset.pattern.permute.xlu0 7
      %3075 = vperm.xlu0 %3074, %v229
      %v3076 = vpop.permute.xlu0 %3075
      %3078 = vset.pattern.permute.xlu0 7
      %3079 = vperm.xlu0 %3078, %v230
      %v3080 = vpop.permute.xlu0 %3079
      %3082 = vset.pattern.permute.xlu0 7
      %3083 = vperm.xlu0 %3082, %v231
      %v3084 = vpop.permute.xlu0 %3083
      %3086 = vset.pattern.permute.xlu0 7
      %3087 = vperm.xlu0 %3086, %v232
      %v3088 = vpop.permute.xlu0 %3087
      %3090 = vset.pattern.permute.xlu0 7
      %3091 = vperm.xlu0 %3090, %v233
      %v3092 = vpop.permute.xlu0 %3091
      %3094 = vset.pattern.permute.xlu0 7
      %3095 = vperm.xlu0 %3094, %v234
      %v3096 = vpop.permute.xlu0 %3095
      %3098 = vset.pattern.permute.xlu0 7
      %3099 = vperm.xlu0 %3098, %v235
      %v3100 = vpop.permute.xlu0 %3099
      %3102 = vset.pattern.permute.xlu0 7
      %3103 = vperm.xlu0 %3102, %v236
      %v3104 = vpop.permute.xlu0 %3103
      %3106 = vset.pattern.permute.xlu0 7
      %3107 = vperm.xlu0 %3106, %v237
      %v3108 = vpop.permute.xlu0 %3107
      %3110 = vset.pattern.permute.xlu0 7
      %3111 = vperm.xlu0 %3110, %v238
      %v3112 = vpop.permute.xlu0 %3111
      %3114 = vset.pattern.permute.xlu0 7
      %3115 = vperm.xlu0 %3114, %v239
      %v3116 = vpop.permute.xlu0 %3115
      %3118 = vset.pattern.permute.xlu0 7
      %3119 = vperm.xlu0 %3118, %v240
      %v3120 = vpop.permute.xlu0 %3119
      %3122 = vset.pattern.permute.xlu0 7
      %3123 = vperm.xlu0 %3122, %v241
      %v3124 = vpop.permute.xlu0 %3123
      %3126 = vset.pattern.permute.xlu0 7
      %3127 = vperm.xlu0 %3126, %v242
      %v3128 = vpop.permute.xlu0 %3127
      %3130 = vset.pattern.permute.xlu0 7
      %3131 = vperm.xlu0 %3130, %v243
      %v3132 = vpop.permute.xlu0 %3131
      %3134 = vset.pattern.permute.xlu0 7
      %3135 = vperm.xlu0 %3134, %v244
      %v3136 = vpop.permute.xlu0 %3135
      %3138 = vset.pattern.permute.xlu0 7
      %3139 = vperm.xlu0 %3138, %v245
      %v3140 = vpop.permute.xlu0 %3139
      %3142 = vset.pattern.permute.xlu0 7
      %3143 = vperm.xlu0 %3142, %v246
      %v3144 = vpop.permute.xlu0 %3143
      %3146 = vset.pattern.permute.xlu0 7
      %3147 = vperm.xlu0 %3146, %v247
      %v3148 = vpop.permute.xlu0 %3147
      %3150 = vset.pattern.permute.xlu0 7
      %3151 = vperm.xlu0 %3150, %v248
      %v3152 = vpop.permute.xlu0 %3151
      %3154 = vset.pattern.permute.xlu0 7
      %3155 = vperm.xlu0 %3154, %v249
      %v3156 = vpop.permute.xlu0 %3155
      %3158 = vset.pattern.permute.xlu0 7
      %3159 = vperm.xlu0 %3158, %v250
      %v3160 = vpop.permute.xlu0 %3159
      %3162 = vset.pattern.permute.xlu0 7
      %3163 = vperm.xlu0 %3162, %v251
      %v3164 = vpop.permute.xlu0 %3163
      %3166 = vset.pattern.permute.xlu0 7
      %3167 = vperm.xlu0 %3166, %v252
      %v3168 = vpop.permute.xlu0 %3167
      %3170 = vset.pattern.permute.xlu0 7
      %3171 = vperm.xlu0 %3170, %v253
      %v3172 = vpop.permute.xlu0 %3171
      %3174 = vset.pattern.permute.xlu0 7
      %3175 = vperm.xlu0 %3174, %v254
      %v3176 = vpop.permute.xlu0 %3175
      %3178 = vset.pattern.permute.xlu0 7
      %3179 = vperm.xlu0 %3178, %v255
      %v3180 = vpop.permute.xlu0 %3179
      %3182 = vset.pattern.permute.xlu0 7
      %3183 = vperm.xlu0 %3182, %v256
      %v3184 = vpop.permute.xlu0 %3183
      %3186 = vset.pattern.permute.xlu0 7
      %3187 = vperm.xlu0 %3186, %v257
      %v3188 = vpop.permute.xlu0 %3187
      %3190 = vset.pattern.permute.xlu0 7
      %3191 = vperm.xlu0 %3190, %v258
      %v3192 = vpop.permute.xlu0 %3191
      %3194 = vset.pattern.permute.xlu0 7
      %3195 = vperm.xlu0 %3194, %v259
      %v3196 = vpop.permute.xlu0 %3195
      %3198 = vset.pattern.permute.xlu0 7
      %3199 = vperm.xlu0 %3198, %v260
      %v3200 = vpop.permute.xlu0 %3199
      %3202 = vset.pattern.permute.xlu0 7
      %3203 = vperm.xlu0 %3202, %v261
      %v3204 = vpop.permute.xlu0 %3203
      %3206 = vset.pattern.permute.xlu0 7
      %3207 = vperm.xlu0 %3206, %v262
      %v3208 = vpop.permute.xlu0 %3207
      %3210 = vset.pattern.permute.xlu0 7
      %3211 = vperm.xlu0 %3210, %v263
      %v3212 = vpop.permute.xlu0 %3211
      %3214 = vset.pattern.permute.xlu0 7
      %3215 = vperm.xlu0 %3214, %v264
      %v3216 = vpop.permute.xlu0 %3215
      %3218 = vset.pattern.permute.xlu0 7
      %3219 = vperm.xlu0 %3218, %v265
      %v3220 = vpop.permute.xlu0 %3219
      %3222 = vset.pattern.permute.xlu0 7
      %3223 = vperm.xlu0 %3222, %v266
      %v3224 = vpop.permute.xlu0 %3223
      %3226 = vset.pattern.permute.xlu0 7
      %3227 = vperm.xlu0 %3226, %v267
      %v3228 = vpop.permute.xlu0 %3227
      %3230 = vset.pattern.permute.xlu0 7
      %3231 = vperm.xlu0 %3230, %v268
      %v3232 = vpop.permute.xlu0 %3231
      %3234 = vset.pattern.permute.xlu0 7
      %3235 = vperm.xlu0 %3234, %v269
      %v3236 = vpop.permute.xlu0 %3235
      %3238 = vset.pattern.permute.xlu0 7
      %3239 = vperm.xlu0 %3238, %v270
      %v3240 = vpop.permute.xlu0 %3239
      %3242 = vset.pattern.permute.xlu0 7
      %3243 = vperm.xlu0 %3242, %v271
      %v3244 = vpop.permute.xlu0 %3243
      %3246 = vset.pattern.permute.xlu0 7
      %3247 = vperm.xlu0 %3246, %v272
      %v3248 = vpop.permute.xlu0 %3247
      %3250 = vset.pattern.permute.xlu0 7
      %3251 = vperm.xlu0 %3250, %v273
      %v3252 = vpop.permute.xlu0 %3251
      %3254 = vset.pattern.permute.xlu0 7
      %3255 = vperm.xlu0 %3254, %v274
      %v3256 = vpop.permute.xlu0 %3255
      %3258 = vset.pattern.permute.xlu0 7
      %3259 = vperm.xlu0 %3258, %v275
      %v3260 = vpop.permute.xlu0 %3259
      %3262 = vset.pattern.permute.xlu0 7
      %3263 = vperm.xlu0 %3262, %v276
      %v3264 = vpop.permute.xlu0 %3263
      %3266 = vset.pattern.permute.xlu0 7
      %3267 = vperm.xlu0 %3266, %v277
      %v3268 = vpop.permute.xlu0 %3267
      %3270 = vset.pattern.permute.xlu0 7
      %3271 = vperm.xlu0 %3270, %v278
      %v3272 = vpop.permute.xlu0 %3271
      %3274 = vset.pattern.permute.xlu0 7
      %3275 = vperm.xlu0 %3274, %v279
      %v3276 = vpop.permute.xlu0 %3275
      %3278 = vset.pattern.permute.xlu0 7
      %3279 = vperm.xlu0 %3278, %v280
      %v3280 = vpop.permute.xlu0 %3279
      %3282 = vset.pattern.permute.xlu0 7
      %3283 = vperm.xlu0 %3282, %v281
      %v3284 = vpop.permute.xlu0 %3283
      %3286 = vset.pattern.permute.xlu0 7
      %3287 = vperm.xlu0 %3286, %v282
      %v3288 = vpop.permute.xlu0 %3287
      %3290 = vset.pattern.permute.xlu0 7
      %3291 = vperm.xlu0 %3290, %v283
      %v3292 = vpop.permute.xlu0 %3291
      %3294 = vset.pattern.permute.xlu0 7
      %3295 = vperm.xlu0 %3294, %v284
      %v3296 = vpop.permute.xlu0 %3295
      %3298 = vset.pattern.permute.xlu0 7
      %3299 = vperm.xlu0 %3298, %v285
      %v3300 = vpop.permute.xlu0 %3299
      %3302 = vset.pattern.permute.xlu0 7
      %3303 = vperm.xlu0 %3302, %v286
      %v3304 = vpop.permute.xlu0 %3303
      %3306 = vset.pattern.permute.xlu0 7
      %3307 = vperm.xlu0 %3306, %v287
      %v3308 = vpop.permute.xlu0 %3307
      %3310 = vset.pattern.permute.xlu0 7
      %3311 = vperm.xlu0 %3310, %v288
      %v3312 = vpop.permute.xlu0 %3311
      %3314 = vset.pattern.permute.xlu0 7
      %3315 = vperm.xlu0 %3314, %v289
      %v3316 = vpop.permute.xlu0 %3315
      %3318 = vset.pattern.permute.xlu0 7
      %3319 = vperm.xlu0 %3318, %v290
      %v3320 = vpop.permute.xlu0 %3319
      %3322 = vset.pattern.permute.xlu0 7
      %3323 = vperm.xlu0 %3322, %v291
      %v3324 = vpop.permute.xlu0 %3323
      %3326 = vset.pattern.permute.xlu0 7
      %3327 = vperm.xlu0 %3326, %v292
      %v3328 = vpop.permute.xlu0 %3327
      %v3330 = vlaneseq
      %v3331 = vshrl.u32 %v3330, 7
      %v3332 = vsub.s32 7, %v3331
      %v3333 = vrot.slane %v293, %v3332
      %v3334 = vmul.f32 %v3076, %v3333
      %v3335 = vmul.f32 %v3080, %v3333
      %v3336 = vmul.f32 %v3084, %v3333
      %v3337 = vmul.f32 %v3088, %v3333
      %v3338 = vmul.f32 %v3092, %v3333
      %v3339 = vmul.f32 %v3096, %v3333
      %v3340 = vmul.f32 %v3100, %v3333
      %v3341 = vmul.f32 %v3104, %v3333
      %v3342 = vmul.f32 %v3108, %v3333
      %v3343 = vmul.f32 %v3112, %v3333
      %v3344 = vmul.f32 %v3116, %v3333
      %v3345 = vmul.f32 %v3120, %v3333
      %v3346 = vmul.f32 %v3124, %v3333
      %v3347 = vmul.f32 %v3128, %v3333
      %v3348 = vmul.f32 %v3132, %v3333
      %v3349 = vmul.f32 %v3136, %v3333
      %v3350 = vmul.f32 %v3140, %v3333
      %v3351 = vmul.f32 %v3144, %v3333
      %v3352 = vmul.f32 %v3148, %v3333
      %v3353 = vmul.f32 %v3152, %v3333
      %v3354 = vmul.f32 %v3156, %v3333
      %v3355 = vmul.f32 %v3160, %v3333
      %v3356 = vmul.f32 %v3164, %v3333
      %v3357 = vmul.f32 %v3168, %v3333
      %v3358 = vmul.f32 %v3172, %v3333
      %v3359 = vmul.f32 %v3176, %v3333
      %v3360 = vmul.f32 %v3180, %v3333
      %v3361 = vmul.f32 %v3184, %v3333
      %v3362 = vmul.f32 %v3188, %v3333
      %v3363 = vmul.f32 %v3192, %v3333
      %v3364 = vmul.f32 %v3196, %v3333
      %v3365 = vmul.f32 %v3200, %v3333
      %v3366 = vmul.f32 %v3204, %v3333
      %v3367 = vmul.f32 %v3208, %v3333
      %v3368 = vmul.f32 %v3212, %v3333
      %v3369 = vmul.f32 %v3216, %v3333
      %v3370 = vmul.f32 %v3220, %v3333
      %v3371 = vmul.f32 %v3224, %v3333
      %v3372 = vmul.f32 %v3228, %v3333
      %v3373 = vmul.f32 %v3232, %v3333
      %v3374 = vmul.f32 %v3236, %v3333
      %v3375 = vmul.f32 %v3240, %v3333
      %v3376 = vmul.f32 %v3244, %v3333
      %v3377 = vmul.f32 %v3248, %v3333
      %v3378 = vmul.f32 %v3252, %v3333
      %v3379 = vmul.f32 %v3256, %v3333
      %v3380 = vmul.f32 %v3260, %v3333
      %v3381 = vmul.f32 %v3264, %v3333
      %v3382 = vmul.f32 %v3268, %v3333
      %v3383 = vmul.f32 %v3272, %v3333
      %v3384 = vmul.f32 %v3276, %v3333
      %v3385 = vmul.f32 %v3280, %v3333
      %v3386 = vmul.f32 %v3284, %v3333
      %v3387 = vmul.f32 %v3288, %v3333
      %v3388 = vmul.f32 %v3292, %v3333
      %v3389 = vmul.f32 %v3296, %v3333
      %v3390 = vmul.f32 %v3300, %v3333
      %v3391 = vmul.f32 %v3304, %v3333
      %v3392 = vmul.f32 %v3308, %v3333
      %v3393 = vmul.f32 %v3312, %v3333
      %v3394 = vmul.f32 %v3316, %v3333
      %v3395 = vmul.f32 %v3320, %v3333
      %v3396 = vmul.f32 %v3324, %v3333
      %v3397 = vmul.f32 %v3328, %v3333
      %v3398 = vadd.f32 %v3010, %v3334
      %v3399 = vadd.f32 %v3011, %v3335
      %v3400 = vadd.f32 %v3012, %v3336
      %v3401 = vadd.f32 %v3013, %v3337
      %v3402 = vadd.f32 %v3014, %v3338
      %v3403 = vadd.f32 %v3015, %v3339
      %v3404 = vadd.f32 %v3016, %v3340
      %v3405 = vadd.f32 %v3017, %v3341
      %v3406 = vadd.f32 %v3018, %v3342
      %v3407 = vadd.f32 %v3019, %v3343
      %v3408 = vadd.f32 %v3020, %v3344
      %v3409 = vadd.f32 %v3021, %v3345
      %v3410 = vadd.f32 %v3022, %v3346
      %v3411 = vadd.f32 %v3023, %v3347
      %v3412 = vadd.f32 %v3024, %v3348
      %v3413 = vadd.f32 %v3025, %v3349
      %v3414 = vadd.f32 %v3026, %v3350
      %v3415 = vadd.f32 %v3027, %v3351
      %v3416 = vadd.f32 %v3028, %v3352
      %v3417 = vadd.f32 %v3029, %v3353
      %v3418 = vadd.f32 %v3030, %v3354
      %v3419 = vadd.f32 %v3031, %v3355
      %v3420 = vadd.f32 %v3032, %v3356
      %v3421 = vadd.f32 %v3033, %v3357
      %v3422 = vadd.f32 %v3034, %v3358
      %v3423 = vadd.f32 %v3035, %v3359
      %v3424 = vadd.f32 %v3036, %v3360
      %v3425 = vadd.f32 %v3037, %v3361
      %v3426 = vadd.f32 %v3038, %v3362
      %v3427 = vadd.f32 %v3039, %v3363
      %v3428 = vadd.f32 %v3040, %v3364
      %v3429 = vadd.f32 %v3041, %v3365
      %v3430 = vadd.f32 %v3042, %v3366
      %v3431 = vadd.f32 %v3043, %v3367
      %v3432 = vadd.f32 %v3044, %v3368
      %v3433 = vadd.f32 %v3045, %v3369
      %v3434 = vadd.f32 %v3046, %v3370
      %v3435 = vadd.f32 %v3047, %v3371
      %v3436 = vadd.f32 %v3048, %v3372
      %v3437 = vadd.f32 %v3049, %v3373
      %v3438 = vadd.f32 %v3050, %v3374
      %v3439 = vadd.f32 %v3051, %v3375
      %v3440 = vadd.f32 %v3052, %v3376
      %v3441 = vadd.f32 %v3053, %v3377
      %v3442 = vadd.f32 %v3054, %v3378
      %v3443 = vadd.f32 %v3055, %v3379
      %v3444 = vadd.f32 %v3056, %v3380
      %v3445 = vadd.f32 %v3057, %v3381
      %v3446 = vadd.f32 %v3058, %v3382
      %v3447 = vadd.f32 %v3059, %v3383
      %v3448 = vadd.f32 %v3060, %v3384
      %v3449 = vadd.f32 %v3061, %v3385
      %v3450 = vadd.f32 %v3062, %v3386
      %v3451 = vadd.f32 %v3063, %v3387
      %v3452 = vadd.f32 %v3064, %v3388
      %v3453 = vadd.f32 %v3065, %v3389
      %v3454 = vadd.f32 %v3066, %v3390
      %v3455 = vadd.f32 %v3067, %v3391
      %v3456 = vadd.f32 %v3068, %v3392
      %v3457 = vadd.f32 %v3069, %v3393
      %v3458 = vadd.f32 %v3070, %v3394
      %v3459 = vadd.f32 %v3071, %v3395
      %v3460 = vadd.f32 %v3072, %v3396
      %v3461 = vadd.f32 %v3073, %v3397
      %v3462 = vld [vmem:[%s2] sm:$0x1]
      %v3464 = vlaneseq
      %v3465 = vshrl.u32 %v3464, 7
      %v3466 = vsub.s32 0, %v3465
      %v3467 = vrot.slane %v3462, %v3466
      %v3469 = vadd.f32 %v3398, %v3467
      %v3470 = vadd.f32 %v3399, %v3467
      %v3471 = vadd.f32 %v3400, %v3467
      %v3472 = vadd.f32 %v3401, %v3467
      %v3473 = vadd.f32 %v3402, %v3467
      %v3474 = vadd.f32 %v3403, %v3467
      %v3475 = vadd.f32 %v3404, %v3467
      %v3476 = vadd.f32 %v3405, %v3467
      %v3477 = vadd.f32 %v3406, %v3467
      %v3478 = vadd.f32 %v3407, %v3467
      %v3479 = vadd.f32 %v3408, %v3467
      %v3480 = vadd.f32 %v3409, %v3467
      %v3481 = vadd.f32 %v3410, %v3467
      %v3482 = vadd.f32 %v3411, %v3467
      %v3483 = vadd.f32 %v3412, %v3467
      %v3484 = vadd.f32 %v3413, %v3467
      %v3485 = vadd.f32 %v3414, %v3467
      %v3486 = vadd.f32 %v3415, %v3467
      %v3487 = vadd.f32 %v3416, %v3467
      %v3488 = vadd.f32 %v3417, %v3467
      %v3489 = vadd.f32 %v3418, %v3467
      %v3490 = vadd.f32 %v3419, %v3467
      %v3491 = vadd.f32 %v3420, %v3467
      %v3492 = vadd.f32 %v3421, %v3467
      %v3493 = vadd.f32 %v3422, %v3467
      %v3494 = vadd.f32 %v3423, %v3467
      %v3495 = vadd.f32 %v3424, %v3467
      %v3496 = vadd.f32 %v3425, %v3467
      %v3497 = vadd.f32 %v3426, %v3467
      %v3498 = vadd.f32 %v3427, %v3467
      %v3499 = vadd.f32 %v3428, %v3467
      %v3500 = vadd.f32 %v3429, %v3467
      %v3501 = vadd.f32 %v3430, %v3467
      %v3502 = vadd.f32 %v3431, %v3467
      %v3503 = vadd.f32 %v3432, %v3467
      %v3504 = vadd.f32 %v3433, %v3467
      %v3505 = vadd.f32 %v3434, %v3467
      %v3506 = vadd.f32 %v3435, %v3467
      %v3507 = vadd.f32 %v3436, %v3467
      %v3508 = vadd.f32 %v3437, %v3467
      %v3509 = vadd.f32 %v3438, %v3467
      %v3510 = vadd.f32 %v3439, %v3467
      %v3511 = vadd.f32 %v3440, %v3467
      %v3512 = vadd.f32 %v3441, %v3467
      %v3513 = vadd.f32 %v3442, %v3467
      %v3514 = vadd.f32 %v3443, %v3467
      %v3515 = vadd.f32 %v3444, %v3467
      %v3516 = vadd.f32 %v3445, %v3467
      %v3517 = vadd.f32 %v3446, %v3467
      %v3518 = vadd.f32 %v3447, %v3467
      %v3519 = vadd.f32 %v3448, %v3467
      %v3520 = vadd.f32 %v3449, %v3467
      %v3521 = vadd.f32 %v3450, %v3467
      %v3522 = vadd.f32 %v3451, %v3467
      %v3523 = vadd.f32 %v3452, %v3467
      %v3524 = vadd.f32 %v3453, %v3467
      %v3525 = vadd.f32 %v3454, %v3467
      %v3526 = vadd.f32 %v3455, %v3467
      %v3527 = vadd.f32 %v3456, %v3467
      %v3528 = vadd.f32 %v3457, %v3467
      %v3529 = vadd.f32 %v3458, %v3467
      %v3530 = vadd.f32 %v3459, %v3467
      %v3531 = vadd.f32 %v3460, %v3467
      %v3532 = vadd.f32 %v3461, %v3467
      %v3533 = vtanh.pop %v3469
      %v3534 = vtanh.pop %v3470
      %v3535 = vtanh.pop %v3471
      %v3536 = vtanh.pop %v3472
      %v3537 = vtanh.pop %v3473
      %v3538 = vtanh.pop %v3474
      %v3539 = vtanh.pop %v3475
      %v3540 = vtanh.pop %v3476
      %v3541 = vtanh.pop %v3477
      %v3542 = vtanh.pop %v3478
      %v3543 = vtanh.pop %v3479
      %v3544 = vtanh.pop %v3480
      %v3545 = vtanh.pop %v3481
      %v3546 = vtanh.pop %v3482
      %v3547 = vtanh.pop %v3483
      %v3548 = vtanh.pop %v3484
      %v3549 = vtanh.pop %v3485
      %v3550 = vtanh.pop %v3486
      %v3551 = vtanh.pop %v3487
      %v3552 = vtanh.pop %v3488
      %v3553 = vtanh.pop %v3489
      %v3554 = vtanh.pop %v3490
      %v3555 = vtanh.pop %v3491
      %v3556 = vtanh.pop %v3492
      %v3557 = vtanh.pop %v3493
      %v3558 = vtanh.pop %v3494
      %v3559 = vtanh.pop %v3495
      %v3560 = vtanh.pop %v3496
      %v3561 = vtanh.pop %v3497
      %v3562 = vtanh.pop %v3498
      %v3563 = vtanh.pop %v3499
      %v3564 = vtanh.pop %v3500
      %v3565 = vtanh.pop %v3501
      %v3566 = vtanh.pop %v3502
      %v3567 = vtanh.pop %v3503
      %v3568 = vtanh.pop %v3504
      %v3569 = vtanh.pop %v3505
      %v3570 = vtanh.pop %v3506
      %v3571 = vtanh.pop %v3507
      %v3572 = vtanh.pop %v3508
      %v3573 = vtanh.pop %v3509
      %v3574 = vtanh.pop %v3510
      %v3575 = vtanh.pop %v3511
      %v3576 = vtanh.pop %v3512
      %v3577 = vtanh.pop %v3513
      %v3578 = vtanh.pop %v3514
      %v3579 = vtanh.pop %v3515
      %v3580 = vtanh.pop %v3516
      %v3581 = vtanh.pop %v3517
      %v3582 = vtanh.pop %v3518
      %v3583 = vtanh.pop %v3519
      %v3584 = vtanh.pop %v3520
      %v3585 = vtanh.pop %v3521
      %v3586 = vtanh.pop %v3522
      %v3587 = vtanh.pop %v3523
      %v3588 = vtanh.pop %v3524
      %v3589 = vtanh.pop %v3525
      %v3590 = vtanh.pop %v3526
      %v3591 = vtanh.pop %v3527
      %v3592 = vtanh.pop %v3528
      %v3593 = vtanh.pop %v3529
      %v3594 = vtanh.pop %v3530
      %v3595 = vtanh.pop %v3531
      %v3596 = vtanh.pop %v3532
      %v3597 = vpack.c.bf16 %v3534, %v3533
      %v3598 = vpack.c.bf16 %v3536, %v3535
      %v3599 = vpack.c.bf16 %v3538, %v3537
      %v3600 = vpack.c.bf16 %v3540, %v3539
      %v3601 = vpack.c.bf16 %v3542, %v3541
      %v3602 = vpack.c.bf16 %v3544, %v3543
      %v3603 = vpack.c.bf16 %v3546, %v3545
      %v3604 = vpack.c.bf16 %v3548, %v3547
      %v3605 = vpack.c.bf16 %v3550, %v3549
      %v3606 = vpack.c.bf16 %v3552, %v3551
      %v3607 = vpack.c.bf16 %v3554, %v3553
      %v3608 = vpack.c.bf16 %v3556, %v3555
      %v3609 = vpack.c.bf16 %v3558, %v3557
      %v3610 = vpack.c.bf16 %v3560, %v3559
      %v3611 = vpack.c.bf16 %v3562, %v3561
      %v3612 = vpack.c.bf16 %v3564, %v3563
      %v3613 = vpack.c.bf16 %v3566, %v3565
      %v3614 = vpack.c.bf16 %v3568, %v3567
      %v3615 = vpack.c.bf16 %v3570, %v3569
      %v3616 = vpack.c.bf16 %v3572, %v3571
      %v3617 = vpack.c.bf16 %v3574, %v3573
      %v3618 = vpack.c.bf16 %v3576, %v3575
      %v3619 = vpack.c.bf16 %v3578, %v3577
      %v3620 = vpack.c.bf16 %v3580, %v3579
      %v3621 = vpack.c.bf16 %v3582, %v3581
      %v3622 = vpack.c.bf16 %v3584, %v3583
      %v3623 = vpack.c.bf16 %v3586, %v3585
      %v3624 = vpack.c.bf16 %v3588, %v3587
      %v3625 = vpack.c.bf16 %v3590, %v3589
      %v3626 = vpack.c.bf16 %v3592, %v3591
      %v3627 = vpack.c.bf16 %v3594, %v3593
      %v3628 = vpack.c.bf16 %v3596, %v3595
      %v3629 = vld [vmem:[%s3] sm:$0xf]
      %v3630 = vld [vmem:[%s3 + $0x4] sm:$0xf]
      %v3631 = vld [vmem:[%s3 + $0x8] sm:$0xf]
      %v3632 = vld [vmem:[%s3 + $0xc] sm:$0xf]
      %v3633 = vld [vmem:[%s3 + $0x10] sm:$0xf]
      %v3634 = vld [vmem:[%s3 + $0x14] sm:$0xf]
      %v3635 = vld [vmem:[%s3 + $0x18] sm:$0xf]
      %v3636 = vld [vmem:[%s3 + $0x1c] sm:$0xf]
      %v3637 = vld [vmem:[%s3 + $0x20] sm:$0xf]
      %v3638 = vld [vmem:[%s3 + $0x24] sm:$0xf]
      %v3639 = vld [vmem:[%s3 + $0x28] sm:$0xf]
      %v3640 = vld [vmem:[%s3 + $0x2c] sm:$0xf]
      %v3641 = vld [vmem:[%s3 + $0x30] sm:$0xf]
      %v3642 = vld [vmem:[%s3 + $0x34] sm:$0xf]
      %v3643 = vld [vmem:[%s3 + $0x38] sm:$0xf]
      %v3644 = vld [vmem:[%s3 + $0x3c] sm:$0xf]
      %v3645 = vld [vmem:[%s4] sm:$0x1]
      %v3647 = vlaneseq
      %v3648 = vshrl.u32 %v3647, 7
      %v3649 = vsub.s32 0, %v3648
      %v3650 = vrot.slane %v3645, %v3649
      %v3668 = vunpack.c.l.b16 %v3629
      %v3669 = vunpack.c.l.b16 %v3630
      %v3670 = vunpack.c.l.b16 %v3631
      %v3671 = vunpack.c.l.b16 %v3632
      %v3672 = vunpack.c.l.b16 %v3633
      %v3673 = vunpack.c.l.b16 %v3634
      %v3674 = vunpack.c.l.b16 %v3635
      %v3675 = vunpack.c.l.b16 %v3636
      %v3676 = vunpack.c.l.b16 %v3637
      %v3677 = vunpack.c.l.b16 %v3638
      %v3678 = vunpack.c.l.b16 %v3639
      %v3679 = vunpack.c.l.b16 %v3640
      %v3680 = vunpack.c.l.b16 %v3641
      %v3681 = vunpack.c.l.b16 %v3642
      %v3682 = vunpack.c.l.b16 %v3643
      %v3683 = vunpack.c.l.b16 %v3644
      %v3684 = vpack.c.b16 %v3669, %v3668
      %v3685 = vpack.c.b16 %v3671, %v3670
      %v3686 = vpack.c.b16 %v3673, %v3672
      %v3687 = vpack.c.b16 %v3675, %v3674
      %v3688 = vpack.c.b16 %v3677, %v3676
      %v3689 = vpack.c.b16 %v3679, %v3678
      %v3690 = vpack.c.b16 %v3681, %v3680
      %v3691 = vpack.c.b16 %v3683, %v3682
      %3700 = vmatprep.subr.bf16.mxu0 0
      %3701 = vmatpush1.bf16.msra.mxu0 %v3684
      %3702 = vmatprep.subr.bf16.mxu0 0
      %3703 = vmatpush1.bf16.msra.mxu0 %v3685
      %3704 = vmatprep.subr.bf16.mxu0 0
      %3705 = vmatpush1.bf16.msra.mxu0 %v3686
      %3706 = vmatprep.subr.bf16.mxu0 0
      %3707 = vmatpush1.bf16.msra.mxu0 %v3687
      %3708 = vmatprep.subr.bf16.mxu0 0
      %3709 = vmatpush1.bf16.msra.mxu0 %v3688
      %3710 = vmatprep.subr.bf16.mxu0 0
      %3711 = vmatpush1.bf16.msra.mxu0 %v3689
      %3712 = vmatprep.subr.bf16.mxu0 0
      %3713 = vmatpush1.bf16.msra.mxu0 %v3690
      %3714 = vmatprep.subr.bf16.mxu0 0
      %3715 = vmatpush1.bf16.msra.mxu0 %v3691
      %3716 = vmatprep.subr.bf16.mxu0 0
      %3717 = vmatpush1.bf16.msra.mxu0 0
      %3718 = vmatprep.subr.bf16.mxu0 0
      %3719 = vmatpush1.bf16.msra.mxu0 0
      %3720 = vmatprep.subr.bf16.mxu0 0
      %3721 = vmatpush1.bf16.msra.mxu0 0
      %3722 = vmatprep.subr.bf16.mxu0 0
      %3723 = vmatpush1.bf16.msra.mxu0 0
      %3724 = vmatprep.subr.bf16.mxu0 0
      %3725 = vmatpush1.bf16.msra.mxu0 0
      %3726 = vmatprep.subr.bf16.mxu0 0
      %3727 = vmatpush1.bf16.msra.mxu0 0
      %3728 = vmatprep.subr.bf16.mxu0 0
      %3729 = vmatpush1.bf16.msra.mxu0 0
      %3730 = vmatprep.subr.bf16.mxu0 0
      %3731 = vmatpush1.bf16.msra.mxu0 0
      %3732 = vmatprep.mubr.bf16.mxu0 0
      %3733 = vmatmul.mubr.bf16.gmra.mrb[0].mxu0 %v3597
      %v3734 = vpop.f32.mrb[0].mxu0
      %v3735 = vadd.f32 %v3650, %v3734
      %v3736 = vpop.f32.mrb[0].mxu0
      %v3737 = vpop.f32.mrb[0].mxu0
      %v3738 = vadd.f32 %v3650, %v3737
      %v3739 = vpop.f32.mrb[0].mxu0
      %3740 = vmatprep.mubr.bf16.mxu0 0
      %3741 = vmatmul.mubr.bf16.gmra.mrb[0].mxu0 %v3598
      %v3742 = vpop.f32.mrb[0].mxu0
      %v3743 = vadd.f32 %v3650, %v3742
      %v3744 = vpop.f32.mrb[0].mxu0
      %v3745 = vpop.f32.mrb[0].mxu0
      %v3746 = vadd.f32 %v3650, %v3745
      %v3747 = vpop.f32.mrb[0].mxu0
      %3748 = vmatprep.mubr.bf16.mxu0 0
      %3749 = vmatmul.mubr.bf16.gmra.mrb[0].mxu0 %v3599
      %v3750 = vpop.f32.mrb[0].mxu0
      %v3751 = vadd.f32 %v3650, %v3750
      %v3752 = vpop.f32.mrb[0].mxu0
      %v3753 = vpop.f32.mrb[0].mxu0
      %v3754 = vadd.f32 %v3650, %v3753
      %v3755 = vpop.f32.mrb[0].mxu0
      %3756 = vmatprep.mubr.bf16.mxu0 0
      %3757 = vmatmul.mubr.bf16.gmra.mrb[0].mxu0 %v3600
      %v3758 = vpop.f32.mrb[0].mxu0
      %v3759 = vadd.f32 %v3650, %v3758
      %v3760 = vpop.f32.mrb[0].mxu0
      %v3761 = vpop.f32.mrb[0].mxu0
      %v3762 = vadd.f32 %v3650, %v3761
      %v3763 = vpop.f32.mrb[0].mxu0
      %3764 = vmatprep.mubr.bf16.mxu0 0
      %3765 = vmatmul.mubr.bf16.gmra.mrb[0].mxu0 %v3601
      %v3766 = vpop.f32.mrb[0].mxu0
      %v3767 = vadd.f32 %v3650, %v3766
      %v3768 = vpop.f32.mrb[0].mxu0
      %v3769 = vpop.f32.mrb[0].mxu0
      %v3770 = vadd.f32 %v3650, %v3769
      %v3771 = vpop.f32.mrb[0].mxu0
      %3772 = vmatprep.mubr.bf16.mxu0 0
      %3773 = vmatmul.mubr.bf16.gmra.mrb[0].mxu0 %v3602
      %v3774 = vpop.f32.mrb[0].mxu0
      %v3775 = vadd.f32 %v3650, %v3774
      %v3776 = vpop.f32.mrb[0].mxu0
      %v3777 = vpop.f32.mrb[0].mxu0
      %v3778 = vadd.f32 %v3650, %v3777
      %v3779 = vpop.f32.mrb[0].mxu0
      %3780 = vmatprep.mubr.bf16.mxu0 0
      %3781 = vmatmul.mubr.bf16.gmra.mrb[0].mxu0 %v3603
      %v3782 = vpop.f32.mrb[0].mxu0
      %v3783 = vadd.f32 %v3650, %v3782
      %v3784 = vpop.f32.mrb[0].mxu0
      %v3785 = vpop.f32.mrb[0].mxu0
      %v3786 = vadd.f32 %v3650, %v3785
      %v3787 = vpop.f32.mrb[0].mxu0
      %3788 = vmatprep.mubr.bf16.mxu0 0
      %3789 = vmatmul.mubr.bf16.gmra.mrb[0].mxu0 %v3604
      %v3790 = vpop.f32.mrb[0].mxu0
      %v3791 = vadd.f32 %v3650, %v3790
      %v3792 = vpop.f32.mrb[0].mxu0
      %v3793 = vpop.f32.mrb[0].mxu0
      %v3794 = vadd.f32 %v3650, %v3793
      %v3795 = vpop.f32.mrb[0].mxu0
      %3796 = vmatprep.mubr.bf16.mxu0 0
      %3797 = vmatmul.mubr.bf16.gmra.mrb[0].mxu0 %v3605
      %v3798 = vpop.f32.mrb[0].mxu0
      %v3799 = vadd.f32 %v3650, %v3798
      %v3800 = vpop.f32.mrb[0].mxu0
      %v3801 = vpop.f32.mrb[0].mxu0
      %v3802 = vadd.f32 %v3650, %v3801
      %v3803 = vpop.f32.mrb[0].mxu0
      %3804 = vmatprep.mubr.bf16.mxu0 0
      %3805 = vmatmul.mubr.bf16.gmra.mrb[0].mxu0 %v3606
      %v3806 = vpop.f32.mrb[0].mxu0
      %v3807 = vadd.f32 %v3650, %v3806
      %v3808 = vpop.f32.mrb[0].mxu0
      %v3809 = vpop.f32.mrb[0].mxu0
      %v3810 = vadd.f32 %v3650, %v3809
      %v3811 = vpop.f32.mrb[0].mxu0
      %3812 = vmatprep.mubr.bf16.mxu0 0
      %3813 = vmatmul.mubr.bf16.gmra.mrb[0].mxu0 %v3607
      %v3814 = vpop.f32.mrb[0].mxu0
      %v3815 = vadd.f32 %v3650, %v3814
      %v3816 = vpop.f32.mrb[0].mxu0
      %v3817 = vpop.f32.mrb[0].mxu0
      %v3818 = vadd.f32 %v3650, %v3817
      %v3819 = vpop.f32.mrb[0].mxu0
      %3820 = vmatprep.mubr.bf16.mxu0 0
      %3821 = vmatmul.mubr.bf16.gmra.mrb[0].mxu0 %v3608
      %v3822 = vpop.f32.mrb[0].mxu0
      %v3823 = vadd.f32 %v3650, %v3822
      %v3824 = vpop.f32.mrb[0].mxu0
      %v3825 = vpop.f32.mrb[0].mxu0
      %v3826 = vadd.f32 %v3650, %v3825
      %v3827 = vpop.f32.mrb[0].mxu0
      %3828 = vmatprep.mubr.bf16.mxu0 0
      %3829 = vmatmul.mubr.bf16.gmra.mrb[0].mxu0 %v3609
      %v3830 = vpop.f32.mrb[0].mxu0
      %v3831 = vadd.f32 %v3650, %v3830
      %v3832 = vpop.f32.mrb[0].mxu0
      %v3833 = vpop.f32.mrb[0].mxu0
      %v3834 = vadd.f32 %v3650, %v3833
      %v3835 = vpop.f32.mrb[0].mxu0
      %3836 = vmatprep.mubr.bf16.mxu0 0
      %3837 = vmatmul.mubr.bf16.gmra.mrb[0].mxu0 %v3610
      %v3838 = vpop.f32.mrb[0].mxu0
      %v3839 = vadd.f32 %v3650, %v3838
      %v3840 = vpop.f32.mrb[0].mxu0
      %v3841 = vpop.f32.mrb[0].mxu0
      %v3842 = vadd.f32 %v3650, %v3841
      %v3843 = vpop.f32.mrb[0].mxu0
      %3844 = vmatprep.mubr.bf16.mxu0 0
      %3845 = vmatmul.mubr.bf16.gmra.mrb[0].mxu0 %v3611
      %v3846 = vpop.f32.mrb[0].mxu0
      %v3847 = vadd.f32 %v3650, %v3846
      %v3848 = vpop.f32.mrb[0].mxu0
      %v3849 = vpop.f32.mrb[0].mxu0
      %v3850 = vadd.f32 %v3650, %v3849
      %v3851 = vpop.f32.mrb[0].mxu0
      %3852 = vmatprep.mubr.bf16.mxu0 0
      %3853 = vmatmul.mubr.bf16.gmra.mrb[0].mxu0 %v3612
      %v3854 = vpop.f32.mrb[0].mxu0
      %v3855 = vadd.f32 %v3650, %v3854
      %v3856 = vpop.f32.mrb[0].mxu0
      %v3857 = vpop.f32.mrb[0].mxu0
      %v3858 = vadd.f32 %v3650, %v3857
      %v3859 = vpop.f32.mrb[0].mxu0
      %3860 = vmatprep.mubr.bf16.mxu0 0
      %3861 = vmatmul.mubr.bf16.gmra.mrb[0].mxu0 %v3613
      %v3862 = vpop.f32.mrb[0].mxu0
      %v3863 = vadd.f32 %v3650, %v3862
      %v3864 = vpop.f32.mrb[0].mxu0
      %v3865 = vpop.f32.mrb[0].mxu0
      %v3866 = vadd.f32 %v3650, %v3865
      %v3867 = vpop.f32.mrb[0].mxu0
      %3868 = vmatprep.mubr.bf16.mxu0 0
      %3869 = vmatmul.mubr.bf16.gmra.mrb[0].mxu0 %v3614
      %v3870 = vpop.f32.mrb[0].mxu0
      %v3871 = vadd.f32 %v3650, %v3870
      %v3872 = vpop.f32.mrb[0].mxu0
      %v3873 = vpop.f32.mrb[0].mxu0
      %v3874 = vadd.f32 %v3650, %v3873
      %v3875 = vpop.f32.mrb[0].mxu0
      %3876 = vmatprep.mubr.bf16.mxu0 0
      %3877 = vmatmul.mubr.bf16.gmra.mrb[0].mxu0 %v3615
      %v3878 = vpop.f32.mrb[0].mxu0
      %v3879 = vadd.f32 %v3650, %v3878
      %v3880 = vpop.f32.mrb[0].mxu0
      %v3881 = vpop.f32.mrb[0].mxu0
      %v3882 = vadd.f32 %v3650, %v3881
      %v3883 = vpop.f32.mrb[0].mxu0
      %3884 = vmatprep.mubr.bf16.mxu0 0
      %3885 = vmatmul.mubr.bf16.gmra.mrb[0].mxu0 %v3616
      %v3886 = vpop.f32.mrb[0].mxu0
      %v3887 = vadd.f32 %v3650, %v3886
      %v3888 = vpop.f32.mrb[0].mxu0
      %v3889 = vpop.f32.mrb[0].mxu0
      %v3890 = vadd.f32 %v3650, %v3889
      %v3891 = vpop.f32.mrb[0].mxu0
      %3892 = vmatprep.mubr.bf16.mxu0 0
      %3893 = vmatmul.mubr.bf16.gmra.mrb[0].mxu0 %v3617
      %v3894 = vpop.f32.mrb[0].mxu0
      %v3895 = vadd.f32 %v3650, %v3894
      %v3896 = vpop.f32.mrb[0].mxu0
      %v3897 = vpop.f32.mrb[0].mxu0
      %v3898 = vadd.f32 %v3650, %v3897
      %v3899 = vpop.f32.mrb[0].mxu0
      %3900 = vmatprep.mubr.bf16.mxu0 0
      %3901 = vmatmul.mubr.bf16.gmra.mrb[0].mxu0 %v3618
      %v3902 = vpop.f32.mrb[0].mxu0
      %v3903 = vadd.f32 %v3650, %v3902
      %v3904 = vpop.f32.mrb[0].mxu0
      %v3905 = vpop.f32.mrb[0].mxu0
      %v3906 = vadd.f32 %v3650, %v3905
      %v3907 = vpop.f32.mrb[0].mxu0
      %3908 = vmatprep.mubr.bf16.mxu0 0
      %3909 = vmatmul.mubr.bf16.gmra.mrb[0].mxu0 %v3619
      %v3910 = vpop.f32.mrb[0].mxu0
      %v3911 = vadd.f32 %v3650, %v3910
      %v3912 = vpop.f32.mrb[0].mxu0
      %v3913 = vpop.f32.mrb[0].mxu0
      %v3914 = vadd.f32 %v3650, %v3913
      %v3915 = vpop.f32.mrb[0].mxu0
      %3916 = vmatprep.mubr.bf16.mxu0 0
      %3917 = vmatmul.mubr.bf16.gmra.mrb[0].mxu0 %v3620
      %v3918 = vpop.f32.mrb[0].mxu0
      %v3919 = vadd.f32 %v3650, %v3918
      %v3920 = vpop.f32.mrb[0].mxu0
      %v3921 = vpop.f32.mrb[0].mxu0
      %v3922 = vadd.f32 %v3650, %v3921
      %v3923 = vpop.f32.mrb[0].mxu0
      %3924 = vmatprep.mubr.bf16.mxu0 0
      %3925 = vmatmul.mubr.bf16.gmra.mrb[0].mxu0 %v3621
      %v3926 = vpop.f32.mrb[0].mxu0
      %v3927 = vadd.f32 %v3650, %v3926
      %v3928 = vpop.f32.mrb[0].mxu0
      %v3929 = vpop.f32.mrb[0].mxu0
      %v3930 = vadd.f32 %v3650, %v3929
      %v3931 = vpop.f32.mrb[0].mxu0
      %3932 = vmatprep.mubr.bf16.mxu0 0
      %3933 = vmatmul.mubr.bf16.gmra.mrb[0].mxu0 %v3622
      %v3934 = vpop.f32.mrb[0].mxu0
      %v3935 = vadd.f32 %v3650, %v3934
      %v3936 = vpop.f32.mrb[0].mxu0
      %v3937 = vpop.f32.mrb[0].mxu0
      %v3938 = vadd.f32 %v3650, %v3937
      %v3939 = vpop.f32.mrb[0].mxu0
      %3940 = vmatprep.mubr.bf16.mxu0 0
      %3941 = vmatmul.mubr.bf16.gmra.mrb[0].mxu0 %v3623
      %v3942 = vpop.f32.mrb[0].mxu0
      %v3943 = vadd.f32 %v3650, %v3942
      %v3944 = vpop.f32.mrb[0].mxu0
      %v3945 = vpop.f32.mrb[0].mxu0
      %v3946 = vadd.f32 %v3650, %v3945
      %v3947 = vpop.f32.mrb[0].mxu0
      %3948 = vmatprep.mubr.bf16.mxu0 0
      %3949 = vmatmul.mubr.bf16.gmra.mrb[0].mxu0 %v3624
      %v3950 = vpop.f32.mrb[0].mxu0
      %v3951 = vadd.f32 %v3650, %v3950
      %v3952 = vpop.f32.mrb[0].mxu0
      %v3953 = vpop.f32.mrb[0].mxu0
      %v3954 = vadd.f32 %v3650, %v3953
      %v3955 = vpop.f32.mrb[0].mxu0
      %3956 = vmatprep.mubr.bf16.mxu0 0
      %3957 = vmatmul.mubr.bf16.gmra.mrb[0].mxu0 %v3625
      %v3958 = vpop.f32.mrb[0].mxu0
      %v3959 = vadd.f32 %v3650, %v3958
      %v3960 = vpop.f32.mrb[0].mxu0
      %v3961 = vpop.f32.mrb[0].mxu0
      %v3962 = vadd.f32 %v3650, %v3961
      %v3963 = vpop.f32.mrb[0].mxu0
      %3964 = vmatprep.mubr.bf16.mxu0 0
      %3965 = vmatmul.mubr.bf16.gmra.mrb[0].mxu0 %v3626
      %v3966 = vpop.f32.mrb[0].mxu0
      %v3967 = vadd.f32 %v3650, %v3966
      %v3968 = vpop.f32.mrb[0].mxu0
      %v3969 = vpop.f32.mrb[0].mxu0
      %v3970 = vadd.f32 %v3650, %v3969
      %v3971 = vpop.f32.mrb[0].mxu0
      %3972 = vmatprep.mubr.bf16.mxu0 0
      %3973 = vmatmul.mubr.bf16.gmra.mrb[0].mxu0 %v3627
      %v3974 = vpop.f32.mrb[0].mxu0
      %v3975 = vadd.f32 %v3650, %v3974
      %v3976 = vpop.f32.mrb[0].mxu0
      %v3977 = vpop.f32.mrb[0].mxu0
      %v3978 = vadd.f32 %v3650, %v3977
      %v3979 = vpop.f32.mrb[0].mxu0
      %3980 = vmatprep.mubr.bf16.mxu0 0
      %3981 = vmatmul.mubr.bf16.gmra.mrb[0].mxu0 %v3628
      %v3982 = vpop.f32.mrb[0].mxu0
      %v3983 = vadd.f32 %v3650, %v3982
      %v3984 = vpop.f32.mrb[0].mxu0
      %v3985 = vpop.f32.mrb[0].mxu0
      %v3986 = vadd.f32 %v3650, %v3985
      %v3987 = vpop.f32.mrb[0].mxu0
      %3988 = vdwg.mxu0
      %v3989 = vsub.f32 0.0, %v3735
      %v3990 = vsub.f32 0.0, %v3738
      %v3991 = vsub.f32 0.0, %v3743
      %v3992 = vsub.f32 0.0, %v3746
      %v3993 = vsub.f32 0.0, %v3751
      %v3994 = vsub.f32 0.0, %v3754
      %v3995 = vsub.f32 0.0, %v3759
      %v3996 = vsub.f32 0.0, %v3762
      %v3997 = vsub.f32 0.0, %v3767
      %v3998 = vsub.f32 0.0, %v3770
      %v3999 = vsub.f32 0.0, %v3775
      %v4000 = vsub.f32 0.0, %v3778
      %v4001 = vsub.f32 0.0, %v3783
      %v4002 = vsub.f32 0.0, %v3786
      %v4003 = vsub.f32 0.0, %v3791
      %v4004 = vsub.f32 0.0, %v3794
      %v4005 = vsub.f32 0.0, %v3799
      %v4006 = vsub.f32 0.0, %v3802
      %v4007 = vsub.f32 0.0, %v3807
      %v4008 = vsub.f32 0.0, %v3810
      %v4009 = vsub.f32 0.0, %v3815
      %v4010 = vsub.f32 0.0, %v3818
      %v4011 = vsub.f32 0.0, %v3823
      %v4012 = vsub.f32 0.0, %v3826
      %v4013 = vsub.f32 0.0, %v3831
      %v4014 = vsub.f32 0.0, %v3834
      %v4015 = vsub.f32 0.0, %v3839
      %v4016 = vsub.f32 0.0, %v3842
      %v4017 = vsub.f32 0.0, %v3847
      %v4018 = vsub.f32 0.0, %v3850
      %v4019 = vsub.f32 0.0, %v3855
      %v4020 = vsub.f32 0.0, %v3858
      %v4021 = vsub.f32 0.0, %v3863
      %v4022 = vsub.f32 0.0, %v3866
      %v4023 = vsub.f32 0.0, %v3871
      %v4024 = vsub.f32 0.0, %v3874
      %v4025 = vsub.f32 0.0, %v3879
      %v4026 = vsub.f32 0.0, %v3882
      %v4027 = vsub.f32 0.0, %v3887
      %v4028 = vsub.f32 0.0, %v3890
      %v4029 = vsub.f32 0.0, %v3895
      %v4030 = vsub.f32 0.0, %v3898
      %v4031 = vsub.f32 0.0, %v3903
      %v4032 = vsub.f32 0.0, %v3906
      %v4033 = vsub.f32 0.0, %v3911
      %v4034 = vsub.f32 0.0, %v3914
      %v4035 = vsub.f32 0.0, %v3919
      %v4036 = vsub.f32 0.0, %v3922
      %v4037 = vsub.f32 0.0, %v3927
      %v4038 = vsub.f32 0.0, %v3930
      %v4039 = vsub.f32 0.0, %v3935
      %v4040 = vsub.f32 0.0, %v3938
      %v4041 = vsub.f32 0.0, %v3943
      %v4042 = vsub.f32 0.0, %v3946
      %v4043 = vsub.f32 0.0, %v3951
      %v4044 = vsub.f32 0.0, %v3954
      %v4045 = vsub.f32 0.0, %v3959
      %v4046 = vsub.f32 0.0, %v3962
      %v4047 = vsub.f32 0.0, %v3967
      %v4048 = vsub.f32 0.0, %v3970
      %v4049 = vsub.f32 0.0, %v3975
      %v4050 = vsub.f32 0.0, %v3978
      %v4051 = vsub.f32 0.0, %v3983
      %v4052 = vsub.f32 0.0, %v3986
      %v4053 = vmul.f32 %v3989, 1.442695
      %v4054 = vpow.pop %v4053
      %v4055 = vmul.f32 %v3990, 1.442695
      %v4056 = vpow.pop %v4055
      %v4057 = vmul.f32 %v3991, 1.442695
      %v4058 = vpow.pop %v4057
      %v4059 = vmul.f32 %v3992, 1.442695
      %v4060 = vpow.pop %v4059
      %v4061 = vmul.f32 %v3993, 1.442695
      %v4062 = vpow.pop %v4061
      %v4063 = vmul.f32 %v3994, 1.442695
      %v4064 = vpow.pop %v4063
      %v4065 = vmul.f32 %v3995, 1.442695
      %v4066 = vpow.pop %v4065
      %v4067 = vmul.f32 %v3996, 1.442695
      %v4068 = vpow.pop %v4067
      %v4069 = vmul.f32 %v3997, 1.442695
      %v4070 = vpow.pop %v4069
      %v4071 = vmul.f32 %v3998, 1.442695
      %v4072 = vpow.pop %v4071
      %v4073 = vmul.f32 %v3999, 1.442695
      %v4074 = vpow.pop %v4073
      %v4075 = vmul.f32 %v4000, 1.442695
      %v4076 = vpow.pop %v4075
      %v4077 = vmul.f32 %v4001, 1.442695
      %v4078 = vpow.pop %v4077
      %v4079 = vmul.f32 %v4002, 1.442695
      %v4080 = vpow.pop %v4079
      %v4081 = vmul.f32 %v4003, 1.442695
      %v4082 = vpow.pop %v4081
      %v4083 = vmul.f32 %v4004, 1.442695
      %v4084 = vpow.pop %v4083
      %v4085 = vmul.f32 %v4005, 1.442695
      %v4086 = vpow.pop %v4085
      %v4087 = vmul.f32 %v4006, 1.442695
      %v4088 = vpow.pop %v4087
      %v4089 = vmul.f32 %v4007, 1.442695
      %v4090 = vpow.pop %v4089
      %v4091 = vmul.f32 %v4008, 1.442695
      %v4092 = vpow.pop %v4091
      %v4093 = vmul.f32 %v4009, 1.442695
      %v4094 = vpow.pop %v4093
      %v4095 = vmul.f32 %v4010, 1.442695
      %v4096 = vpow.pop %v4095
      %v4097 = vmul.f32 %v4011, 1.442695
      %v4098 = vpow.pop %v4097
      %v4099 = vmul.f32 %v4012, 1.442695
      %v4100 = vpow.pop %v4099
      %v4101 = vmul.f32 %v4013, 1.442695
      %v4102 = vpow.pop %v4101
      %v4103 = vmul.f32 %v4014, 1.442695
      %v4104 = vpow.pop %v4103
      %v4105 = vmul.f32 %v4015, 1.442695
      %v4106 = vpow.pop %v4105
      %v4107 = vmul.f32 %v4016, 1.442695
      %v4108 = vpow.pop %v4107
      %v4109 = vmul.f32 %v4017, 1.442695
      %v4110 = vpow.pop %v4109
      %v4111 = vmul.f32 %v4018, 1.442695
      %v4112 = vpow.pop %v4111
      %v4113 = vmul.f32 %v4019, 1.442695
      %v4114 = vpow.pop %v4113
      %v4115 = vmul.f32 %v4020, 1.442695
      %v4116 = vpow.pop %v4115
      %v4117 = vmul.f32 %v4021, 1.442695
      %v4118 = vpow.pop %v4117
      %v4119 = vmul.f32 %v4022, 1.442695
      %v4120 = vpow.pop %v4119
      %v4121 = vmul.f32 %v4023, 1.442695
      %v4122 = vpow.pop %v4121
      %v4123 = vmul.f32 %v4024, 1.442695
      %v4124 = vpow.pop %v4123
      %v4125 = vmul.f32 %v4025, 1.442695
      %v4126 = vpow.pop %v4125
      %v4127 = vmul.f32 %v4026, 1.442695
      %v4128 = vpow.pop %v4127
      %v4129 = vmul.f32 %v4027, 1.442695
      %v4130 = vpow.pop %v4129
      %v4131 = vmul.f32 %v4028, 1.442695
      %v4132 = vpow.pop %v4131
      %v4133 = vmul.f32 %v4029, 1.442695
      %v4134 = vpow.pop %v4133
      %v4135 = vmul.f32 %v4030, 1.442695
      %v4136 = vpow.pop %v4135
      %v4137 = vmul.f32 %v4031, 1.442695
      %v4138 = vpow.pop %v4137
      %v4139 = vmul.f32 %v4032, 1.442695
      %v4140 = vpow.pop %v4139
      %v4141 = vmul.f32 %v4033, 1.442695
      %v4142 = vpow.pop %v4141
      %v4143 = vmul.f32 %v4034, 1.442695
      %v4144 = vpow.pop %v4143
      %v4145 = vmul.f32 %v4035, 1.442695
      %v4146 = vpow.pop %v4145
      %v4147 = vmul.f32 %v4036, 1.442695
      %v4148 = vpow.pop %v4147
      %v4149 = vmul.f32 %v4037, 1.442695
      %v4150 = vpow.pop %v4149
      %v4151 = vmul.f32 %v4038, 1.442695
      %v4152 = vpow.pop %v4151
      %v4153 = vmul.f32 %v4039, 1.442695
      %v4154 = vpow.pop %v4153
      %v4155 = vmul.f32 %v4040, 1.442695
      %v4156 = vpow.pop %v4155
      %v4157 = vmul.f32 %v4041, 1.442695
      %v4158 = vpow.pop %v4157
      %v4159 = vmul.f32 %v4042, 1.442695
      %v4160 = vpow.pop %v4159
      %v4161 = vmul.f32 %v4043, 1.442695
      %v4162 = vpow.pop %v4161
      %v4163 = vmul.f32 %v4044, 1.442695
      %v4164 = vpow.pop %v4163
      %v4165 = vmul.f32 %v4045, 1.442695
      %v4166 = vpow.pop %v4165
      %v4167 = vmul.f32 %v4046, 1.442695
      %v4168 = vpow.pop %v4167
      %v4169 = vmul.f32 %v4047, 1.442695
      %v4170 = vpow.pop %v4169
      %v4171 = vmul.f32 %v4048, 1.442695
      %v4172 = vpow.pop %v4171
      %v4173 = vmul.f32 %v4049, 1.442695
      %v4174 = vpow.pop %v4173
      %v4175 = vmul.f32 %v4050, 1.442695
      %v4176 = vpow.pop %v4175
      %v4177 = vmul.f32 %v4051, 1.442695
      %v4178 = vpow.pop %v4177
      %v4179 = vmul.f32 %v4052, 1.442695
      %v4180 = vpow.pop %v4179
      %v4181 = vadd.f32 %v4054, 1.0
      %v4182 = vadd.f32 %v4056, 1.0
      %v4183 = vadd.f32 %v4058, 1.0
      %v4184 = vadd.f32 %v4060, 1.0
      %v4185 = vadd.f32 %v4062, 1.0
      %v4186 = vadd.f32 %v4064, 1.0
      %v4187 = vadd.f32 %v4066, 1.0
      %v4188 = vadd.f32 %v4068, 1.0
      %v4189 = vadd.f32 %v4070, 1.0
      %v4190 = vadd.f32 %v4072, 1.0
      %v4191 = vadd.f32 %v4074, 1.0
      %v4192 = vadd.f32 %v4076, 1.0
      %v4193 = vadd.f32 %v4078, 1.0
      %v4194 = vadd.f32 %v4080, 1.0
      %v4195 = vadd.f32 %v4082, 1.0
      %v4196 = vadd.f32 %v4084, 1.0
      %v4197 = vadd.f32 %v4086, 1.0
      %v4198 = vadd.f32 %v4088, 1.0
      %v4199 = vadd.f32 %v4090, 1.0
      %v4200 = vadd.f32 %v4092, 1.0
      %v4201 = vadd.f32 %v4094, 1.0
      %v4202 = vadd.f32 %v4096, 1.0
      %v4203 = vadd.f32 %v4098, 1.0
      %v4204 = vadd.f32 %v4100, 1.0
      %v4205 = vadd.f32 %v4102, 1.0
      %v4206 = vadd.f32 %v4104, 1.0
      %v4207 = vadd.f32 %v4106, 1.0
      %v4208 = vadd.f32 %v4108, 1.0
      %v4209 = vadd.f32 %v4110, 1.0
      %v4210 = vadd.f32 %v4112, 1.0
      %v4211 = vadd.f32 %v4114, 1.0
      %v4212 = vadd.f32 %v4116, 1.0
      %v4213 = vadd.f32 %v4118, 1.0
      %v4214 = vadd.f32 %v4120, 1.0
      %v4215 = vadd.f32 %v4122, 1.0
      %v4216 = vadd.f32 %v4124, 1.0
      %v4217 = vadd.f32 %v4126, 1.0
      %v4218 = vadd.f32 %v4128, 1.0
      %v4219 = vadd.f32 %v4130, 1.0
      %v4220 = vadd.f32 %v4132, 1.0
      %v4221 = vadd.f32 %v4134, 1.0
      %v4222 = vadd.f32 %v4136, 1.0
      %v4223 = vadd.f32 %v4138, 1.0
      %v4224 = vadd.f32 %v4140, 1.0
      %v4225 = vadd.f32 %v4142, 1.0
      %v4226 = vadd.f32 %v4144, 1.0
      %v4227 = vadd.f32 %v4146, 1.0
      %v4228 = vadd.f32 %v4148, 1.0
      %v4229 = vadd.f32 %v4150, 1.0
      %v4230 = vadd.f32 %v4152, 1.0
      %v4231 = vadd.f32 %v4154, 1.0
      %v4232 = vadd.f32 %v4156, 1.0
      %v4233 = vadd.f32 %v4158, 1.0
      %v4234 = vadd.f32 %v4160, 1.0
      %v4235 = vadd.f32 %v4162, 1.0
      %v4236 = vadd.f32 %v4164, 1.0
      %v4237 = vadd.f32 %v4166, 1.0
      %v4238 = vadd.f32 %v4168, 1.0
      %v4239 = vadd.f32 %v4170, 1.0
      %v4240 = vadd.f32 %v4172, 1.0
      %v4241 = vadd.f32 %v4174, 1.0
      %v4242 = vadd.f32 %v4176, 1.0
      %v4243 = vadd.f32 %v4178, 1.0
      %v4244 = vadd.f32 %v4180, 1.0
      %v4245 = vrcp.pop %v4181
      %v4246 = vrcp.pop %v4182
      %v4247 = vrcp.pop %v4183
      %v4248 = vrcp.pop %v4184
      %v4249 = vrcp.pop %v4185
      %v4250 = vrcp.pop %v4186
      %v4251 = vrcp.pop %v4187
      %v4252 = vrcp.pop %v4188
      %v4253 = vrcp.pop %v4189
      %v4254 = vrcp.pop %v4190
      %v4255 = vrcp.pop %v4191
      %v4256 = vrcp.pop %v4192
      %v4257 = vrcp.pop %v4193
      %v4258 = vrcp.pop %v4194
      %v4259 = vrcp.pop %v4195
      %v4260 = vrcp.pop %v4196
      %v4261 = vrcp.pop %v4197
      %v4262 = vrcp.pop %v4198
      %v4263 = vrcp.pop %v4199
      %v4264 = vrcp.pop %v4200
      %v4265 = vrcp.pop %v4201
      %v4266 = vrcp.pop %v4202
      %v4267 = vrcp.pop %v4203
      %v4268 = vrcp.pop %v4204
      %v4269 = vrcp.pop %v4205
      %v4270 = vrcp.pop %v4206
      %v4271 = vrcp.pop %v4207
      %v4272 = vrcp.pop %v4208
      %v4273 = vrcp.pop %v4209
      %v4274 = vrcp.pop %v4210
      %v4275 = vrcp.pop %v4211
      %v4276 = vrcp.pop %v4212
      %v4277 = vrcp.pop %v4213
      %v4278 = vrcp.pop %v4214
      %v4279 = vrcp.pop %v4215
      %v4280 = vrcp.pop %v4216
      %v4281 = vrcp.pop %v4217
      %v4282 = vrcp.pop %v4218
      %v4283 = vrcp.pop %v4219
      %v4284 = vrcp.pop %v4220
      %v4285 = vrcp.pop %v4221
      %v4286 = vrcp.pop %v4222
      %v4287 = vrcp.pop %v4223
      %v4288 = vrcp.pop %v4224
      %v4289 = vrcp.pop %v4225
      %v4290 = vrcp.pop %v4226
      %v4291 = vrcp.pop %v4227
      %v4292 = vrcp.pop %v4228
      %v4293 = vrcp.pop %v4229
      %v4294 = vrcp.pop %v4230
      %v4295 = vrcp.pop %v4231
      %v4296 = vrcp.pop %v4232
      %v4297 = vrcp.pop %v4233
      %v4298 = vrcp.pop %v4234
      %v4299 = vrcp.pop %v4235
      %v4300 = vrcp.pop %v4236
      %v4301 = vrcp.pop %v4237
      %v4302 = vrcp.pop %v4238
      %v4303 = vrcp.pop %v4239
      %v4304 = vrcp.pop %v4240
      %v4305 = vrcp.pop %v4241
      %v4306 = vrcp.pop %v4242
      %v4307 = vrcp.pop %v4243
      %v4308 = vrcp.pop %v4244
      %vm4309 = vcmask 523264
      %4310 = vst.msk [vmem:[%s226] sm:$0xff] %vm4309, %v4245
      %4311 = vst.msk [vmem:[%s226 + $0x8] sm:$0xff] %vm4309, %v4246
      %4312 = vst.msk [vmem:[%s226 + $0x10] sm:$0xff] %vm4309, %v4247
      %4313 = vst.msk [vmem:[%s226 + $0x18] sm:$0xff] %vm4309, %v4248
      %4314 = vst.msk [vmem:[%s226 + $0x20] sm:$0xff] %vm4309, %v4249
      %4315 = vst.msk [vmem:[%s226 + $0x28] sm:$0xff] %vm4309, %v4250
      %4316 = vst.msk [vmem:[%s226 + $0x30] sm:$0xff] %vm4309, %v4251
      %4317 = vst.msk [vmem:[%s226 + $0x38] sm:$0xff] %vm4309, %v4252
      %4318 = vst.msk [vmem:[%s226 + $0x40] sm:$0xff] %vm4309, %v4253
      %4319 = vst.msk [vmem:[%s226 + $0x48] sm:$0xff] %vm4309, %v4254
      %4320 = vst.msk [vmem:[%s226 + $0x50] sm:$0xff] %vm4309, %v4255
      %4321 = vst.msk [vmem:[%s226 + $0x58] sm:$0xff] %vm4309, %v4256
      %4322 = vst.msk [vmem:[%s226 + $0x60] sm:$0xff] %vm4309, %v4257
      %4323 = vst.msk [vmem:[%s226 + $0x68] sm:$0xff] %vm4309, %v4258
      %4324 = vst.msk [vmem:[%s226 + $0x70] sm:$0xff] %vm4309, %v4259
      %4325 = vst.msk [vmem:[%s226 + $0x78] sm:$0xff] %vm4309, %v4260
      %4326 = vst.msk [vmem:[%s226 + $0x80] sm:$0xff] %vm4309, %v4261
      %4327 = vst.msk [vmem:[%s226 + $0x88] sm:$0xff] %vm4309, %v4262
      %4328 = vst.msk [vmem:[%s226 + $0x90] sm:$0xff] %vm4309, %v4263
      %4329 = vst.msk [vmem:[%s226 + $0x98] sm:$0xff] %vm4309, %v4264
      %4330 = vst.msk [vmem:[%s226 + $0xa0] sm:$0xff] %vm4309, %v4265
      %4331 = vst.msk [vmem:[%s226 + $0xa8] sm:$0xff] %vm4309, %v4266
      %4332 = vst.msk [vmem:[%s226 + $0xb0] sm:$0xff] %vm4309, %v4267
      %4333 = vst.msk [vmem:[%s226 + $0xb8] sm:$0xff] %vm4309, %v4268
      %4334 = vst.msk [vmem:[%s226 + $0xc0] sm:$0xff] %vm4309, %v4269
      %4335 = vst.msk [vmem:[%s226 + $0xc8] sm:$0xff] %vm4309, %v4270
      %4336 = vst.msk [vmem:[%s226 + $0xd0] sm:$0xff] %vm4309, %v4271
      %4337 = vst.msk [vmem:[%s226 + $0xd8] sm:$0xff] %vm4309, %v4272
      %4338 = vst.msk [vmem:[%s226 + $0xe0] sm:$0xff] %vm4309, %v4273
      %4339 = vst.msk [vmem:[%s226 + $0xe8] sm:$0xff] %vm4309, %v4274
      %4340 = vst.msk [vmem:[%s226 + $0xf0] sm:$0xff] %vm4309, %v4275
      %4341 = vst.msk [vmem:[%s226 + $0xf8] sm:$0xff] %vm4309, %v4276
      %4342 = vst.msk [vmem:[%s226 + $0x100] sm:$0xff] %vm4309, %v4277
      %4343 = vst.msk [vmem:[%s226 + $0x108] sm:$0xff] %vm4309, %v4278
      %4344 = vst.msk [vmem:[%s226 + $0x110] sm:$0xff] %vm4309, %v4279
      %4345 = vst.msk [vmem:[%s226 + $0x118] sm:$0xff] %vm4309, %v4280
      %4346 = vst.msk [vmem:[%s226 + $0x120] sm:$0xff] %vm4309, %v4281
      %4347 = vst.msk [vmem:[%s226 + $0x128] sm:$0xff] %vm4309, %v4282
      %4348 = vst.msk [vmem:[%s226 + $0x130] sm:$0xff] %vm4309, %v4283
      %4349 = vst.msk [vmem:[%s226 + $0x138] sm:$0xff] %vm4309, %v4284
      %4350 = vst.msk [vmem:[%s226 + $0x140] sm:$0xff] %vm4309, %v4285
      %4351 = vst.msk [vmem:[%s226 + $0x148] sm:$0xff] %vm4309, %v4286
      %4352 = vst.msk [vmem:[%s226 + $0x150] sm:$0xff] %vm4309, %v4287
      %4353 = vst.msk [vmem:[%s226 + $0x158] sm:$0xff] %vm4309, %v4288
      %4354 = vst.msk [vmem:[%s226 + $0x160] sm:$0xff] %vm4309, %v4289
      %4355 = vst.msk [vmem:[%s226 + $0x168] sm:$0xff] %vm4309, %v4290
      %4356 = vst.msk [vmem:[%s226 + $0x170] sm:$0xff] %vm4309, %v4291
      %4357 = vst.msk [vmem:[%s226 + $0x178] sm:$0xff] %vm4309, %v4292
      %4358 = vst.msk [vmem:[%s226 + $0x180] sm:$0xff] %vm4309, %v4293
      %4359 = vst.msk [vmem:[%s226 + $0x188] sm:$0xff] %vm4309, %v4294
      %4360 = vst.msk [vmem:[%s226 + $0x190] sm:$0xff] %vm4309, %v4295
      %4361 = vst.msk [vmem:[%s226 + $0x198] sm:$0xff] %vm4309, %v4296
      %4362 = vst.msk [vmem:[%s226 + $0x1a0] sm:$0xff] %vm4309, %v4297
      %4363 = vst.msk [vmem:[%s226 + $0x1a8] sm:$0xff] %vm4309, %v4298
      %4364 = vst.msk [vmem:[%s226 + $0x1b0] sm:$0xff] %vm4309, %v4299
      %4365 = vst.msk [vmem:[%s226 + $0x1b8] sm:$0xff] %vm4309, %v4300
      %4366 = vst.msk [vmem:[%s226 + $0x1c0] sm:$0xff] %vm4309, %v4301
      %4367 = vst.msk [vmem:[%s226 + $0x1c8] sm:$0xff] %vm4309, %v4302
      %4368 = vst.msk [vmem:[%s226 + $0x1d0] sm:$0xff] %vm4309, %v4303
      %4369 = vst.msk [vmem:[%s226 + $0x1d8] sm:$0xff] %vm4309, %v4304
      %4370 = vst.msk [vmem:[%s226 + $0x1e0] sm:$0xff] %vm4309, %v4305
      %4371 = vst.msk [vmem:[%s226 + $0x1e8] sm:$0xff] %vm4309, %v4306
      %4372 = vst.msk [vmem:[%s226 + $0x1f0] sm:$0xff] %vm4309, %v4307
      %4373 = vst.msk [vmem:[%s226 + $0x1f8] sm:$0xff] %vm4309, %v4308
      %s4374 = smul.u32 64, %s16
      %p4375 = scmp.lt.s32.totalorder %s4374, 127
      %s4376 = scalar_select %p4375, %s4374, 127
      %s4377 = smul.addr %s4376, 8
      %s4378 = scalar_lea.vmem %s5, %s4377
      // Predicated region
      $region41: #{decoder_forward.1} parent=39 // pred_check
        %p4379 = pneg %p144
      $region42: #{decoder_forward.1} parent=39 // pred_check_branch
        %4381 = sbr.rel (%p4379) target = $region44
      $region43: #{decoder_forward.1} parent=39 // pred_region
        %s4382 = smul.u32 64, %s16
      $region44: #{decoder_forward.1} parent=39 // pred_fallthru
        _
    $region40: #{decoder_forward.1} parent=5 // pred_fallthru
      _
    %p4383 = scmp.le.s32.totalorder 2, %s11
    // Predicated region
    $region45: #{decoder_forward.1} parent=5 // pred_check
      %p4384 = pneg %p4383
    $region46: #{decoder_forward.1} parent=5 // pred_check_branch
      %4386 = sbr.rel (%p4384) target = $region48
    $region47: #{decoder_forward.1} parent=5 // pred_region
      %s4387 = ssub.s32 %s11, 2
      // Predicated region
      $region49: #{decoder_forward.1} parent=47 // pred_check
        %p4388 = pneg %p150
      $region50: #{decoder_forward.1} parent=47 // pred_check_branch
        %4390 = sbr.rel (%p4388) target = $region52
      $region51: #{decoder_forward.1} parent=47 // pred_region
        %s4391 = smul.u32 64, %s17
        %p4392 = scmp.lt.s32.totalorder %s4391, 127
        %s4393 = scalar_select %p4392, %s4391, 127
        %s4394 = smul.addr %s4393, 8
        %s4395 = scalar_lea.vmem %s5, %s4394
      $region52: #{decoder_forward.1} parent=47 // pred_fallthru
        _
    $region48: #{decoder_forward.1} parent=5 // pred_fallthru
      _
  $region6: #{decoder_forward.1} parent=0 // loop_footer
    %s15 = sadd.s32 1, %s11
  $region7: #{decoder_forward.1} parent=0 // loop_footer_branch
    %10 = sbr.rel target = $region3
  $region8: #{decoder_forward.1} parent=0 // loop_exit
    _

</llo_original>
